<compile_context>
chip_gen: v7x
topology: tpu7x:2x2x1
jax: 0.10.0
libtpu: 0.0.40
codegen_flags: <defaults>
</compile_context>

<pallas_src>
import math
import functools

import jax
import jax.numpy as jnp
from jax import lax
from jax.experimental import pallas as pl
from jax.experimental.pallas import tpu as pltpu


# ---------------------------------------------------------------------------
# Pallas kernel: HB (batch*head) slices per grid step, TQ query tile, full
# keys per block (softmax over the full key axis, no online accumulator).
# ---------------------------------------------------------------------------
def _attn_kernel(q_ref, k_ref, vt_ref, o_ref, *, scale):
    # q_ref: (HB, hd, TQ)  k_ref: (HB, hd, T)  vt_ref: (HB, T, hd)
    # o_ref: (HB, hd, TQ)
    q = q_ref[...]
    k = k_ref[...]
    vt = vt_ref[...]
    op_dtype = q.dtype

    # Scale applied once, to the smallest operand (== einsum(q,k)/sqrt(channel)).
    qs = q * jnp.asarray(scale, dtype=op_dtype)

    # scores[h, t, s] = sum_c qs[h, c, t] * k[h, c, s]
    # Mosaic transposes only the small (hd, TQ) q tile here; k stays native.
    s = lax.dot_general(
        qs, k,
        dimension_numbers=(((1,), (1,)), ((0,), (0,))),
        preferred_element_type=jnp.float32)               # (HB, TQ, T) f32

    # Numerically stable softmax numerator; all elementwise stats in f32.
    s = s - jnp.max(s, axis=-1, keepdims=True)
    p = jnp.exp(s).astype(op_dtype)                       # MXU operand dtype

    # Row-sum on the MXU (ones-vector matmul, f32 accumulate) instead of an
    # XLU cross-lane reduction over the (TQ, T) tile.
    ones = jnp.ones((p.shape[0], p.shape[2], 1), dtype=op_dtype)
    denom = lax.dot_general(
        p, ones,
        dimension_numbers=(((2,), (1,)), ((0,), (0,))),
        preferred_element_type=jnp.float32)                # (HB, TQ, 1) f32

    # out_t[h, t, c] = sum_s p[h, t, s] * vt[h, s, c]
    # V is pre-transposed in the wrapper -> MXU-native, no large p transpose.
    acc = lax.dot_general(
        p, vt,
        dimension_numbers=(((2,), (1,)), ((0,), (0,))),
        preferred_element_type=jnp.float32)                # (HB, TQ, hd) f32

    # Normalize the small (TQ, hd) result, not the (TQ, T) probability tile.
    acc = acc * pl.reciprocal(denom, approx=True)

    # Small transpose back to the lane-dense (hd, TQ) output layout.
    o_ref[...] = jnp.swapaxes(acc, 1, 2).astype(o_ref.dtype)


# ---------------------------------------------------------------------------
# Tiling / VMEM planning
# ---------------------------------------------------------------------------
def _vmem_capacity_bytes():
    try:
        cap = int(pltpu.get_tpu_info().vmem_capacity_bytes)
        if cap > 0:
            return cap
    except Exception:
        pass
    return 64 * 1024 * 1024   # conservative default (v7x per-core VMEM)


def _plan(B, hd, T, op_dtype):
    """Return (HB, TQ, vmem_limit_bytes) or None (=> fall back to XLA)."""
    # Sub-128-lane output blocks -> masked vst on every store; XLA fusion wins.
    if T < 128:
        return None

    cap = _vmem_capacity_bytes()
    # Generation-aware working-set budget: ~65% of physical VMEM
    # (~83 MiB on 128 MiB v5e/v6e parts, ~42 MiB on 64 MiB v7x parts).
    budget = min(int(cap * 0.65), 96 * 1024 * 1024)
    vmem_limit = min(int(cap * 0.85), 112 * 1024 * 1024)

    itemsize = jnp.dtype(op_dtype).itemsize
    hd_sub = -(-hd // 8) * 8            # sublane-padded head dim (q / k / out)
    hd_lane = -(-hd // 128) * 128       # lane-padded head dim (v^T block)

    if T % 128 == 0:
        tq_candidates = [t for t in (512, 256, 128) if T % t == 0]
        if not tq_candidates:
            tq_candidates = [T]
    else:
        tq_candidates = [T]

    def vmem_bytes(hb, tq):
        return (
            2 * hb * hd_sub * (tq + T) * itemsize   # dbl-buffered q + k blocks
            + 2 * hb * T * hd_lane * itemsize       # dbl-buffered lane-padded v^T
            + 2 * hb * hd_sub * tq * 4              # dbl-buffered output block
            + 3 * hb * tq * T * 4                   # ~3 live f32 score-tile copies
            + 2 * hb * tq * hd_lane * 4             # f32 result + transposed copy
            + hb * tq * 8 * 4                       # row max / denom vectors
        )

    def search(require_multi_step):
        for tq in tq_candidates:
            n_qt = T // tq
            for hb in (16, 8, 4, 2, 1):
                if B % hb:
                    continue
                steps = (B // hb) * n_qt
                if require_multi_step and steps < 2:
                    continue
                if vmem_bytes(hb, tq) <= budget:
                    return hb, tq
        return None

    best = search(True) or search(False)
    if best is None:
        return None                      # graceful fallback for very large T
    return best[0], best[1], vmem_limit


# ---------------------------------------------------------------------------
# Attention core wrapper
# ---------------------------------------------------------------------------
def _attention_core_ref(q, k, v, *, scale):
    hp = lax.Precision.HIGHEST
    qf = q.astype(jnp.float32) * scale
    s = jnp.einsum('bct,bcs->bts', qf, k.astype(jnp.float32), precision=hp)
    p = jax.nn.softmax(s, axis=-1)
    return jnp.einsum('bts,bcs->bct', p, v.astype(jnp.float32), precision=hp)


def attention_core(q, k, v, *, scale, compute_dtype=None):
    """q, k, v: [B, hd, T] (B = batch * n_head) -> [B, hd, T]."""
    B, hd, T = q.shape
    assert k.shape == (B, hd, T) and v.shape == (B, hd, T)
    out_dtype = q.dtype
    op_dtype = jnp.dtype(compute_dtype) if compute_dtype is not None else q.dtype

    plan = _plan(B, hd, T, op_dtype)
    if plan is None:
        # Lane-sparse (T < 128) or VMEM-infeasible level: let XLA fuse it.
        return _attention_core_ref(q, k, v, scale=scale).astype(out_dtype)

    HB, TQ, vmem_limit = plan
    qo = q.astype(op_dtype)
    ko = k.astype(op_dtype)
    vt = jnp.swapaxes(v, 1, 2).astype(op_dtype)   # (B, T, hd): V pre-transposed once

    return pl.pallas_call(
        functools.partial(_attn_kernel, scale=scale),
        out_shape=jax.ShapeDtypeStruct((B, hd, T), out_dtype),
        grid_spec=pltpu.PrefetchScalarGridSpec(
            num_scalar_prefetch=0,
            grid=(B // HB, T // TQ),
            in_specs=[
                pl.BlockSpec((HB, hd, TQ), lambda b, qi: (b, 0, qi)),
                pl.BlockSpec((HB, hd, T), lambda b, qi: (b, 0, 0)),
                pl.BlockSpec((HB, T, hd), lambda b, qi: (b, 0, 0)),
            ],
            out_specs=pl.BlockSpec((HB, hd, TQ), lambda b, qi: (b, 0, qi)),
        ),
        compiler_params=pltpu.CompilerParams(
            dimension_semantics=("parallel", "parallel"),
            vmem_limit_bytes=vmem_limit),
    )(qo, ko, vt)


# ---------------------------------------------------------------------------
# Pure-JAX pieces of SelfAttention.forward (GroupNorm, 1x1 convs, residual).
# ---------------------------------------------------------------------------
def _group_norm(x, gamma, beta, groups, eps=1e-5):
    N, C, H, W = x.shape
    x32 = x.astype(jnp.float32).reshape(N, groups, C // groups, H, W)
    mean = x32.mean(axis=(2, 3, 4), keepdims=True)
    var = x32.var(axis=(2, 3, 4), keepdims=True)
    xn = (x32 - mean) * lax.rsqrt(var + eps)
    xn = xn.reshape(N, C, H, W)
    out = (xn * gamma.reshape(1, C, 1, 1).astype(jnp.float32)
           + beta.reshape(1, C, 1, 1).astype(jnp.float32))
    return out.astype(x.dtype)


def _conv1x1(x, w, b=None):
    y = jnp.einsum('nchw,oc->nohw', x, w)
    if b is not None:
        y = y + b.reshape(1, -1, 1, 1)
    return y


def self_attention_forward(x, params, *, n_head, norm_groups,
                           use_pallas=True, compute_dtype=None):
    """Matches SelfAttention.forward of the Palette UNet."""
    N, C, H, W = x.shape
    T = H * W
    hd = C // n_head

    xn = _group_norm(x, params["gn_w"], params["gn_b"], norm_groups)
    qkv = _conv1x1(xn, params["w_qkv"])                    # (N, 3C, H, W), no bias
    qkv = qkv.reshape(N, n_head, 3 * hd, T)                # == torch .view(...)
    q = qkv[:, :, :hd].reshape(N * n_head, hd, T)
    k = qkv[:, :, hd:2 * hd].reshape(N * n_head, hd, T)
    v = qkv[:, :, 2 * hd:].reshape(N * n_head, hd, T)

    # Intentional: the Palette module divides by sqrt(total channel count).
    scale = 1.0 / math.sqrt(C)
    if use_pallas:
        a = attention_core(q, k, v, scale=scale, compute_dtype=compute_dtype)
    else:
        a = _attention_core_ref(q, k, v, scale=scale)

    a = a.reshape(N, C, H, W)
    out = _conv1x1(a.astype(x.dtype), params["w_out"], params["b_out"])
    return out + x


# ---------------------------------------------------------------------------
if __name__ == "__main__":
    key = jax.random.PRNGKey(0)
    N, C, H, W = 2, 32, 16, 16          # T = 256 >= 128 -> Pallas attention path
    n_head, norm_groups = 2, 8

    keys = jax.random.split(key, 8)
    x = jax.random.normal(keys[0], (N, C, H, W), jnp.float32)
    params = {
        "gn_w": 1.0 + 0.1 * jax.random.normal(keys[1], (C,), jnp.float32),
        "gn_b": 0.1 * jax.random.normal(keys[2], (C,), jnp.float32),
        "w_qkv": jax.random.normal(keys[3], (3 * C, C), jnp.float32) / math.sqrt(C),
        "w_out": jax.random.normal(keys[4], (C, C), jnp.float32) / math.sqrt(C),
        "b_out": 0.1 * jax.random.normal(keys[5], (C,), jnp.float32),
    }

    # Full SelfAttention forward, f32 Pallas path.
    out = self_attention_forward(x, params, n_head=n_head,
                                 norm_groups=norm_groups, use_pallas=True)
    out = jax.block_until_ready(out)
    ref = self_attention_forward(x, params, n_head=n_head,
                                 norm_groups=norm_groups, use_pallas=False)
    assert out.shape == x.shape
    assert jnp.allclose(out, ref, atol=2e-2, rtol=2e-2), \
        float(jnp.max(jnp.abs(out - ref)))

    # bf16 compute-dtype path of the attention core (bf16 MXU operands,
    # f32 accumulation and f32 softmax stats).
    kq, kk, kv = jax.random.split(jax.random.PRNGKey(1), 3)
    B2, hd2, T2 = 4, 32, 256
    q2 = jax.random.normal(kq, (B2, hd2, T2), jnp.float32)
    k2 = jax.random.normal(kk, (B2, hd2, T2), jnp.float32)
    v2 = jax.random.normal(kv, (B2, hd2, T2), jnp.float32)
    sc2 = 1.0 / math.sqrt(hd2 * 2)
    a_bf16 = attention_core(q2, k2, v2, scale=sc2, compute_dtype=jnp.bfloat16)
    a_bf16 = jax.block_until_ready(a_bf16)
    a_ref2 = _attention_core_ref(q2, k2, v2, scale=sc2)
    assert jnp.allclose(a_bf16.astype(jnp.float32), a_ref2, atol=1e-1, rtol=1e-1)

    # Small-T level (the real model's attn_res=8 -> T=64): dispatch falls back
    # to the XLA path instead of emitting a lane-sparse Pallas kernel.
    kq3, kk3, kv3 = jax.random.split(jax.random.PRNGKey(2), 3)
    q3 = jax.random.normal(kq3, (4, 16, 64), jnp.float32)
    k3 = jax.random.normal(kk3, (4, 16, 64), jnp.float32)
    v3 = jax.random.normal(kv3, (4, 16, 64), jnp.float32)
    a3 = jax.block_until_ready(attention_core(q3, k3, v3, scale=1.0 / math.sqrt(32)))
    a3_ref = _attention_core_ref(q3, k3, v3, scale=1.0 / math.sqrt(32))
    assert jnp.allclose(a3, a3_ref, atol=1e-4, rtol=1e-4)

    print("KERNEL_OK")
</pallas_src>

<mosaic_0001>
module attributes {stable_mosaic.version = 11 : i64} {
  func.func @_attn_kernel(%arg0: i32, %arg1: i32, %arg2: memref<2x16x256xf32, #tpu.memory_space<vmem>>, %arg3: memref<2x16x256xf32, #tpu.memory_space<vmem>>, %arg4: memref<2x256x16xf32, #tpu.memory_space<vmem>>, %arg5: memref<2x16x256xf32, #tpu.memory_space<vmem>>) attributes {dimension_semantics = [#tpu.dimension_semantics<parallel>, #tpu.dimension_semantics<parallel>], iteration_bounds = array<i64: 2, 1>, scalar_prefetch = 0 : i64, scratch_operands = 0 : i64, tpu.core_type = #tpu.core_type<tc>, window_params = [{transform_indices = @transform_0, window_bounds = array<i64: 2, 16, 256>}, {transform_indices = @transform_1, window_bounds = array<i64: 2, 16, 256>}, {transform_indices = @transform_2, window_bounds = array<i64: 2, 256, 16>}, {transform_indices = @transform_3, window_bounds = array<i64: 2, 16, 256>}]} {
    %c0 = arith.constant 0 : index
    %c0_0 = arith.constant 0 : index
    %c0_1 = arith.constant 0 : index
    %0 = vector.load %arg2[%c0, %c0_0, %c0_1] : memref<2x16x256xf32, #tpu.memory_space<vmem>>, vector<2x16x256xf32>
    %c0_2 = arith.constant 0 : index
    %c0_3 = arith.constant 0 : index
    %c0_4 = arith.constant 0 : index
    %1 = vector.load %arg3[%c0_2, %c0_3, %c0_4] : memref<2x16x256xf32, #tpu.memory_space<vmem>>, vector<2x16x256xf32>
    %c0_5 = arith.constant 0 : index
    %c0_6 = arith.constant 0 : index
    %c0_7 = arith.constant 0 : index
    %2 = vector.load %arg4[%c0_5, %c0_6, %c0_7] : memref<2x256x16xf32, #tpu.memory_space<vmem>>, vector<2x256x16xf32>
    %cst = arith.constant 0.176776692 : f32
    %3 = vector.broadcast %cst : f32 to vector<2x16x256xf32>
    %4 = arith.mulf %0, %3 : vector<2x16x256xf32>
    %cst_8 = arith.constant dense<0.000000e+00> : vector<2x256x256xf32>
    %5 = tpu.matmul %4, %1, %cst_8 {dimension_numbers = #tpu.dot_dimension_numbers<[1], [1], [2], [2], [0, 0, 0, 2, 1, 2], [0], [0]>} : vector<2x16x256xf32>, vector<2x16x256xf32>, vector<2x256x256xf32> -> vector<2x256x256xf32>
    %cst_9 = arith.constant dense<0xFF800000> : vector<2x256xf32>
    %6 = vector.multi_reduction <maximumf>, %5, %cst_9 [2] : vector<2x256x256xf32> to vector<2x256xf32>
    %7 = vector.shape_cast %6 : vector<2x256xf32> to vector<2x256x1xf32>
    %8 = vector.broadcast %7 : vector<2x256x1xf32> to vector<2x256x256xf32>
    %9 = arith.subf %5, %8 : vector<2x256x256xf32>
    %10 = math.exp %9 : vector<2x256x256xf32>
    %cst_10 = arith.constant 1.000000e+00 : f32
    %11 = vector.broadcast %cst_10 : f32 to vector<2x256x1xf32>
    %cst_11 = arith.constant dense<0.000000e+00> : vector<2x256x1xf32>
    %12 = tpu.matmul %10, %11, %cst_11 {dimension_numbers = #tpu.dot_dimension_numbers<[2], [1], [1], [2], [0, 0, 0, 1, 1, 2], [0], [0]>} : vector<2x256x256xf32>, vector<2x256x1xf32>, vector<2x256x1xf32> -> vector<2x256x1xf32>
    %cst_12 = arith.constant dense<0.000000e+00> : vector<2x256x16xf32>
    %13 = tpu.matmul %10, %2, %cst_12 {dimension_numbers = #tpu.dot_dimension_numbers<[2], [1], [1], [2], [0, 0, 0, 1, 1, 2], [0], [0]>} : vector<2x256x256xf32>, vector<2x256x16xf32>, vector<2x256x16xf32> -> vector<2x256x16xf32>
    %14 = tpu.reciprocal %12 {approx = true} : vector<2x256x1xf32> -> vector<2x256x1xf32>
    %15 = vector.broadcast %14 : vector<2x256x1xf32> to vector<2x256x16xf32>
    %16 = arith.mulf %13, %15 : vector<2x256x16xf32>
    %17 = tpu.transpose %16, [0, 2, 1] : vector<2x256x16xf32> -> vector<2x16x256xf32>
    %c0_13 = arith.constant 0 : index
    %c0_14 = arith.constant 0 : index
    %c0_15 = arith.constant 0 : index
    %18 = vector.load %arg5[%c0_13, %c0_14, %c0_15] : memref<2x16x256xf32, #tpu.memory_space<vmem>>, vector<2x16x256xf32>
    tpu.vector_store %arg5[%c0_13, %c0_14, %c0_15], %17 {strides = array<i32>} : memref<2x16x256xf32, #tpu.memory_space<vmem>>, vector<2x16x256xf32>,
    return
  }
  func.func @transform_0(%arg0: i32, %arg1: i32) -> (i32, i32, i32) {
    %c0_i32 = arith.constant 0 : i32
    %c0_i32_0 = arith.constant 0 : i32
    return %arg0, %c0_i32, %arg1 : i32, i32, i32
  }
  func.func @transform_1(%arg0: i32, %arg1: i32) -> (i32, i32, i32) {
    %c0_i32 = arith.constant 0 : i32
    %c0_i32_0 = arith.constant 0 : i32
    %c0_i32_1 = arith.constant 0 : i32
    return %arg0, %c0_i32, %c0_i32_0 : i32, i32, i32
  }
  func.func @transform_2(%arg0: i32, %arg1: i32) -> (i32, i32, i32) {
    %c0_i32 = arith.constant 0 : i32
    %c0_i32_0 = arith.constant 0 : i32
    %c0_i32_1 = arith.constant 0 : i32
    return %arg0, %c0_i32, %c0_i32_0 : i32, i32, i32
  }
  func.func @transform_3(%arg0: i32, %arg1: i32) -> (i32, i32, i32) {
    %c0_i32 = arith.constant 0 : i32
    %c0_i32_0 = arith.constant 0 : i32
    return %arg0, %c0_i32, %arg1 : i32, i32, i32
  }
}

</mosaic_0001>

<llo_original>
// kernel: tpu_custom_call.1
$region0: #{tpu_custom_call.1}
  #allocation0 [shape = 'u32[]', space=smem, size = 0x4, offset = 0x4, fixed_abs, tag = 'smem constant byte address 0x4 - core index']
  #allocation1 [shape = 'u32[144,128]{1,0:T(1,128)}', space=vmem, size = 0x12000, scoped, tag = 'internal scratch']
  %s0 = inlined_call_operand.vmem [shape: f32[4,16,256], index: 0, kind: input, shape index: {}]
  %s1 = inlined_call_operand.vmem [shape: f32[4,16,256], index: 1, kind: input, shape index: {}]
  %s2 = inlined_call_operand.vmem [shape: f32[4,256,16], index: 2, kind: input, shape index: {}]
  %s3 = inlined_call_operand.hbm [shape: f32[4,16,256], index: 3, kind: output, shape index: {}]
  %s4 = sld [smem:[#allocation0]]
  $region45: #{tpu_custom_call.1} parent=0
    _
  %s6 = ssub.s32 1, %s4
  %s7 = scalar_select 0, %s6, %s4
  $region1: #{tpu_custom_call.1} parent=0
    #allocation2 [shape = 'u8[65536]{0}', space=vmem, size = 0x10000, scoped, tag = 'output window, operand 0']
    #allocation3 [shape = 's32[2]{0}', space=sflag, size = 0x8, scoped, tag = 'scoped memory for tpu_custom_call.1']
    %8 = vsyncpa [#allocation3], 0
    %s9 = scalar_lea.sflag [#allocation3], 1
    %10 = vsyncpa %s9, 0
    loop: start=0, step=1, limit=4
    $region2: #{tpu_custom_call.1} parent=1 // loop_pre_header
      _
    $region3: #{tpu_custom_call.1} parent=1 // loop_header
      %s12 = sphi 0, %s16
      %p13 = scmp.ge.s32.totalorder %s12, 4
      %s19 = sphi 0, %s31
      %s20 = sphi 0, %s27
      %s21 = sphi 0, %s19
      %s22 = sphi 0, %s20
      %s23 = sphi 0, %s21
      %s24 = sphi 0, %s22
      %s36 = sphi 0, %s38
      %s39 = sphi 0, %s36
      %s40 = sphi 0, %s39
      %s56 = sphi 0, %s40
      %s62 = sphi 0, %s64
      %s65 = sphi 0, %s62
      %s66 = sphi 0, %s65
      %s82 = sphi 0, %s66
      %s88 = sphi 0, %s90
      %s91 = sphi 0, %s88
      %s92 = sphi 0, %s91
      %s108 = sphi 0, %s92
      %s116 = sphi 0, %s118
      %s119 = sphi 0, %s116
      %s120 = sphi 0, %s119
      %s136 = sphi 0, %s120
    $region4: #{tpu_custom_call.1} parent=1 // loop_header_branch
      %15 = sbr.rel (%p13) target = $region8
    $region5: #{tpu_custom_call.1} parent=1 // loop_body
      %s17 = ssub.s32 %s12, 1
      %s18 = ssub.s32 %s12, 2
      %s25 = sadd.s32 1, %s20
      %p26 = scmp.ge.s32.totalorder %s25, 1
      %s27 = scalar_select %p26, 0, %s25
      %s28 = sadd.s32 1, %s19
      %s29 = scalar_select %p26, %s28, %s19
      %p30 = scmp.ge.s32.totalorder %s29, 2
      %s31 = scalar_select %p30, 0, %s29
      %s32 = ssub.s32 %s19, %s31
      %s33 = ssub.s32 %s20, %s27
      %s34 = sor.u32 %s32, %s33
      %p35 = scmp.eq.s32.totalorder %s34, 0
      %s37 = sadd.s32 %s36, 1
      %s38 = scalar_select %p35, %s36, %s37
      %p41 = pneg %p35
      %p42 = scmp.eq.s32.totalorder %s12, 1
      %p43 = por %p41, %p42
      %p44 = scmp.ne.s32.totalorder %s36, %s39
      %p45 = scmp.eq.s32.totalorder %s12, 0
      %p46 = por %p44, %p45
      %p47 = scmp.ne.s32.totalorder %s36, %s39
      %p48 = scmp.eq.s32.totalorder %s17, 1
      %p49 = por %p47, %p48
      %p50 = scmp.ne.s32.totalorder %s39, %s40
      %p51 = scmp.eq.s32.totalorder %s17, 0
      %p52 = por %p50, %p51
      %p53 = scmp.ne.s32.totalorder %s39, %s40
      %p54 = scmp.eq.s32.totalorder %s18, 1
      %p55 = por %p53, %p54
      %p57 = scmp.ne.s32.totalorder %s40, %s56
      %p58 = scmp.eq.s32.totalorder %s18, 0
      %p59 = por %p57, %p58
      %s60 = ssub.s32 %s19, %s31
      %p61 = scmp.eq.s32.totalorder %s60, 0
      %s63 = sadd.s32 %s62, 1
      %s64 = scalar_select %p61, %s62, %s63
      %p67 = pneg %p61
      %p68 = scmp.eq.s32.totalorder %s12, 1
      %p69 = por %p67, %p68
      %p70 = scmp.ne.s32.totalorder %s62, %s65
      %p71 = scmp.eq.s32.totalorder %s12, 0
      %p72 = por %p70, %p71
      %p73 = scmp.ne.s32.totalorder %s62, %s65
      %p74 = scmp.eq.s32.totalorder %s17, 1
      %p75 = por %p73, %p74
      %p76 = scmp.ne.s32.totalorder %s65, %s66
      %p77 = scmp.eq.s32.totalorder %s17, 0
      %p78 = por %p76, %p77
      %p79 = scmp.ne.s32.totalorder %s65, %s66
      %p80 = scmp.eq.s32.totalorder %s18, 1
      %p81 = por %p79, %p80
      %p83 = scmp.ne.s32.totalorder %s66, %s82
      %p84 = scmp.eq.s32.totalorder %s18, 0
      %p85 = por %p83, %p84
      %s86 = ssub.s32 %s19, %s31
      %p87 = scmp.eq.s32.totalorder %s86, 0
      %s89 = sadd.s32 %s88, 1
      %s90 = scalar_select %p87, %s88, %s89
      %p93 = pneg %p87
      %p94 = scmp.eq.s32.totalorder %s12, 1
      %p95 = por %p93, %p94
      %p96 = scmp.ne.s32.totalorder %s88, %s91
      %p97 = scmp.eq.s32.totalorder %s12, 0
      %p98 = por %p96, %p97
      %p99 = scmp.ne.s32.totalorder %s88, %s91
      %p100 = scmp.eq.s32.totalorder %s17, 1
      %p101 = por %p99, %p100
      %p102 = scmp.ne.s32.totalorder %s91, %s92
      %p103 = scmp.eq.s32.totalorder %s17, 0
      %p104 = por %p102, %p103
      %p105 = scmp.ne.s32.totalorder %s91, %s92
      %p106 = scmp.eq.s32.totalorder %s18, 1
      %p107 = por %p105, %p106
      %p109 = scmp.ne.s32.totalorder %s92, %s108
      %p110 = scmp.eq.s32.totalorder %s18, 0
      %p111 = por %p109, %p110
      %s112 = ssub.s32 %s19, %s31
      %s113 = ssub.s32 %s20, %s27
      %s114 = sor.u32 %s112, %s113
      %p115 = scmp.eq.s32.totalorder %s114, 0
      %s117 = sadd.s32 %s116, 1
      %s118 = scalar_select %p115, %s116, %s117
      %p121 = pneg %p115
      %p122 = scmp.eq.s32.totalorder %s12, 1
      %p123 = por %p121, %p122
      %p124 = scmp.ne.s32.totalorder %s116, %s119
      %p125 = scmp.eq.s32.totalorder %s12, 0
      %p126 = por %p124, %p125
      %p127 = scmp.ne.s32.totalorder %s116, %s119
      %p128 = scmp.eq.s32.totalorder %s17, 1
      %p129 = por %p127, %p128
      %p130 = scmp.ne.s32.totalorder %s119, %s120
      %p131 = scmp.eq.s32.totalorder %s17, 0
      %p132 = por %p130, %p131
      %p133 = scmp.ne.s32.totalorder %s119, %s120
      %p134 = scmp.eq.s32.totalorder %s18, 1
      %p135 = por %p133, %p134
      %p137 = scmp.ne.s32.totalorder %s120, %s136
      %p138 = scmp.eq.s32.totalorder %s18, 0
      %p139 = por %p137, %p138
      %p140 = scmp.le.s32.totalorder 1, %s12
      %p141 = scmp.lt.s32.totalorder %s12, 3
      %p142 = pnand %p140, %p141
      %p143 = pneg %p142
      // Predicated region
      $region9: #{tpu_custom_call.1} parent=5 // pred_check
        _
      $region10: #{tpu_custom_call.1} parent=5 // pred_check_branch
        %145 = sbr.rel (%p142) target = $region12
      $region11: #{tpu_custom_call.1} parent=5 // pred_region
        %s146 = ssub.s32 %s12, 1
      $region12: #{tpu_custom_call.1} parent=5 // pred_fallthru
        _
      %p147 = scmp.lt.s32.totalorder %s12, 2
      // Predicated region
      $region13: #{tpu_custom_call.1} parent=5 // pred_check
        %p148 = pneg %p147
      $region14: #{tpu_custom_call.1} parent=5 // pred_check_branch
        %150 = sbr.rel (%p148) target = $region16
      $region15: #{tpu_custom_call.1} parent=5 // pred_region
        // Predicated region
        $region17: #{tpu_custom_call.1} parent=15 // pred_check
          %p151 = pneg %p46
        $region18: #{tpu_custom_call.1} parent=15 // pred_check_branch
          %153 = sbr.rel (%p151) target = $region20
        $region19: #{tpu_custom_call.1} parent=15 // pred_region
          %s154 = smul.u32 2, %s19
          %s155 = smul.u32 2, %s20
          %p156 = scmp.lt.s32.totalorder %s154, 3
          %s157 = scalar_select %p156, %s154, 3
          %p158 = scmp.lt.s32.totalorder %s155, 1
          %s159 = scalar_select %p158, %s155, 1
          %s160 = smul.addr %s157, 4
          %s161 = sadd.s32 %s159, %s160
          %s162 = smul.addr %s161, 8
          %s163 = scalar_lea.vmem %s0, %s162
          %s164 = smul.u32 2, %s19
          %s165 = smul.u32 2, %s20
        $region20: #{tpu_custom_call.1} parent=15 // pred_fallthru
          _
        // Predicated region
        $region21: #{tpu_custom_call.1} parent=15 // pred_check
          %p166 = pneg %p72
        $region22: #{tpu_custom_call.1} parent=15 // pred_check_branch
          %168 = sbr.rel (%p166) target = $region24
        $region23: #{tpu_custom_call.1} parent=15 // pred_region
          %s169 = smul.u32 2, %s19
          %p170 = scmp.lt.s32.totalorder %s169, 3
          %s171 = scalar_select %p170, %s169, 3
          %s172 = smul.addr %s171, 4
          %s173 = smul.addr %s172, 8
          %s174 = scalar_lea.vmem %s1, %s173
          %s175 = smul.u32 2, %s19
        $region24: #{tpu_custom_call.1} parent=15 // pred_fallthru
          _
        // Predicated region
        $region25: #{tpu_custom_call.1} parent=15 // pred_check
          %p176 = pneg %p98
        $region26: #{tpu_custom_call.1} parent=15 // pred_check_branch
          %178 = sbr.rel (%p176) target = $region28
        $region27: #{tpu_custom_call.1} parent=15 // pred_region
          %s179 = smul.u32 2, %s19
          %p180 = scmp.lt.s32.totalorder %s179, 3
          %s181 = scalar_select %p180, %s179, 3
          %s182 = smul.addr %s181, 32
          %s183 = smul.addr %s182, 8
          %s184 = scalar_lea.vmem %s2, %s183
          %s185 = smul.u32 2, %s19
        $region28: #{tpu_custom_call.1} parent=15 // pred_fallthru
          _
      $region16: #{tpu_custom_call.1} parent=5 // pred_fallthru
        _
      %p186 = scmp.le.s32.totalorder 1, %s12
      %p187 = scmp.lt.s32.totalorder %s12, 3
      %p188 = pnand %p186, %p187
      %p189 = pneg %p188
      // Predicated region
      $region29: #{tpu_custom_call.1} parent=5 // pred_check
        _
      $region30: #{tpu_custom_call.1} parent=5 // pred_check_branch
        %191 = sbr.rel (%p188) target = $region32
      $region31: #{tpu_custom_call.1} parent=5 // pred_region
        %s192 = ssub.s32 %s12, 1
        %s193 = smul.u32 2, %s21
        %s194 = smul.u32 2, %s22
        %p195 = scmp.lt.s32.totalorder %s193, 3
        %s196 = scalar_select %p195, %s193, 3
        %p197 = scmp.lt.s32.totalorder %s194, 1
        %s198 = scalar_select %p197, %s194, 1
        %s199 = smul.addr %s196, 4
        %s200 = sadd.s32 %s198, %s199
        %s201 = smul.addr %s200, 8
        %s202 = scalar_lea.vmem %s0, %s201
        %p203 = pneg %p52
        %p204 = pneg %p49
        %s205 = smul.u32 2, %s21
        %p206 = scmp.lt.s32.totalorder %s205, 3
        %s207 = scalar_select %p206, %s205, 3
        %s208 = smul.addr %s207, 4
        %s209 = smul.addr %s208, 8
        %s210 = scalar_lea.vmem %s1, %s209
        %p211 = pneg %p78
        %p212 = pneg %p75
        %s213 = smul.u32 2, %s21
        %p214 = scmp.lt.s32.totalorder %s213, 3
        %s215 = scalar_select %p214, %s213, 3
        %s216 = smul.addr %s215, 32
        %s217 = smul.addr %s216, 8
        %s218 = scalar_lea.vmem %s2, %s217
        %p219 = pneg %p104
        %p220 = pneg %p101
        %p221 = pneg %p132
        %p222 = pneg %p129
        %s223 = sand.u32 %s119, 1
        %s224 = scalar_lea.sflag [#allocation3], %s223
        %s225 = sand.u32 %s119, 1
        %s226 = smul.addr %s225, 64
        %s227 = scalar_lea.vmem [#allocation2], %s226
        %s228 = smul.u32 2, %s21
        %s229 = smul.u32 2, %s22
        %p230 = scmp.lt.s32.totalorder %s228, 3
        %s231 = scalar_select %p230, %s228, 3
        %p232 = scmp.lt.s32.totalorder %s229, 1
        %s233 = scalar_select %p232, %s229, 1
        %s234 = smul.addr %s231, 4
        %s235 = sadd.s32 %s233, %s234
        %s236 = smul.addr %s235, 8
        %s237 = scalar_lea.vmem %s0, %s236
        %s238 = smul.u32 2, %s21
        %s239 = smul.u32 2, %s22
        %s240 = smul.u32 2, %s21
        %p241 = scmp.lt.s32.totalorder %s240, 3
        %s242 = scalar_select %p241, %s240, 3
        %s243 = smul.addr %s242, 4
        %s244 = smul.addr %s243, 8
        %s245 = scalar_lea.vmem %s1, %s244
        %s246 = smul.u32 2, %s21
        %s247 = smul.u32 2, %s21
        %p248 = scmp.lt.s32.totalorder %s247, 3
        %s249 = scalar_select %p248, %s247, 3
        %s250 = smul.addr %s249, 32
        %s251 = smul.addr %s250, 8
        %s252 = scalar_lea.vmem %s2, %s251
        %s253 = smul.u32 2, %s21
        %s254 = smul.u32 2, %s21
        %s255 = smul.u32 2, %s22
        %v256 = vld [vmem:[%s237] sm:$0xff]
        %v257 = vld [vmem:[%s237 + $0x8] sm:$0xff]
        %v258 = vld [vmem:[%s237 + $0x10] sm:$0xff]
        %v259 = vld [vmem:[%s237 + $0x18] sm:$0xff]
        %v260 = vld [vmem:[%s237 + $0x20] sm:$0xff]
        %v261 = vld [vmem:[%s237 + $0x28] sm:$0xff]
        %v262 = vld [vmem:[%s237 + $0x30] sm:$0xff]
        %v263 = vld [vmem:[%s237 + $0x38] sm:$0xff]
        %v264 = vld [vmem:[%s245] sm:$0xff]
        %v265 = vld [vmem:[%s245 + $0x8] sm:$0xff]
        %v266 = vld [vmem:[%s245 + $0x10] sm:$0xff]
        %v267 = vld [vmem:[%s245 + $0x18] sm:$0xff]
        %v268 = vld [vmem:[%s245 + $0x20] sm:$0xff]
        %v269 = vld [vmem:[%s245 + $0x28] sm:$0xff]
        %v270 = vld [vmem:[%s245 + $0x30] sm:$0xff]
        %v271 = vld [vmem:[%s245 + $0x38] sm:$0xff]
        %v272 = vld [vmem:[%s252] sm:$0xff]
        %v273 = vld [vmem:[%s252 + $0x8] sm:$0xff]
        %v274 = vld [vmem:[%s252 + $0x10] sm:$0xff]
        %v275 = vld [vmem:[%s252 + $0x18] sm:$0xff]
        %v276 = vld [vmem:[%s252 + $0x20] sm:$0xff]
        %v277 = vld [vmem:[%s252 + $0x28] sm:$0xff]
        %v278 = vld [vmem:[%s252 + $0x30] sm:$0xff]
        %v279 = vld [vmem:[%s252 + $0x38] sm:$0xff]
        %v280 = vld [vmem:[%s252 + $0x40] sm:$0xff]
        %v281 = vld [vmem:[%s252 + $0x48] sm:$0xff]
        %v282 = vld [vmem:[%s252 + $0x50] sm:$0xff]
        %v283 = vld [vmem:[%s252 + $0x58] sm:$0xff]
        %v284 = vld [vmem:[%s252 + $0x60] sm:$0xff]
        %v285 = vld [vmem:[%s252 + $0x68] sm:$0xff]
        %v286 = vld [vmem:[%s252 + $0x70] sm:$0xff]
        %v287 = vld [vmem:[%s252 + $0x78] sm:$0xff]
        %v288 = vld [vmem:[%s252 + $0x80] sm:$0xff]
        %v289 = vld [vmem:[%s252 + $0x88] sm:$0xff]
        %v290 = vld [vmem:[%s252 + $0x90] sm:$0xff]
        %v291 = vld [vmem:[%s252 + $0x98] sm:$0xff]
        %v292 = vld [vmem:[%s252 + $0xa0] sm:$0xff]
        %v293 = vld [vmem:[%s252 + $0xa8] sm:$0xff]
        %v294 = vld [vmem:[%s252 + $0xb0] sm:$0xff]
        %v295 = vld [vmem:[%s252 + $0xb8] sm:$0xff]
        %v296 = vld [vmem:[%s252 + $0xc0] sm:$0xff]
        %v297 = vld [vmem:[%s252 + $0xc8] sm:$0xff]
        %v298 = vld [vmem:[%s252 + $0xd0] sm:$0xff]
        %v299 = vld [vmem:[%s252 + $0xd8] sm:$0xff]
        %v300 = vld [vmem:[%s252 + $0xe0] sm:$0xff]
        %v301 = vld [vmem:[%s252 + $0xe8] sm:$0xff]
        %v302 = vld [vmem:[%s252 + $0xf0] sm:$0xff]
        %v303 = vld [vmem:[%s252 + $0xf8] sm:$0xff]
        %v304 = vld [vmem:[%s252 + $0x100] sm:$0xff]
        %v305 = vld [vmem:[%s252 + $0x108] sm:$0xff]
        %v306 = vld [vmem:[%s252 + $0x110] sm:$0xff]
        %v307 = vld [vmem:[%s252 + $0x118] sm:$0xff]
        %v308 = vld [vmem:[%s252 + $0x120] sm:$0xff]
        %v309 = vld [vmem:[%s252 + $0x128] sm:$0xff]
        %v310 = vld [vmem:[%s252 + $0x130] sm:$0xff]
        %v311 = vld [vmem:[%s252 + $0x138] sm:$0xff]
        %v312 = vld [vmem:[%s252 + $0x140] sm:$0xff]
        %v313 = vld [vmem:[%s252 + $0x148] sm:$0xff]
        %v314 = vld [vmem:[%s252 + $0x150] sm:$0xff]
        %v315 = vld [vmem:[%s252 + $0x158] sm:$0xff]
        %v316 = vld [vmem:[%s252 + $0x160] sm:$0xff]
        %v317 = vld [vmem:[%s252 + $0x168] sm:$0xff]
        %v318 = vld [vmem:[%s252 + $0x170] sm:$0xff]
        %v319 = vld [vmem:[%s252 + $0x178] sm:$0xff]
        %v320 = vld [vmem:[%s252 + $0x180] sm:$0xff]
        %v321 = vld [vmem:[%s252 + $0x188] sm:$0xff]
        %v322 = vld [vmem:[%s252 + $0x190] sm:$0xff]
        %v323 = vld [vmem:[%s252 + $0x198] sm:$0xff]
        %v324 = vld [vmem:[%s252 + $0x1a0] sm:$0xff]
        %v325 = vld [vmem:[%s252 + $0x1a8] sm:$0xff]
        %v326 = vld [vmem:[%s252 + $0x1b0] sm:$0xff]
        %v327 = vld [vmem:[%s252 + $0x1b8] sm:$0xff]
        %v328 = vld [vmem:[%s252 + $0x1c0] sm:$0xff]
        %v329 = vld [vmem:[%s252 + $0x1c8] sm:$0xff]
        %v330 = vld [vmem:[%s252 + $0x1d0] sm:$0xff]
        %v331 = vld [vmem:[%s252 + $0x1d8] sm:$0xff]
        %v332 = vld [vmem:[%s252 + $0x1e0] sm:$0xff]
        %v333 = vld [vmem:[%s252 + $0x1e8] sm:$0xff]
        %v334 = vld [vmem:[%s252 + $0x1f0] sm:$0xff]
        %v335 = vld [vmem:[%s252 + $0x1f8] sm:$0xff]
        %v336 = vmul.f32 %v256, 0.17677669
        %v337 = vmul.f32 %v257, 0.17677669
        %v338 = vmul.f32 %v258, 0.17677669
        %v339 = vmul.f32 %v259, 0.17677669
        %v340 = vmul.f32 %v260, 0.17677669
        %v341 = vmul.f32 %v261, 0.17677669
        %v342 = vmul.f32 %v262, 0.17677669
        %v343 = vmul.f32 %v263, 0.17677669
        %344 = vxpose.xlu0.b32.start [1/16] %v336, 128
        %345 = vxpose.xlu0.b32.cont [2/16] %v338, 128
        %346 = vxpose.xlu0.b32.cont [3/16] 0.0, 128
        %347 = vxpose.xlu0.b32.cont [4/16] 0.0, 128
        %348 = vxpose.xlu0.b32.cont [5/16] 0.0, 128
        %349 = vxpose.xlu0.b32.cont [6/16] 0.0, 128
        %350 = vxpose.xlu0.b32.cont [7/16] 0.0, 128
        %351 = vxpose.xlu0.b32.cont [8/16] 0.0, 128
        %352 = vxpose.xlu0.b32.cont [9/16] 0.0, 128
        %353 = vxpose.xlu0.b32.cont [10/16] 0.0, 128
        %354 = vxpose.xlu0.b32.cont [11/16] 0.0, 128
        %355 = vxpose.xlu0.b32.cont [12/16] 0.0, 128
        %356 = vxpose.xlu0.b32.cont [13/16] 0.0, 128
        %357 = vxpose.xlu0.b32.cont [14/16] 0.0, 128
        %358 = vxpose.xlu0.b32.cont [15/16] 0.0, 128
        %359 = vxpose.xlu0.b32.end [16/16] 0.0, 128
        %v360 = vpop.trf.xlu0
        %v361 = vpop.trf.xlu0
        %v362 = vpop.trf.xlu0
        %v363 = vpop.trf.xlu0
        %v364 = vpop.trf.xlu0
        %v365 = vpop.trf.xlu0
        %v366 = vpop.trf.xlu0
        %v367 = vpop.trf.xlu0
        %v368 = vpop.trf.xlu0
        %v369 = vpop.trf.xlu0
        %v370 = vpop.trf.xlu0
        %v371 = vpop.trf.xlu0
        %v372 = vpop.trf.xlu0
        %v373 = vpop.trf.xlu0
        %v374 = vpop.trf.xlu0
        %v375 = vpop.trf.xlu0
        %376 = vxpose.xlu0.b32.start [1/16] %v337, 128
        %377 = vxpose.xlu0.b32.cont [2/16] %v339, 128
        %378 = vxpose.xlu0.b32.cont [3/16] 0.0, 128
        %379 = vxpose.xlu0.b32.cont [4/16] 0.0, 128
        %380 = vxpose.xlu0.b32.cont [5/16] 0.0, 128
        %381 = vxpose.xlu0.b32.cont [6/16] 0.0, 128
        %382 = vxpose.xlu0.b32.cont [7/16] 0.0, 128
        %383 = vxpose.xlu0.b32.cont [8/16] 0.0, 128
        %384 = vxpose.xlu0.b32.cont [9/16] 0.0, 128
        %385 = vxpose.xlu0.b32.cont [10/16] 0.0, 128
        %386 = vxpose.xlu0.b32.cont [11/16] 0.0, 128
        %387 = vxpose.xlu0.b32.cont [12/16] 0.0, 128
        %388 = vxpose.xlu0.b32.cont [13/16] 0.0, 128
        %389 = vxpose.xlu0.b32.cont [14/16] 0.0, 128
        %390 = vxpose.xlu0.b32.cont [15/16] 0.0, 128
        %391 = vxpose.xlu0.b32.end [16/16] 0.0, 128
        %v392 = vpop.trf.xlu0
        %v393 = vpop.trf.xlu0
        %v394 = vpop.trf.xlu0
        %v395 = vpop.trf.xlu0
        %v396 = vpop.trf.xlu0
        %v397 = vpop.trf.xlu0
        %v398 = vpop.trf.xlu0
        %v399 = vpop.trf.xlu0
        %v400 = vpop.trf.xlu0
        %v401 = vpop.trf.xlu0
        %v402 = vpop.trf.xlu0
        %v403 = vpop.trf.xlu0
        %v404 = vpop.trf.xlu0
        %v405 = vpop.trf.xlu0
        %v406 = vpop.trf.xlu0
        %v407 = vpop.trf.xlu0
        %vm408 = vcmask 130048
        %v410 = vsel %vm408, %v360, 0
        %v413 = vsel %vm408, %v361, 0
        %v416 = vsel %vm408, %v362, 0
        %v419 = vsel %vm408, %v363, 0
        %v422 = vsel %vm408, %v364, 0
        %v425 = vsel %vm408, %v365, 0
        %v428 = vsel %vm408, %v366, 0
        %v431 = vsel %vm408, %v367, 0
        %v434 = vsel %vm408, %v368, 0
        %v437 = vsel %vm408, %v369, 0
        %v440 = vsel %vm408, %v370, 0
        %v443 = vsel %vm408, %v371, 0
        %v446 = vsel %vm408, %v372, 0
        %v449 = vsel %vm408, %v373, 0
        %v452 = vsel %vm408, %v374, 0
        %v455 = vsel %vm408, %v375, 0
        %v458 = vsel %vm408, %v392, 0
        %v461 = vsel %vm408, %v393, 0
        %v464 = vsel %vm408, %v394, 0
        %v467 = vsel %vm408, %v395, 0
        %v470 = vsel %vm408, %v396, 0
        %v473 = vsel %vm408, %v397, 0
        %v476 = vsel %vm408, %v398, 0
        %v479 = vsel %vm408, %v399, 0
        %v482 = vsel %vm408, %v400, 0
        %v485 = vsel %vm408, %v401, 0
        %v488 = vsel %vm408, %v402, 0
        %v491 = vsel %vm408, %v403, 0
        %v494 = vsel %vm408, %v404, 0
        %v497 = vsel %vm408, %v405, 0
        %v500 = vsel %vm408, %v406, 0
        %v503 = vsel %vm408, %v407, 0
        %505 = vmatprep.subr.mxu0 %v265
        %506 = vmatpush1.msra.mxu0 %v264
        %507 = vmatprep.subr.mxu0 %v267
        %508 = vmatpush1.msra.mxu0 %v266
        %509 = vmatprep.subr.mxu0 0.0
        %510 = vmatpush1.msra.mxu0 0.0
        %511 = vmatprep.subr.mxu0 0.0
        %512 = vmatpush1.msra.mxu0 0.0
        %513 = vmatprep.subr.mxu0 0.0
        %514 = vmatpush1.msra.mxu0 0.0
        %515 = vmatprep.subr.mxu0 0.0
        %516 = vmatpush1.msra.mxu0 0.0
        %517 = vmatprep.subr.mxu0 0.0
        %518 = vmatpush1.msra.mxu0 0.0
        %519 = vmatprep.subr.mxu0 0.0
        %520 = vmatpush1.msra.mxu0 0.0
        %521 = vmatprep.subr.mxu0 0.0
        %522 = vmatpush1.msra.mxu0 0.0
        %523 = vmatprep.subr.mxu0 0.0
        %524 = vmatpush1.msra.mxu0 0.0
        %525 = vmatprep.subr.mxu0 0.0
        %526 = vmatpush1.msra.mxu0 0.0
        %527 = vmatprep.subr.mxu0 0.0
        %528 = vmatpush1.msra.mxu0 0.0
        %529 = vmatprep.subr.mxu0 0.0
        %530 = vmatpush1.msra.mxu0 0.0
        %531 = vmatprep.subr.mxu0 0.0
        %532 = vmatpush1.msra.mxu0 0.0
        %533 = vmatprep.subr.mxu0 0.0
        %534 = vmatpush1.msra.mxu0 0.0
        %535 = vmatprep.subr.mxu0 0.0
        %536 = vmatpush1.msra.mxu0 0.0
        %537 = vmatprep.subr.mxu0 0.0
        %538 = vmatpush1.msra.mxu0 0.0
        %539 = vmatprep.subr.mxu0 0.0
        %540 = vmatpush1.msra.mxu0 0.0
        %541 = vmatprep.subr.mxu0 0.0
        %542 = vmatpush1.msra.mxu0 0.0
        %543 = vmatprep.subr.mxu0 0.0
        %544 = vmatpush1.msra.mxu0 0.0
        %545 = vmatprep.subr.mxu0 0.0
        %546 = vmatpush1.msra.mxu0 0.0
        %547 = vmatprep.subr.mxu0 0.0
        %548 = vmatpush1.msra.mxu0 0.0
        %549 = vmatprep.subr.mxu0 0.0
        %550 = vmatpush1.msra.mxu0 0.0
        %551 = vmatprep.subr.mxu0 0.0
        %552 = vmatpush1.msra.mxu0 0.0
        %553 = vmatprep.subr.mxu0 0.0
        %554 = vmatpush1.msra.mxu0 0.0
        %555 = vmatprep.subr.mxu0 0.0
        %556 = vmatpush1.msra.mxu0 0.0
        %557 = vmatprep.subr.mxu0 0.0
        %558 = vmatpush1.msra.mxu0 0.0
        %559 = vmatprep.subr.mxu0 0.0
        %560 = vmatpush1.msra.mxu0 0.0
        %561 = vmatprep.subr.mxu0 0.0
        %562 = vmatpush1.msra.mxu0 0.0
        %563 = vmatprep.subr.mxu0 0.0
        %564 = vmatpush1.msra.mxu0 0.0
        %565 = vmatprep.subr.mxu0 0.0
        %566 = vmatpush1.msra.mxu0 0.0
        %567 = vmatprep.subr.mxu0 0.0
        %568 = vmatpush1.msra.mxu0 0.0
        %569 = vmatprep.mubr.f32.mxu0 0.0
        %570 = vmatmul.mubr.f32.gmra.mrb[0].mxu0 %v410
        %v571 = vpop.f32.mrb[0].mxu0
        %v572 = vadd.f32 0.0, %v571
        %v573 = vpop.f32.mrb[0].mxu0
        %v574 = vadd.f32 0.0, %v573
        %575 = vmatprep.mubr.f32.mxu0 0.0
        %576 = vmatmul.mubr.f32.gmra.mrb[0].mxu0 %v413
        %v577 = vpop.f32.mrb[0].mxu0
        %v578 = vadd.f32 0.0, %v577
        %v579 = vpop.f32.mrb[0].mxu0
        %v580 = vadd.f32 0.0, %v579
        %581 = vmatprep.mubr.f32.mxu0 0.0
        %582 = vmatmul.mubr.f32.gmra.mrb[0].mxu0 %v416
        %v583 = vpop.f32.mrb[0].mxu0
        %v584 = vadd.f32 0.0, %v583
        %v585 = vpop.f32.mrb[0].mxu0
        %v586 = vadd.f32 0.0, %v585
        %587 = vmatprep.mubr.f32.mxu0 0.0
        %588 = vmatmul.mubr.f32.gmra.mrb[0].mxu0 %v419
        %v589 = vpop.f32.mrb[0].mxu0
        %v590 = vadd.f32 0.0, %v589
        %v591 = vpop.f32.mrb[0].mxu0
        %v592 = vadd.f32 0.0, %v591
        %593 = vmatprep.mubr.f32.mxu0 0.0
        %594 = vmatmul.mubr.f32.gmra.mrb[0].mxu0 %v422
        %v595 = vpop.f32.mrb[0].mxu0
        %v596 = vadd.f32 0.0, %v595
        %v597 = vpop.f32.mrb[0].mxu0
        %v598 = vadd.f32 0.0, %v597
        %599 = vmatprep.mubr.f32.mxu0 0.0
        %600 = vmatmul.mubr.f32.gmra.mrb[0].mxu0 %v425
        %v601 = vpop.f32.mrb[0].mxu0
        %v602 = vadd.f32 0.0, %v601
        %v603 = vpop.f32.mrb[0].mxu0
        %v604 = vadd.f32 0.0, %v603
        %605 = vmatprep.mubr.f32.mxu0 0.0
        %606 = vmatmul.mubr.f32.gmra.mrb[0].mxu0 %v428
        %v607 = vpop.f32.mrb[0].mxu0
        %v608 = vadd.f32 0.0, %v607
        %v609 = vpop.f32.mrb[0].mxu0
        %v610 = vadd.f32 0.0, %v609
        %611 = vmatprep.mubr.f32.mxu0 0.0
        %612 = vmatmul.mubr.f32.gmra.mrb[0].mxu0 %v431
        %v613 = vpop.f32.mrb[0].mxu0
        %v614 = vadd.f32 0.0, %v613
        %v615 = vpop.f32.mrb[0].mxu0
        %v616 = vadd.f32 0.0, %v615
        %617 = vmatprep.mubr.f32.mxu0 0.0
        %618 = vmatmul.mubr.f32.gmra.mrb[0].mxu0 %v434
        %v619 = vpop.f32.mrb[0].mxu0
        %v620 = vadd.f32 0.0, %v619
        %v621 = vpop.f32.mrb[0].mxu0
        %v622 = vadd.f32 0.0, %v621
        %623 = vmatprep.mubr.f32.mxu0 0.0
        %624 = vmatmul.mubr.f32.gmra.mrb[0].mxu0 %v437
        %v625 = vpop.f32.mrb[0].mxu0
        %v626 = vadd.f32 0.0, %v625
        %v627 = vpop.f32.mrb[0].mxu0
        %v628 = vadd.f32 0.0, %v627
        %629 = vmatprep.mubr.f32.mxu0 0.0
        %630 = vmatmul.mubr.f32.gmra.mrb[0].mxu0 %v440
        %v631 = vpop.f32.mrb[0].mxu0
        %v632 = vadd.f32 0.0, %v631
        %v633 = vpop.f32.mrb[0].mxu0
        %v634 = vadd.f32 0.0, %v633
        %635 = vmatprep.mubr.f32.mxu0 0.0
        %636 = vmatmul.mubr.f32.gmra.mrb[0].mxu0 %v443
        %v637 = vpop.f32.mrb[0].mxu0
        %v638 = vadd.f32 0.0, %v637
        %v639 = vpop.f32.mrb[0].mxu0
        %v640 = vadd.f32 0.0, %v639
        %641 = vmatprep.mubr.f32.mxu0 0.0
        %642 = vmatmul.mubr.f32.gmra.mrb[0].mxu0 %v446
        %v643 = vpop.f32.mrb[0].mxu0
        %v644 = vadd.f32 0.0, %v643
        %v645 = vpop.f32.mrb[0].mxu0
        %v646 = vadd.f32 0.0, %v645
        %647 = vmatprep.mubr.f32.mxu0 0.0
        %648 = vmatmul.mubr.f32.gmra.mrb[0].mxu0 %v449
        %v649 = vpop.f32.mrb[0].mxu0
        %v650 = vadd.f32 0.0, %v649
        %v651 = vpop.f32.mrb[0].mxu0
        %v652 = vadd.f32 0.0, %v651
        %653 = vmatprep.mubr.f32.mxu0 0.0
        %654 = vmatmul.mubr.f32.gmra.mrb[0].mxu0 %v452
        %v655 = vpop.f32.mrb[0].mxu0
        %v656 = vadd.f32 0.0, %v655
        %v657 = vpop.f32.mrb[0].mxu0
        %v658 = vadd.f32 0.0, %v657
        %659 = vmatprep.mubr.f32.mxu0 0.0
        %660 = vmatmul.mubr.f32.gmra.mrb[0].mxu0 %v455
        %v661 = vpop.f32.mrb[0].mxu0
        %v662 = vadd.f32 0.0, %v661
        %v663 = vpop.f32.mrb[0].mxu0
        %v664 = vadd.f32 0.0, %v663
        %665 = vmatprep.mubr.f32.mxu0 0.0
        %666 = vmatmul.mubr.f32.gmra.mrb[0].mxu0 %v458
        %v667 = vpop.f32.mrb[0].mxu0
        %v668 = vadd.f32 0.0, %v667
        %v669 = vpop.f32.mrb[0].mxu0
        %v670 = vadd.f32 0.0, %v669
        %671 = vmatprep.mubr.f32.mxu0 0.0
        %672 = vmatmul.mubr.f32.gmra.mrb[0].mxu0 %v461
        %v673 = vpop.f32.mrb[0].mxu0
        %v674 = vadd.f32 0.0, %v673
        %v675 = vpop.f32.mrb[0].mxu0
        %v676 = vadd.f32 0.0, %v675
        %677 = vmatprep.mubr.f32.mxu0 0.0
        %678 = vmatmul.mubr.f32.gmra.mrb[0].mxu0 %v464
        %v679 = vpop.f32.mrb[0].mxu0
        %v680 = vadd.f32 0.0, %v679
        %v681 = vpop.f32.mrb[0].mxu0
        %v682 = vadd.f32 0.0, %v681
        %683 = vmatprep.mubr.f32.mxu0 0.0
        %684 = vmatmul.mubr.f32.gmra.mrb[0].mxu0 %v467
        %v685 = vpop.f32.mrb[0].mxu0
        %v686 = vadd.f32 0.0, %v685
        %v687 = vpop.f32.mrb[0].mxu0
        %v688 = vadd.f32 0.0, %v687
        %689 = vmatprep.mubr.f32.mxu0 0.0
        %690 = vmatmul.mubr.f32.gmra.mrb[0].mxu0 %v470
        %v691 = vpop.f32.mrb[0].mxu0
        %v692 = vadd.f32 0.0, %v691
        %v693 = vpop.f32.mrb[0].mxu0
        %v694 = vadd.f32 0.0, %v693
        %695 = vmatprep.mubr.f32.mxu0 0.0
        %696 = vmatmul.mubr.f32.gmra.mrb[0].mxu0 %v473
        %v697 = vpop.f32.mrb[0].mxu0
        %v698 = vadd.f32 0.0, %v697
        %v699 = vpop.f32.mrb[0].mxu0
        %v700 = vadd.f32 0.0, %v699
        %701 = vmatprep.mubr.f32.mxu0 0.0
        %702 = vmatmul.mubr.f32.gmra.mrb[0].mxu0 %v476
        %v703 = vpop.f32.mrb[0].mxu0
        %v704 = vadd.f32 0.0, %v703
        %v705 = vpop.f32.mrb[0].mxu0
        %v706 = vadd.f32 0.0, %v705
        %707 = vmatprep.mubr.f32.mxu0 0.0
        %708 = vmatmul.mubr.f32.gmra.mrb[0].mxu0 %v479
        %v709 = vpop.f32.mrb[0].mxu0
        %v710 = vadd.f32 0.0, %v709
        %v711 = vpop.f32.mrb[0].mxu0
        %v712 = vadd.f32 0.0, %v711
        %713 = vmatprep.mubr.f32.mxu0 0.0
        %714 = vmatmul.mubr.f32.gmra.mrb[0].mxu0 %v482
        %v715 = vpop.f32.mrb[0].mxu0
        %v716 = vadd.f32 0.0, %v715
        %v717 = vpop.f32.mrb[0].mxu0
        %v718 = vadd.f32 0.0, %v717
        %719 = vmatprep.mubr.f32.mxu0 0.0
        %720 = vmatmul.mubr.f32.gmra.mrb[0].mxu0 %v485
        %v721 = vpop.f32.mrb[0].mxu0
        %v722 = vadd.f32 0.0, %v721
        %v723 = vpop.f32.mrb[0].mxu0
        %v724 = vadd.f32 0.0, %v723
        %725 = vmatprep.mubr.f32.mxu0 0.0
        %726 = vmatmul.mubr.f32.gmra.mrb[0].mxu0 %v488
        %v727 = vpop.f32.mrb[0].mxu0
        %v728 = vadd.f32 0.0, %v727
        %v729 = vpop.f32.mrb[0].mxu0
        %v730 = vadd.f32 0.0, %v729
        %731 = vmatprep.mubr.f32.mxu0 0.0
        %732 = vmatmul.mubr.f32.gmra.mrb[0].mxu0 %v491
        %v733 = vpop.f32.mrb[0].mxu0
        %v734 = vadd.f32 0.0, %v733
        %v735 = vpop.f32.mrb[0].mxu0
        %v736 = vadd.f32 0.0, %v735
        %737 = vmatprep.mubr.f32.mxu0 0.0
        %738 = vmatmul.mubr.f32.gmra.mrb[0].mxu0 %v494
        %v739 = vpop.f32.mrb[0].mxu0
        %v740 = vadd.f32 0.0, %v739
        %v741 = vpop.f32.mrb[0].mxu0
        %v742 = vadd.f32 0.0, %v741
        %743 = vmatprep.mubr.f32.mxu0 0.0
        %744 = vmatmul.mubr.f32.gmra.mrb[0].mxu0 %v497
        %v745 = vpop.f32.mrb[0].mxu0
        %v746 = vadd.f32 0.0, %v745
        %v747 = vpop.f32.mrb[0].mxu0
        %v748 = vadd.f32 0.0, %v747
        %749 = vmatprep.mubr.f32.mxu0 0.0
        %750 = vmatmul.mubr.f32.gmra.mrb[0].mxu0 %v500
        %v751 = vpop.f32.mrb[0].mxu0
        %v752 = vadd.f32 0.0, %v751
        %v753 = vpop.f32.mrb[0].mxu0
        %v754 = vadd.f32 0.0, %v753
        %755 = vmatprep.mubr.f32.mxu0 0.0
        %756 = vmatmul.mubr.f32.gmra.mrb[0].mxu0 %v503
        %v757 = vpop.f32.mrb[0].mxu0
        %v758 = vadd.f32 0.0, %v757
        %v759 = vpop.f32.mrb[0].mxu0
        %v760 = vadd.f32 0.0, %v759
        %761 = vdwg.mxu0
        %762 = vxpose.xlu0.b32.start [1/16] %v340, 128
        %763 = vxpose.xlu0.b32.cont [2/16] %v342, 128
        %764 = vxpose.xlu0.b32.cont [3/16] 0.0, 128
        %765 = vxpose.xlu0.b32.cont [4/16] 0.0, 128
        %766 = vxpose.xlu0.b32.cont [5/16] 0.0, 128
        %767 = vxpose.xlu0.b32.cont [6/16] 0.0, 128
        %768 = vxpose.xlu0.b32.cont [7/16] 0.0, 128
        %769 = vxpose.xlu0.b32.cont [8/16] 0.0, 128
        %770 = vxpose.xlu0.b32.cont [9/16] 0.0, 128
        %771 = vxpose.xlu0.b32.cont [10/16] 0.0, 128
        %772 = vxpose.xlu0.b32.cont [11/16] 0.0, 128
        %773 = vxpose.xlu0.b32.cont [12/16] 0.0, 128
        %774 = vxpose.xlu0.b32.cont [13/16] 0.0, 128
        %775 = vxpose.xlu0.b32.cont [14/16] 0.0, 128
        %776 = vxpose.xlu0.b32.cont [15/16] 0.0, 128
        %777 = vxpose.xlu0.b32.end [16/16] 0.0, 128
        %v778 = vpop.trf.xlu0
        %v779 = vpop.trf.xlu0
        %v780 = vpop.trf.xlu0
        %v781 = vpop.trf.xlu0
        %v782 = vpop.trf.xlu0
        %v783 = vpop.trf.xlu0
        %v784 = vpop.trf.xlu0
        %v785 = vpop.trf.xlu0
        %v786 = vpop.trf.xlu0
        %v787 = vpop.trf.xlu0
        %v788 = vpop.trf.xlu0
        %v789 = vpop.trf.xlu0
        %v790 = vpop.trf.xlu0
        %v791 = vpop.trf.xlu0
        %v792 = vpop.trf.xlu0
        %v793 = vpop.trf.xlu0
        %794 = vxpose.xlu0.b32.start [1/16] %v341, 128
        %795 = vxpose.xlu0.b32.cont [2/16] %v343, 128
        %796 = vxpose.xlu0.b32.cont [3/16] 0.0, 128
        %797 = vxpose.xlu0.b32.cont [4/16] 0.0, 128
        %798 = vxpose.xlu0.b32.cont [5/16] 0.0, 128
        %799 = vxpose.xlu0.b32.cont [6/16] 0.0, 128
        %800 = vxpose.xlu0.b32.cont [7/16] 0.0, 128
        %801 = vxpose.xlu0.b32.cont [8/16] 0.0, 128
        %802 = vxpose.xlu0.b32.cont [9/16] 0.0, 128
        %803 = vxpose.xlu0.b32.cont [10/16] 0.0, 128
        %804 = vxpose.xlu0.b32.cont [11/16] 0.0, 128
        %805 = vxpose.xlu0.b32.cont [12/16] 0.0, 128
        %806 = vxpose.xlu0.b32.cont [13/16] 0.0, 128
        %807 = vxpose.xlu0.b32.cont [14/16] 0.0, 128
        %808 = vxpose.xlu0.b32.cont [15/16] 0.0, 128
        %809 = vxpose.xlu0.b32.end [16/16] 0.0, 128
        %v810 = vpop.trf.xlu0
        %v811 = vpop.trf.xlu0
        %v812 = vpop.trf.xlu0
        %v813 = vpop.trf.xlu0
        %v814 = vpop.trf.xlu0
        %v815 = vpop.trf.xlu0
        %v816 = vpop.trf.xlu0
        %v817 = vpop.trf.xlu0
        %v818 = vpop.trf.xlu0
        %v819 = vpop.trf.xlu0
        %v820 = vpop.trf.xlu0
        %v821 = vpop.trf.xlu0
        %v822 = vpop.trf.xlu0
        %v823 = vpop.trf.xlu0
        %v824 = vpop.trf.xlu0
        %v825 = vpop.trf.xlu0
        %v827 = vsel %vm408, %v778, 0
        %v830 = vsel %vm408, %v779, 0
        %v833 = vsel %vm408, %v780, 0
        %v836 = vsel %vm408, %v781, 0
        %v839 = vsel %vm408, %v782, 0
        %v842 = vsel %vm408, %v783, 0
        %v845 = vsel %vm408, %v784, 0
        %v848 = vsel %vm408, %v785, 0
        %v851 = vsel %vm408, %v786, 0
        %v854 = vsel %vm408, %v787, 0
        %v857 = vsel %vm408, %v788, 0
        %v860 = vsel %vm408, %v789, 0
        %v863 = vsel %vm408, %v790, 0
        %v866 = vsel %vm408, %v791, 0
        %v869 = vsel %vm408, %v792, 0
        %v872 = vsel %vm408, %v793, 0
        %v875 = vsel %vm408, %v810, 0
        %v878 = vsel %vm408, %v811, 0
        %v881 = vsel %vm408, %v812, 0
        %v884 = vsel %vm408, %v813, 0
        %v887 = vsel %vm408, %v814, 0
        %v890 = vsel %vm408, %v815, 0
        %v893 = vsel %vm408, %v816, 0
        %v896 = vsel %vm408, %v817, 0
        %v899 = vsel %vm408, %v818, 0
        %v902 = vsel %vm408, %v819, 0
        %v905 = vsel %vm408, %v820, 0
        %v908 = vsel %vm408, %v821, 0
        %v911 = vsel %vm408, %v822, 0
        %v914 = vsel %vm408, %v823, 0
        %v917 = vsel %vm408, %v824, 0
        %v920 = vsel %vm408, %v825, 0
        %922 = vmatprep.subr.mxu0 %v269
        %923 = vmatpush1.msra.mxu0 %v268
        %924 = vmatprep.subr.mxu0 %v271
        %925 = vmatpush1.msra.mxu0 %v270
        %926 = vmatprep.subr.mxu0 0.0
        %927 = vmatpush1.msra.mxu0 0.0
        %928 = vmatprep.subr.mxu0 0.0
        %929 = vmatpush1.msra.mxu0 0.0
        %930 = vmatprep.subr.mxu0 0.0
        %931 = vmatpush1.msra.mxu0 0.0
        %932 = vmatprep.subr.mxu0 0.0
        %933 = vmatpush1.msra.mxu0 0.0
        %934 = vmatprep.subr.mxu0 0.0
        %935 = vmatpush1.msra.mxu0 0.0
        %936 = vmatprep.subr.mxu0 0.0
        %937 = vmatpush1.msra.mxu0 0.0
        %938 = vmatprep.subr.mxu0 0.0
        %939 = vmatpush1.msra.mxu0 0.0
        %940 = vmatprep.subr.mxu0 0.0
        %941 = vmatpush1.msra.mxu0 0.0
        %942 = vmatprep.subr.mxu0 0.0
        %943 = vmatpush1.msra.mxu0 0.0
        %944 = vmatprep.subr.mxu0 0.0
        %945 = vmatpush1.msra.mxu0 0.0
        %946 = vmatprep.subr.mxu0 0.0
        %947 = vmatpush1.msra.mxu0 0.0
        %948 = vmatprep.subr.mxu0 0.0
        %949 = vmatpush1.msra.mxu0 0.0
        %950 = vmatprep.subr.mxu0 0.0
        %951 = vmatpush1.msra.mxu0 0.0
        %952 = vmatprep.subr.mxu0 0.0
        %953 = vmatpush1.msra.mxu0 0.0
        %954 = vmatprep.subr.mxu0 0.0
        %955 = vmatpush1.msra.mxu0 0.0
        %956 = vmatprep.subr.mxu0 0.0
        %957 = vmatpush1.msra.mxu0 0.0
        %958 = vmatprep.subr.mxu0 0.0
        %959 = vmatpush1.msra.mxu0 0.0
        %960 = vmatprep.subr.mxu0 0.0
        %961 = vmatpush1.msra.mxu0 0.0
        %962 = vmatprep.subr.mxu0 0.0
        %963 = vmatpush1.msra.mxu0 0.0
        %964 = vmatprep.subr.mxu0 0.0
        %965 = vmatpush1.msra.mxu0 0.0
        %966 = vmatprep.subr.mxu0 0.0
        %967 = vmatpush1.msra.mxu0 0.0
        %968 = vmatprep.subr.mxu0 0.0
        %969 = vmatpush1.msra.mxu0 0.0
        %970 = vmatprep.subr.mxu0 0.0
        %971 = vmatpush1.msra.mxu0 0.0
        %972 = vmatprep.subr.mxu0 0.0
        %973 = vmatpush1.msra.mxu0 0.0
        %974 = vmatprep.subr.mxu0 0.0
        %975 = vmatpush1.msra.mxu0 0.0
        %976 = vmatprep.subr.mxu0 0.0
        %977 = vmatpush1.msra.mxu0 0.0
        %978 = vmatprep.subr.mxu0 0.0
        %979 = vmatpush1.msra.mxu0 0.0
        %980 = vmatprep.subr.mxu0 0.0
        %981 = vmatpush1.msra.mxu0 0.0
        %982 = vmatprep.subr.mxu0 0.0
        %983 = vmatpush1.msra.mxu0 0.0
        %984 = vmatprep.subr.mxu0 0.0
        %985 = vmatpush1.msra.mxu0 0.0
        %986 = vmatprep.mubr.f32.mxu0 0.0
        %987 = vmatmul.mubr.f32.gmra.mrb[0].mxu0 %v827
        %v988 = vpop.f32.mrb[0].mxu0
        %v989 = vadd.f32 0.0, %v988
        %v990 = vpop.f32.mrb[0].mxu0
        %v991 = vadd.f32 0.0, %v990
        %992 = vmatprep.mubr.f32.mxu0 0.0
        %993 = vmatmul.mubr.f32.gmra.mrb[0].mxu0 %v830
        %v994 = vpop.f32.mrb[0].mxu0
        %v995 = vadd.f32 0.0, %v994
        %v996 = vpop.f32.mrb[0].mxu0
        %v997 = vadd.f32 0.0, %v996
        %998 = vmatprep.mubr.f32.mxu0 0.0
        %999 = vmatmul.mubr.f32.gmra.mrb[0].mxu0 %v833
        %v1000 = vpop.f32.mrb[0].mxu0
        %v1001 = vadd.f32 0.0, %v1000
        %v1002 = vpop.f32.mrb[0].mxu0
        %v1003 = vadd.f32 0.0, %v1002
        %1004 = vmatprep.mubr.f32.mxu0 0.0
        %1005 = vmatmul.mubr.f32.gmra.mrb[0].mxu0 %v836
        %v1006 = vpop.f32.mrb[0].mxu0
        %v1007 = vadd.f32 0.0, %v1006
        %v1008 = vpop.f32.mrb[0].mxu0
        %v1009 = vadd.f32 0.0, %v1008
        %1010 = vmatprep.mubr.f32.mxu0 0.0
        %1011 = vmatmul.mubr.f32.gmra.mrb[0].mxu0 %v839
        %v1012 = vpop.f32.mrb[0].mxu0
        %v1013 = vadd.f32 0.0, %v1012
        %v1014 = vpop.f32.mrb[0].mxu0
        %v1015 = vadd.f32 0.0, %v1014
        %1016 = vmatprep.mubr.f32.mxu0 0.0
        %1017 = vmatmul.mubr.f32.gmra.mrb[0].mxu0 %v842
        %v1018 = vpop.f32.mrb[0].mxu0
        %v1019 = vadd.f32 0.0, %v1018
        %v1020 = vpop.f32.mrb[0].mxu0
        %v1021 = vadd.f32 0.0, %v1020
        %1022 = vmatprep.mubr.f32.mxu0 0.0
        %1023 = vmatmul.mubr.f32.gmra.mrb[0].mxu0 %v845
        %v1024 = vpop.f32.mrb[0].mxu0
        %v1025 = vadd.f32 0.0, %v1024
        %v1026 = vpop.f32.mrb[0].mxu0
        %v1027 = vadd.f32 0.0, %v1026
        %1028 = vmatprep.mubr.f32.mxu0 0.0
        %1029 = vmatmul.mubr.f32.gmra.mrb[0].mxu0 %v848
        %v1030 = vpop.f32.mrb[0].mxu0
        %v1031 = vadd.f32 0.0, %v1030
        %v1032 = vpop.f32.mrb[0].mxu0
        %v1033 = vadd.f32 0.0, %v1032
        %1034 = vmatprep.mubr.f32.mxu0 0.0
        %1035 = vmatmul.mubr.f32.gmra.mrb[0].mxu0 %v851
        %v1036 = vpop.f32.mrb[0].mxu0
        %v1037 = vadd.f32 0.0, %v1036
        %v1038 = vpop.f32.mrb[0].mxu0
        %v1039 = vadd.f32 0.0, %v1038
        %1040 = vmatprep.mubr.f32.mxu0 0.0
        %1041 = vmatmul.mubr.f32.gmra.mrb[0].mxu0 %v854
        %v1042 = vpop.f32.mrb[0].mxu0
        %v1043 = vadd.f32 0.0, %v1042
        %v1044 = vpop.f32.mrb[0].mxu0
        %v1045 = vadd.f32 0.0, %v1044
        %1046 = vmatprep.mubr.f32.mxu0 0.0
        %1047 = vmatmul.mubr.f32.gmra.mrb[0].mxu0 %v857
        %v1048 = vpop.f32.mrb[0].mxu0
        %v1049 = vadd.f32 0.0, %v1048
        %v1050 = vpop.f32.mrb[0].mxu0
        %v1051 = vadd.f32 0.0, %v1050
        %1052 = vmatprep.mubr.f32.mxu0 0.0
        %1053 = vmatmul.mubr.f32.gmra.mrb[0].mxu0 %v860
        %v1054 = vpop.f32.mrb[0].mxu0
        %v1055 = vadd.f32 0.0, %v1054
        %v1056 = vpop.f32.mrb[0].mxu0
        %v1057 = vadd.f32 0.0, %v1056
        %1058 = vmatprep.mubr.f32.mxu0 0.0
        %1059 = vmatmul.mubr.f32.gmra.mrb[0].mxu0 %v863
        %v1060 = vpop.f32.mrb[0].mxu0
        %v1061 = vadd.f32 0.0, %v1060
        %v1062 = vpop.f32.mrb[0].mxu0
        %v1063 = vadd.f32 0.0, %v1062
        %1064 = vmatprep.mubr.f32.mxu0 0.0
        %1065 = vmatmul.mubr.f32.gmra.mrb[0].mxu0 %v866
        %v1066 = vpop.f32.mrb[0].mxu0
        %v1067 = vadd.f32 0.0, %v1066
        %v1068 = vpop.f32.mrb[0].mxu0
        %v1069 = vadd.f32 0.0, %v1068
        %1070 = vmatprep.mubr.f32.mxu0 0.0
        %1071 = vmatmul.mubr.f32.gmra.mrb[0].mxu0 %v869
        %v1072 = vpop.f32.mrb[0].mxu0
        %v1073 = vadd.f32 0.0, %v1072
        %v1074 = vpop.f32.mrb[0].mxu0
        %v1075 = vadd.f32 0.0, %v1074
        %1076 = vmatprep.mubr.f32.mxu0 0.0
        %1077 = vmatmul.mubr.f32.gmra.mrb[0].mxu0 %v872
        %v1078 = vpop.f32.mrb[0].mxu0
        %v1079 = vadd.f32 0.0, %v1078
        %v1080 = vpop.f32.mrb[0].mxu0
        %v1081 = vadd.f32 0.0, %v1080
        %1082 = vmatprep.mubr.f32.mxu0 0.0
        %1083 = vmatmul.mubr.f32.gmra.mrb[0].mxu0 %v875
        %v1084 = vpop.f32.mrb[0].mxu0
        %v1085 = vadd.f32 0.0, %v1084
        %v1086 = vpop.f32.mrb[0].mxu0
        %v1087 = vadd.f32 0.0, %v1086
        %1088 = vmatprep.mubr.f32.mxu0 0.0
        %1089 = vmatmul.mubr.f32.gmra.mrb[0].mxu0 %v878
        %v1090 = vpop.f32.mrb[0].mxu0
        %v1091 = vadd.f32 0.0, %v1090
        %v1092 = vpop.f32.mrb[0].mxu0
        %v1093 = vadd.f32 0.0, %v1092
        %1094 = vmatprep.mubr.f32.mxu0 0.0
        %1095 = vmatmul.mubr.f32.gmra.mrb[0].mxu0 %v881
        %v1096 = vpop.f32.mrb[0].mxu0
        %v1097 = vadd.f32 0.0, %v1096
        %v1098 = vpop.f32.mrb[0].mxu0
        %v1099 = vadd.f32 0.0, %v1098
        %1100 = vmatprep.mubr.f32.mxu0 0.0
        %1101 = vmatmul.mubr.f32.gmra.mrb[0].mxu0 %v884
        %v1102 = vpop.f32.mrb[0].mxu0
        %v1103 = vadd.f32 0.0, %v1102
        %v1104 = vpop.f32.mrb[0].mxu0
        %v1105 = vadd.f32 0.0, %v1104
        %1106 = vmatprep.mubr.f32.mxu0 0.0
        %1107 = vmatmul.mubr.f32.gmra.mrb[0].mxu0 %v887
        %v1108 = vpop.f32.mrb[0].mxu0
        %v1109 = vadd.f32 0.0, %v1108
        %v1110 = vpop.f32.mrb[0].mxu0
        %v1111 = vadd.f32 0.0, %v1110
        %1112 = vmatprep.mubr.f32.mxu0 0.0
        %1113 = vmatmul.mubr.f32.gmra.mrb[0].mxu0 %v890
        %v1114 = vpop.f32.mrb[0].mxu0
        %v1115 = vadd.f32 0.0, %v1114
        %v1116 = vpop.f32.mrb[0].mxu0
        %v1117 = vadd.f32 0.0, %v1116
        %1118 = vmatprep.mubr.f32.mxu0 0.0
        %1119 = vmatmul.mubr.f32.gmra.mrb[0].mxu0 %v893
        %v1120 = vpop.f32.mrb[0].mxu0
        %v1121 = vadd.f32 0.0, %v1120
        %v1122 = vpop.f32.mrb[0].mxu0
        %v1123 = vadd.f32 0.0, %v1122
        %1124 = vmatprep.mubr.f32.mxu0 0.0
        %1125 = vmatmul.mubr.f32.gmra.mrb[0].mxu0 %v896
        %v1126 = vpop.f32.mrb[0].mxu0
        %v1127 = vadd.f32 0.0, %v1126
        %v1128 = vpop.f32.mrb[0].mxu0
        %v1129 = vadd.f32 0.0, %v1128
        %1130 = vmatprep.mubr.f32.mxu0 0.0
        %1131 = vmatmul.mubr.f32.gmra.mrb[0].mxu0 %v899
        %v1132 = vpop.f32.mrb[0].mxu0
        %v1133 = vadd.f32 0.0, %v1132
        %v1134 = vpop.f32.mrb[0].mxu0
        %v1135 = vadd.f32 0.0, %v1134
        %1136 = vmatprep.mubr.f32.mxu0 0.0
        %1137 = vmatmul.mubr.f32.gmra.mrb[0].mxu0 %v902
        %v1138 = vpop.f32.mrb[0].mxu0
        %v1139 = vadd.f32 0.0, %v1138
        %v1140 = vpop.f32.mrb[0].mxu0
        %v1141 = vadd.f32 0.0, %v1140
        %1142 = vmatprep.mubr.f32.mxu0 0.0
        %1143 = vmatmul.mubr.f32.gmra.mrb[0].mxu0 %v905
        %v1144 = vpop.f32.mrb[0].mxu0
        %v1145 = vadd.f32 0.0, %v1144
        %v1146 = vpop.f32.mrb[0].mxu0
        %v1147 = vadd.f32 0.0, %v1146
        %1148 = vmatprep.mubr.f32.mxu0 0.0
        %1149 = vmatmul.mubr.f32.gmra.mrb[0].mxu0 %v908
        %v1150 = vpop.f32.mrb[0].mxu0
        %v1151 = vadd.f32 0.0, %v1150
        %v1152 = vpop.f32.mrb[0].mxu0
        %v1153 = vadd.f32 0.0, %v1152
        %1154 = vmatprep.mubr.f32.mxu0 0.0
        %1155 = vmatmul.mubr.f32.gmra.mrb[0].mxu0 %v911
        %v1156 = vpop.f32.mrb[0].mxu0
        %v1157 = vadd.f32 0.0, %v1156
        %v1158 = vpop.f32.mrb[0].mxu0
        %v1159 = vadd.f32 0.0, %v1158
        %1160 = vmatprep.mubr.f32.mxu0 0.0
        %1161 = vmatmul.mubr.f32.gmra.mrb[0].mxu0 %v914
        %v1162 = vpop.f32.mrb[0].mxu0
        %v1163 = vadd.f32 0.0, %v1162
        %v1164 = vpop.f32.mrb[0].mxu0
        %v1165 = vadd.f32 0.0, %v1164
        %1166 = vmatprep.mubr.f32.mxu0 0.0
        %1167 = vmatmul.mubr.f32.gmra.mrb[0].mxu0 %v917
        %v1168 = vpop.f32.mrb[0].mxu0
        %v1169 = vadd.f32 0.0, %v1168
        %v1170 = vpop.f32.mrb[0].mxu0
        %v1171 = vadd.f32 0.0, %v1170
        %1172 = vmatprep.mubr.f32.mxu0 0.0
        %1173 = vmatmul.mubr.f32.gmra.mrb[0].mxu0 %v920
        %v1174 = vpop.f32.mrb[0].mxu0
        %v1175 = vadd.f32 0.0, %v1174
        %v1176 = vpop.f32.mrb[0].mxu0
        %v1177 = vadd.f32 0.0, %v1176
        %1178 = vdwg.mxu0
        %v1179 = vmax.f32 %v572, %v574
        %1180 = vmax.xlane.f32.xlu0 %v1179
        %v1181 = vpop.xlane.xlu0 %1180
        %v1182 = vmax.f32 %v578, %v580
        %1183 = vmax.xlane.f32.xlu0 %v1182
        %v1184 = vpop.xlane.xlu0 %1183
        %v1185 = vmax.f32 %v584, %v586
        %1186 = vmax.xlane.f32.xlu0 %v1185
        %v1187 = vpop.xlane.xlu0 %1186
        %v1188 = vmax.f32 %v590, %v592
        %1189 = vmax.xlane.f32.xlu0 %v1188
        %v1190 = vpop.xlane.xlu0 %1189
        %v1191 = vmax.f32 %v596, %v598
        %1192 = vmax.xlane.f32.xlu0 %v1191
        %v1193 = vpop.xlane.xlu0 %1192
        %v1194 = vmax.f32 %v602, %v604
        %1195 = vmax.xlane.f32.xlu0 %v1194
        %v1196 = vpop.xlane.xlu0 %1195
        %v1197 = vmax.f32 %v608, %v610
        %1198 = vmax.xlane.f32.xlu0 %v1197
        %v1199 = vpop.xlane.xlu0 %1198
        %v1200 = vmax.f32 %v614, %v616
        %1201 = vmax.xlane.f32.xlu0 %v1200
        %v1202 = vpop.xlane.xlu0 %1201
        %v1203 = vmax.f32 %v620, %v622
        %1204 = vmax.xlane.f32.xlu0 %v1203
        %v1205 = vpop.xlane.xlu0 %1204
        %v1206 = vmax.f32 %v626, %v628
        %1207 = vmax.xlane.f32.xlu0 %v1206
        %v1208 = vpop.xlane.xlu0 %1207
        %v1209 = vmax.f32 %v632, %v634
        %1210 = vmax.xlane.f32.xlu0 %v1209
        %v1211 = vpop.xlane.xlu0 %1210
        %v1212 = vmax.f32 %v638, %v640
        %1213 = vmax.xlane.f32.xlu0 %v1212
        %v1214 = vpop.xlane.xlu0 %1213
        %v1215 = vmax.f32 %v644, %v646
        %1216 = vmax.xlane.f32.xlu0 %v1215
        %v1217 = vpop.xlane.xlu0 %1216
        %v1218 = vmax.f32 %v650, %v652
        %1219 = vmax.xlane.f32.xlu0 %v1218
        %v1220 = vpop.xlane.xlu0 %1219
        %v1221 = vmax.f32 %v656, %v658
        %1222 = vmax.xlane.f32.xlu0 %v1221
        %v1223 = vpop.xlane.xlu0 %1222
        %v1224 = vmax.f32 %v662, %v664
        %1225 = vmax.xlane.f32.xlu0 %v1224
        %v1226 = vpop.xlane.xlu0 %1225
        %v1227 = vmax.f32 %v668, %v670
        %1228 = vmax.xlane.f32.xlu0 %v1227
        %v1229 = vpop.xlane.xlu0 %1228
        %v1230 = vmax.f32 %v674, %v676
        %1231 = vmax.xlane.f32.xlu0 %v1230
        %v1232 = vpop.xlane.xlu0 %1231
        %v1233 = vmax.f32 %v680, %v682
        %1234 = vmax.xlane.f32.xlu0 %v1233
        %v1235 = vpop.xlane.xlu0 %1234
        %v1236 = vmax.f32 %v686, %v688
        %1237 = vmax.xlane.f32.xlu0 %v1236
        %v1238 = vpop.xlane.xlu0 %1237
        %v1239 = vmax.f32 %v692, %v694
        %1240 = vmax.xlane.f32.xlu0 %v1239
        %v1241 = vpop.xlane.xlu0 %1240
        %v1242 = vmax.f32 %v698, %v700
        %1243 = vmax.xlane.f32.xlu0 %v1242
        %v1244 = vpop.xlane.xlu0 %1243
        %v1245 = vmax.f32 %v704, %v706
        %1246 = vmax.xlane.f32.xlu0 %v1245
        %v1247 = vpop.xlane.xlu0 %1246
        %v1248 = vmax.f32 %v710, %v712
        %1249 = vmax.xlane.f32.xlu0 %v1248
        %v1250 = vpop.xlane.xlu0 %1249
        %v1251 = vmax.f32 %v716, %v718
        %1252 = vmax.xlane.f32.xlu0 %v1251
        %v1253 = vpop.xlane.xlu0 %1252
        %v1254 = vmax.f32 %v722, %v724
        %1255 = vmax.xlane.f32.xlu0 %v1254
        %v1256 = vpop.xlane.xlu0 %1255
        %v1257 = vmax.f32 %v728, %v730
        %1258 = vmax.xlane.f32.xlu0 %v1257
        %v1259 = vpop.xlane.xlu0 %1258
        %v1260 = vmax.f32 %v734, %v736
        %1261 = vmax.xlane.f32.xlu0 %v1260
        %v1262 = vpop.xlane.xlu0 %1261
        %v1263 = vmax.f32 %v740, %v742
        %1264 = vmax.xlane.f32.xlu0 %v1263
        %v1265 = vpop.xlane.xlu0 %1264
        %v1266 = vmax.f32 %v746, %v748
        %1267 = vmax.xlane.f32.xlu0 %v1266
        %v1268 = vpop.xlane.xlu0 %1267
        %v1269 = vmax.f32 %v752, %v754
        %1270 = vmax.xlane.f32.xlu0 %v1269
        %v1271 = vpop.xlane.xlu0 %1270
        %v1272 = vmax.f32 %v758, %v760
        %1273 = vmax.xlane.f32.xlu0 %v1272
        %v1274 = vpop.xlane.xlu0 %1273
        %v1275 = vmax.f32 %v989, %v991
        %1276 = vmax.xlane.f32.xlu0 %v1275
        %v1277 = vpop.xlane.xlu0 %1276
        %v1278 = vmax.f32 %v995, %v997
        %1279 = vmax.xlane.f32.xlu0 %v1278
        %v1280 = vpop.xlane.xlu0 %1279
        %v1281 = vmax.f32 %v1001, %v1003
        %1282 = vmax.xlane.f32.xlu0 %v1281
        %v1283 = vpop.xlane.xlu0 %1282
        %v1284 = vmax.f32 %v1007, %v1009
        %1285 = vmax.xlane.f32.xlu0 %v1284
        %v1286 = vpop.xlane.xlu0 %1285
        %v1287 = vmax.f32 %v1013, %v1015
        %1288 = vmax.xlane.f32.xlu0 %v1287
        %v1289 = vpop.xlane.xlu0 %1288
        %v1290 = vmax.f32 %v1019, %v1021
        %1291 = vmax.xlane.f32.xlu0 %v1290
        %v1292 = vpop.xlane.xlu0 %1291
        %v1293 = vmax.f32 %v1025, %v1027
        %1294 = vmax.xlane.f32.xlu0 %v1293
        %v1295 = vpop.xlane.xlu0 %1294
        %v1296 = vmax.f32 %v1031, %v1033
        %1297 = vmax.xlane.f32.xlu0 %v1296
        %v1298 = vpop.xlane.xlu0 %1297
        %v1299 = vmax.f32 %v1037, %v1039
        %1300 = vmax.xlane.f32.xlu0 %v1299
        %v1301 = vpop.xlane.xlu0 %1300
        %v1302 = vmax.f32 %v1043, %v1045
        %1303 = vmax.xlane.f32.xlu0 %v1302
        %v1304 = vpop.xlane.xlu0 %1303
        %v1305 = vmax.f32 %v1049, %v1051
        %1306 = vmax.xlane.f32.xlu0 %v1305
        %v1307 = vpop.xlane.xlu0 %1306
        %v1308 = vmax.f32 %v1055, %v1057
        %1309 = vmax.xlane.f32.xlu0 %v1308
        %v1310 = vpop.xlane.xlu0 %1309
        %v1311 = vmax.f32 %v1061, %v1063
        %1312 = vmax.xlane.f32.xlu0 %v1311
        %v1313 = vpop.xlane.xlu0 %1312
        %v1314 = vmax.f32 %v1067, %v1069
        %1315 = vmax.xlane.f32.xlu0 %v1314
        %v1316 = vpop.xlane.xlu0 %1315
        %v1317 = vmax.f32 %v1073, %v1075
        %1318 = vmax.xlane.f32.xlu0 %v1317
        %v1319 = vpop.xlane.xlu0 %1318
        %v1320 = vmax.f32 %v1079, %v1081
        %1321 = vmax.xlane.f32.xlu0 %v1320
        %v1322 = vpop.xlane.xlu0 %1321
        %v1323 = vmax.f32 %v1085, %v1087
        %1324 = vmax.xlane.f32.xlu0 %v1323
        %v1325 = vpop.xlane.xlu0 %1324
        %v1326 = vmax.f32 %v1091, %v1093
        %1327 = vmax.xlane.f32.xlu0 %v1326
        %v1328 = vpop.xlane.xlu0 %1327
        %v1329 = vmax.f32 %v1097, %v1099
        %1330 = vmax.xlane.f32.xlu0 %v1329
        %v1331 = vpop.xlane.xlu0 %1330
        %v1332 = vmax.f32 %v1103, %v1105
        %1333 = vmax.xlane.f32.xlu0 %v1332
        %v1334 = vpop.xlane.xlu0 %1333
        %v1335 = vmax.f32 %v1109, %v1111
        %1336 = vmax.xlane.f32.xlu0 %v1335
        %v1337 = vpop.xlane.xlu0 %1336
        %v1338 = vmax.f32 %v1115, %v1117
        %1339 = vmax.xlane.f32.xlu0 %v1338
        %v1340 = vpop.xlane.xlu0 %1339
        %v1341 = vmax.f32 %v1121, %v1123
        %1342 = vmax.xlane.f32.xlu0 %v1341
        %v1343 = vpop.xlane.xlu0 %1342
        %v1344 = vmax.f32 %v1127, %v1129
        %1345 = vmax.xlane.f32.xlu0 %v1344
        %v1346 = vpop.xlane.xlu0 %1345
        %v1347 = vmax.f32 %v1133, %v1135
        %1348 = vmax.xlane.f32.xlu0 %v1347
        %v1349 = vpop.xlane.xlu0 %1348
        %v1350 = vmax.f32 %v1139, %v1141
        %1351 = vmax.xlane.f32.xlu0 %v1350
        %v1352 = vpop.xlane.xlu0 %1351
        %v1353 = vmax.f32 %v1145, %v1147
        %1354 = vmax.xlane.f32.xlu0 %v1353
        %v1355 = vpop.xlane.xlu0 %1354
        %v1356 = vmax.f32 %v1151, %v1153
        %1357 = vmax.xlane.f32.xlu0 %v1356
        %v1358 = vpop.xlane.xlu0 %1357
        %v1359 = vmax.f32 %v1157, %v1159
        %1360 = vmax.xlane.f32.xlu0 %v1359
        %v1361 = vpop.xlane.xlu0 %1360
        %v1362 = vmax.f32 %v1163, %v1165
        %1363 = vmax.xlane.f32.xlu0 %v1362
        %v1364 = vpop.xlane.xlu0 %1363
        %v1365 = vmax.f32 %v1169, %v1171
        %1366 = vmax.xlane.f32.xlu0 %v1365
        %v1367 = vpop.xlane.xlu0 %1366
        %v1368 = vmax.f32 %v1175, %v1177
        %1369 = vmax.xlane.f32.xlu0 %v1368
        %v1370 = vpop.xlane.xlu0 %1369
        %v1371 = vsub.f32 %v572, %v1181
        %v1372 = vsub.f32 %v574, %v1181
        %v1373 = vsub.f32 %v578, %v1184
        %v1374 = vsub.f32 %v580, %v1184
        %v1375 = vsub.f32 %v584, %v1187
        %v1376 = vsub.f32 %v586, %v1187
        %v1377 = vsub.f32 %v590, %v1190
        %v1378 = vsub.f32 %v592, %v1190
        %v1379 = vsub.f32 %v596, %v1193
        %v1380 = vsub.f32 %v598, %v1193
        %v1381 = vsub.f32 %v602, %v1196
        %v1382 = vsub.f32 %v604, %v1196
        %v1383 = vsub.f32 %v608, %v1199
        %v1384 = vsub.f32 %v610, %v1199
        %v1385 = vsub.f32 %v614, %v1202
        %v1386 = vsub.f32 %v616, %v1202
        %v1387 = vsub.f32 %v620, %v1205
        %v1388 = vsub.f32 %v622, %v1205
        %v1389 = vsub.f32 %v626, %v1208
        %v1390 = vsub.f32 %v628, %v1208
        %v1391 = vsub.f32 %v632, %v1211
        %v1392 = vsub.f32 %v634, %v1211
        %v1393 = vsub.f32 %v638, %v1214
        %v1394 = vsub.f32 %v640, %v1214
        %v1395 = vsub.f32 %v644, %v1217
        %v1396 = vsub.f32 %v646, %v1217
        %v1397 = vsub.f32 %v650, %v1220
        %v1398 = vsub.f32 %v652, %v1220
        %v1399 = vsub.f32 %v656, %v1223
        %v1400 = vsub.f32 %v658, %v1223
        %v1401 = vsub.f32 %v662, %v1226
        %v1402 = vsub.f32 %v664, %v1226
        %v1403 = vsub.f32 %v668, %v1229
        %v1404 = vsub.f32 %v670, %v1229
        %v1405 = vsub.f32 %v674, %v1232
        %v1406 = vsub.f32 %v676, %v1232
        %v1407 = vsub.f32 %v680, %v1235
        %v1408 = vsub.f32 %v682, %v1235
        %v1409 = vsub.f32 %v686, %v1238
        %v1410 = vsub.f32 %v688, %v1238
        %v1411 = vsub.f32 %v692, %v1241
        %v1412 = vsub.f32 %v694, %v1241
        %v1413 = vsub.f32 %v698, %v1244
        %v1414 = vsub.f32 %v700, %v1244
        %v1415 = vsub.f32 %v704, %v1247
        %v1416 = vsub.f32 %v706, %v1247
        %v1417 = vsub.f32 %v710, %v1250
        %v1418 = vsub.f32 %v712, %v1250
        %v1419 = vsub.f32 %v716, %v1253
        %v1420 = vsub.f32 %v718, %v1253
        %v1421 = vsub.f32 %v722, %v1256
        %v1422 = vsub.f32 %v724, %v1256
        %v1423 = vsub.f32 %v728, %v1259
        %v1424 = vsub.f32 %v730, %v1259
        %v1425 = vsub.f32 %v734, %v1262
        %v1426 = vsub.f32 %v736, %v1262
        %v1427 = vsub.f32 %v740, %v1265
        %v1428 = vsub.f32 %v742, %v1265
        %v1429 = vsub.f32 %v746, %v1268
        %v1430 = vsub.f32 %v748, %v1268
        %v1431 = vsub.f32 %v752, %v1271
        %v1432 = vsub.f32 %v754, %v1271
        %v1433 = vsub.f32 %v758, %v1274
        %v1434 = vsub.f32 %v760, %v1274
        %v1435 = vsub.f32 %v989, %v1277
        %v1436 = vsub.f32 %v991, %v1277
        %v1437 = vsub.f32 %v995, %v1280
        %v1438 = vsub.f32 %v997, %v1280
        %v1439 = vsub.f32 %v1001, %v1283
        %v1440 = vsub.f32 %v1003, %v1283
        %v1441 = vsub.f32 %v1007, %v1286
        %v1442 = vsub.f32 %v1009, %v1286
        %v1443 = vsub.f32 %v1013, %v1289
        %v1444 = vsub.f32 %v1015, %v1289
        %v1445 = vsub.f32 %v1019, %v1292
        %v1446 = vsub.f32 %v1021, %v1292
        %v1447 = vsub.f32 %v1025, %v1295
        %v1448 = vsub.f32 %v1027, %v1295
        %v1449 = vsub.f32 %v1031, %v1298
        %v1450 = vsub.f32 %v1033, %v1298
        %v1451 = vsub.f32 %v1037, %v1301
        %v1452 = vsub.f32 %v1039, %v1301
        %v1453 = vsub.f32 %v1043, %v1304
        %v1454 = vsub.f32 %v1045, %v1304
        %v1455 = vsub.f32 %v1049, %v1307
        %v1456 = vsub.f32 %v1051, %v1307
        %v1457 = vsub.f32 %v1055, %v1310
        %v1458 = vsub.f32 %v1057, %v1310
        %v1459 = vsub.f32 %v1061, %v1313
        %v1460 = vsub.f32 %v1063, %v1313
        %v1461 = vsub.f32 %v1067, %v1316
        %v1462 = vsub.f32 %v1069, %v1316
        %v1463 = vsub.f32 %v1073, %v1319
        %v1464 = vsub.f32 %v1075, %v1319
        %v1465 = vsub.f32 %v1079, %v1322
        %v1466 = vsub.f32 %v1081, %v1322
        %v1467 = vsub.f32 %v1085, %v1325
        %v1468 = vsub.f32 %v1087, %v1325
        %v1469 = vsub.f32 %v1091, %v1328
        %v1470 = vsub.f32 %v1093, %v1328
        %v1471 = vsub.f32 %v1097, %v1331
        %v1472 = vsub.f32 %v1099, %v1331
        %v1473 = vsub.f32 %v1103, %v1334
        %v1474 = vsub.f32 %v1105, %v1334
        %v1475 = vsub.f32 %v1109, %v1337
        %v1476 = vsub.f32 %v1111, %v1337
        %v1477 = vsub.f32 %v1115, %v1340
        %v1478 = vsub.f32 %v1117, %v1340
        %v1479 = vsub.f32 %v1121, %v1343
        %v1480 = vsub.f32 %v1123, %v1343
        %v1481 = vsub.f32 %v1127, %v1346
        %v1482 = vsub.f32 %v1129, %v1346
        %v1483 = vsub.f32 %v1133, %v1349
        %v1484 = vsub.f32 %v1135, %v1349
        %v1485 = vsub.f32 %v1139, %v1352
        %v1486 = vsub.f32 %v1141, %v1352
        %v1487 = vsub.f32 %v1145, %v1355
        %v1488 = vsub.f32 %v1147, %v1355
        %v1489 = vsub.f32 %v1151, %v1358
        %v1490 = vsub.f32 %v1153, %v1358
        %v1491 = vsub.f32 %v1157, %v1361
        %v1492 = vsub.f32 %v1159, %v1361
        %v1493 = vsub.f32 %v1163, %v1364
        %v1494 = vsub.f32 %v1165, %v1364
        %v1495 = vsub.f32 %v1169, %v1367
        %v1496 = vsub.f32 %v1171, %v1367
        %v1497 = vsub.f32 %v1175, %v1370
        %v1498 = vsub.f32 %v1177, %v1370
        %v1499 = vmul.f32 %v1371, 1.442695
        %v1500 = vpow.pop %v1499
        %v1501 = vmul.f32 %v1372, 1.442695
        %v1502 = vpow.pop %v1501
        %v1503 = vmul.f32 %v1373, 1.442695
        %v1504 = vpow.pop %v1503
        %v1505 = vmul.f32 %v1374, 1.442695
        %v1506 = vpow.pop %v1505
        %v1507 = vmul.f32 %v1375, 1.442695
        %v1508 = vpow.pop %v1507
        %v1509 = vmul.f32 %v1376, 1.442695
        %v1510 = vpow.pop %v1509
        %v1511 = vmul.f32 %v1377, 1.442695
        %v1512 = vpow.pop %v1511
        %v1513 = vmul.f32 %v1378, 1.442695
        %v1514 = vpow.pop %v1513
        %v1515 = vmul.f32 %v1379, 1.442695
        %v1516 = vpow.pop %v1515
        %v1517 = vmul.f32 %v1380, 1.442695
        %v1518 = vpow.pop %v1517
        %v1519 = vmul.f32 %v1381, 1.442695
        %v1520 = vpow.pop %v1519
        %v1521 = vmul.f32 %v1382, 1.442695
        %v1522 = vpow.pop %v1521
        %v1523 = vmul.f32 %v1383, 1.442695
        %v1524 = vpow.pop %v1523
        %v1525 = vmul.f32 %v1384, 1.442695
        %v1526 = vpow.pop %v1525
        %v1527 = vmul.f32 %v1385, 1.442695
        %v1528 = vpow.pop %v1527
        %v1529 = vmul.f32 %v1386, 1.442695
        %v1530 = vpow.pop %v1529
        %v1531 = vmul.f32 %v1387, 1.442695
        %v1532 = vpow.pop %v1531
        %v1533 = vmul.f32 %v1388, 1.442695
        %v1534 = vpow.pop %v1533
        %v1535 = vmul.f32 %v1389, 1.442695
        %v1536 = vpow.pop %v1535
        %v1537 = vmul.f32 %v1390, 1.442695
        %v1538 = vpow.pop %v1537
        %v1539 = vmul.f32 %v1391, 1.442695
        %v1540 = vpow.pop %v1539
        %v1541 = vmul.f32 %v1392, 1.442695
        %v1542 = vpow.pop %v1541
        %v1543 = vmul.f32 %v1393, 1.442695
        %v1544 = vpow.pop %v1543
        %v1545 = vmul.f32 %v1394, 1.442695
        %v1546 = vpow.pop %v1545
        %v1547 = vmul.f32 %v1395, 1.442695
        %v1548 = vpow.pop %v1547
        %v1549 = vmul.f32 %v1396, 1.442695
        %v1550 = vpow.pop %v1549
        %v1551 = vmul.f32 %v1397, 1.442695
        %v1552 = vpow.pop %v1551
        %v1553 = vmul.f32 %v1398, 1.442695
        %v1554 = vpow.pop %v1553
        %v1555 = vmul.f32 %v1399, 1.442695
        %v1556 = vpow.pop %v1555
        %v1557 = vmul.f32 %v1400, 1.442695
        %v1558 = vpow.pop %v1557
        %v1559 = vmul.f32 %v1401, 1.442695
        %v1560 = vpow.pop %v1559
        %v1561 = vmul.f32 %v1402, 1.442695
        %v1562 = vpow.pop %v1561
        %v1563 = vmul.f32 %v1403, 1.442695
        %v1564 = vpow.pop %v1563
        %v1565 = vmul.f32 %v1404, 1.442695
        %v1566 = vpow.pop %v1565
        %v1567 = vmul.f32 %v1405, 1.442695
        %v1568 = vpow.pop %v1567
        %v1569 = vmul.f32 %v1406, 1.442695
        %v1570 = vpow.pop %v1569
        %v1571 = vmul.f32 %v1407, 1.442695
        %v1572 = vpow.pop %v1571
        %v1573 = vmul.f32 %v1408, 1.442695
        %v1574 = vpow.pop %v1573
        %v1575 = vmul.f32 %v1409, 1.442695
        %v1576 = vpow.pop %v1575
        %v1577 = vmul.f32 %v1410, 1.442695
        %v1578 = vpow.pop %v1577
        %v1579 = vmul.f32 %v1411, 1.442695
        %v1580 = vpow.pop %v1579
        %v1581 = vmul.f32 %v1412, 1.442695
        %v1582 = vpow.pop %v1581
        %v1583 = vmul.f32 %v1413, 1.442695
        %v1584 = vpow.pop %v1583
        %v1585 = vmul.f32 %v1414, 1.442695
        %v1586 = vpow.pop %v1585
        %v1587 = vmul.f32 %v1415, 1.442695
        %v1588 = vpow.pop %v1587
        %v1589 = vmul.f32 %v1416, 1.442695
        %v1590 = vpow.pop %v1589
        %v1591 = vmul.f32 %v1417, 1.442695
        %v1592 = vpow.pop %v1591
        %v1593 = vmul.f32 %v1418, 1.442695
        %v1594 = vpow.pop %v1593
        %v1595 = vmul.f32 %v1419, 1.442695
        %v1596 = vpow.pop %v1595
        %v1597 = vmul.f32 %v1420, 1.442695
        %v1598 = vpow.pop %v1597
        %v1599 = vmul.f32 %v1421, 1.442695
        %v1600 = vpow.pop %v1599
        %v1601 = vmul.f32 %v1422, 1.442695
        %v1602 = vpow.pop %v1601
        %v1603 = vmul.f32 %v1423, 1.442695
        %v1604 = vpow.pop %v1603
        %v1605 = vmul.f32 %v1424, 1.442695
        %v1606 = vpow.pop %v1605
        %v1607 = vmul.f32 %v1425, 1.442695
        %v1608 = vpow.pop %v1607
        %v1609 = vmul.f32 %v1426, 1.442695
        %v1610 = vpow.pop %v1609
        %v1611 = vmul.f32 %v1427, 1.442695
        %v1612 = vpow.pop %v1611
        %v1613 = vmul.f32 %v1428, 1.442695
        %v1614 = vpow.pop %v1613
        %v1615 = vmul.f32 %v1429, 1.442695
        %v1616 = vpow.pop %v1615
        %v1617 = vmul.f32 %v1430, 1.442695
        %v1618 = vpow.pop %v1617
        %v1619 = vmul.f32 %v1431, 1.442695
        %v1620 = vpow.pop %v1619
        %v1621 = vmul.f32 %v1432, 1.442695
        %v1622 = vpow.pop %v1621
        %v1623 = vmul.f32 %v1433, 1.442695
        %v1624 = vpow.pop %v1623
        %v1625 = vmul.f32 %v1434, 1.442695
        %v1626 = vpow.pop %v1625
        %v1627 = vmul.f32 %v1435, 1.442695
        %v1628 = vpow.pop %v1627
        %v1629 = vmul.f32 %v1436, 1.442695
        %v1630 = vpow.pop %v1629
        %v1631 = vmul.f32 %v1437, 1.442695
        %v1632 = vpow.pop %v1631
        %v1633 = vmul.f32 %v1438, 1.442695
        %v1634 = vpow.pop %v1633
        %v1635 = vmul.f32 %v1439, 1.442695
        %v1636 = vpow.pop %v1635
        %v1637 = vmul.f32 %v1440, 1.442695
        %v1638 = vpow.pop %v1637
        %v1639 = vmul.f32 %v1441, 1.442695
        %v1640 = vpow.pop %v1639
        %v1641 = vmul.f32 %v1442, 1.442695
        %v1642 = vpow.pop %v1641
        %v1643 = vmul.f32 %v1443, 1.442695
        %v1644 = vpow.pop %v1643
        %v1645 = vmul.f32 %v1444, 1.442695
        %v1646 = vpow.pop %v1645
        %v1647 = vmul.f32 %v1445, 1.442695
        %v1648 = vpow.pop %v1647
        %v1649 = vmul.f32 %v1446, 1.442695
        %v1650 = vpow.pop %v1649
        %v1651 = vmul.f32 %v1447, 1.442695
        %v1652 = vpow.pop %v1651
        %v1653 = vmul.f32 %v1448, 1.442695
        %v1654 = vpow.pop %v1653
        %v1655 = vmul.f32 %v1449, 1.442695
        %v1656 = vpow.pop %v1655
        %v1657 = vmul.f32 %v1450, 1.442695
        %v1658 = vpow.pop %v1657
        %v1659 = vmul.f32 %v1451, 1.442695
        %v1660 = vpow.pop %v1659
        %v1661 = vmul.f32 %v1452, 1.442695
        %v1662 = vpow.pop %v1661
        %v1663 = vmul.f32 %v1453, 1.442695
        %v1664 = vpow.pop %v1663
        %v1665 = vmul.f32 %v1454, 1.442695
        %v1666 = vpow.pop %v1665
        %v1667 = vmul.f32 %v1455, 1.442695
        %v1668 = vpow.pop %v1667
        %v1669 = vmul.f32 %v1456, 1.442695
        %v1670 = vpow.pop %v1669
        %v1671 = vmul.f32 %v1457, 1.442695
        %v1672 = vpow.pop %v1671
        %v1673 = vmul.f32 %v1458, 1.442695
        %v1674 = vpow.pop %v1673
        %v1675 = vmul.f32 %v1459, 1.442695
        %v1676 = vpow.pop %v1675
        %v1677 = vmul.f32 %v1460, 1.442695
        %v1678 = vpow.pop %v1677
        %v1679 = vmul.f32 %v1461, 1.442695
        %v1680 = vpow.pop %v1679
        %v1681 = vmul.f32 %v1462, 1.442695
        %v1682 = vpow.pop %v1681
        %v1683 = vmul.f32 %v1463, 1.442695
        %v1684 = vpow.pop %v1683
        %v1685 = vmul.f32 %v1464, 1.442695
        %v1686 = vpow.pop %v1685
        %v1687 = vmul.f32 %v1465, 1.442695
        %v1688 = vpow.pop %v1687
        %v1689 = vmul.f32 %v1466, 1.442695
        %v1690 = vpow.pop %v1689
        %v1691 = vmul.f32 %v1467, 1.442695
        %v1692 = vpow.pop %v1691
        %v1693 = vmul.f32 %v1468, 1.442695
        %v1694 = vpow.pop %v1693
        %v1695 = vmul.f32 %v1469, 1.442695
        %v1696 = vpow.pop %v1695
        %v1697 = vmul.f32 %v1470, 1.442695
        %v1698 = vpow.pop %v1697
        %v1699 = vmul.f32 %v1471, 1.442695
        %v1700 = vpow.pop %v1699
        %v1701 = vmul.f32 %v1472, 1.442695
        %v1702 = vpow.pop %v1701
        %v1703 = vmul.f32 %v1473, 1.442695
        %v1704 = vpow.pop %v1703
        %v1705 = vmul.f32 %v1474, 1.442695
        %v1706 = vpow.pop %v1705
        %v1707 = vmul.f32 %v1475, 1.442695
        %v1708 = vpow.pop %v1707
        %v1709 = vmul.f32 %v1476, 1.442695
        %v1710 = vpow.pop %v1709
        %v1711 = vmul.f32 %v1477, 1.442695
        %v1712 = vpow.pop %v1711
        %v1713 = vmul.f32 %v1478, 1.442695
        %v1714 = vpow.pop %v1713
        %v1715 = vmul.f32 %v1479, 1.442695
        %v1716 = vpow.pop %v1715
        %v1717 = vmul.f32 %v1480, 1.442695
        %v1718 = vpow.pop %v1717
        %v1719 = vmul.f32 %v1481, 1.442695
        %v1720 = vpow.pop %v1719
        %v1721 = vmul.f32 %v1482, 1.442695
        %v1722 = vpow.pop %v1721
        %v1723 = vmul.f32 %v1483, 1.442695
        %v1724 = vpow.pop %v1723
        %v1725 = vmul.f32 %v1484, 1.442695
        %v1726 = vpow.pop %v1725
        %v1727 = vmul.f32 %v1485, 1.442695
        %v1728 = vpow.pop %v1727
        %v1729 = vmul.f32 %v1486, 1.442695
        %v1730 = vpow.pop %v1729
        %v1731 = vmul.f32 %v1487, 1.442695
        %v1732 = vpow.pop %v1731
        %v1733 = vmul.f32 %v1488, 1.442695
        %v1734 = vpow.pop %v1733
        %v1735 = vmul.f32 %v1489, 1.442695
        %v1736 = vpow.pop %v1735
        %v1737 = vmul.f32 %v1490, 1.442695
        %v1738 = vpow.pop %v1737
        %v1739 = vmul.f32 %v1491, 1.442695
        %v1740 = vpow.pop %v1739
        %v1741 = vmul.f32 %v1492, 1.442695
        %v1742 = vpow.pop %v1741
        %v1743 = vmul.f32 %v1493, 1.442695
        %v1744 = vpow.pop %v1743
        %v1745 = vmul.f32 %v1494, 1.442695
        %v1746 = vpow.pop %v1745
        %v1747 = vmul.f32 %v1495, 1.442695
        %v1748 = vpow.pop %v1747
        %v1749 = vmul.f32 %v1496, 1.442695
        %v1750 = vpow.pop %v1749
        %v1751 = vmul.f32 %v1497, 1.442695
        %v1752 = vpow.pop %v1751
        %v1753 = vmul.f32 %v1498, 1.442695
        %v1754 = vpow.pop %v1753
        %1755 = vmatprep.subr.mxu0 0.0
        %1756 = vmatpush1.msra.mxu0 1.0
        %1757 = vmatprep.subr.mxu0 0.0
        %1758 = vmatpush1.msra.mxu0 1.0
        %1759 = vmatprep.subr.mxu0 0.0
        %1760 = vmatpush1.msra.mxu0 1.0
        %1761 = vmatprep.subr.mxu0 0.0
        %1762 = vmatpush1.msra.mxu0 1.0
        %1763 = vmatprep.subr.mxu0 0.0
        %1764 = vmatpush1.msra.mxu0 1.0
        %1765 = vmatprep.subr.mxu0 0.0
        %1766 = vmatpush1.msra.mxu0 1.0
        %1767 = vmatprep.subr.mxu0 0.0
        %1768 = vmatpush1.msra.mxu0 1.0
        %1769 = vmatprep.subr.mxu0 0.0
        %1770 = vmatpush1.msra.mxu0 1.0
        %1771 = vmatprep.subr.mxu0 0.0
        %1772 = vmatpush1.msra.mxu0 1.0
        %1773 = vmatprep.subr.mxu0 0.0
        %1774 = vmatpush1.msra.mxu0 1.0
        %1775 = vmatprep.subr.mxu0 0.0
        %1776 = vmatpush1.msra.mxu0 1.0
        %1777 = vmatprep.subr.mxu0 0.0
        %1778 = vmatpush1.msra.mxu0 1.0
        %1779 = vmatprep.subr.mxu0 0.0
        %1780 = vmatpush1.msra.mxu0 1.0
        %1781 = vmatprep.subr.mxu0 0.0
        %1782 = vmatpush1.msra.mxu0 1.0
        %1783 = vmatprep.subr.mxu0 0.0
        %1784 = vmatpush1.msra.mxu0 1.0
        %1785 = vmatprep.subr.mxu0 0.0
        %1786 = vmatpush1.msra.mxu0 1.0
        %1787 = vmatprep.subr.mxu0 0.0
        %1788 = vmatpush1.msra.mxu0 1.0
        %1789 = vmatprep.subr.mxu0 0.0
        %1790 = vmatpush1.msra.mxu0 1.0
        %1791 = vmatprep.subr.mxu0 0.0
        %1792 = vmatpush1.msra.mxu0 1.0
        %1793 = vmatprep.subr.mxu0 0.0
        %1794 = vmatpush1.msra.mxu0 1.0
        %1795 = vmatprep.subr.mxu0 0.0
        %1796 = vmatpush1.msra.mxu0 1.0
        %1797 = vmatprep.subr.mxu0 0.0
        %1798 = vmatpush1.msra.mxu0 1.0
        %1799 = vmatprep.subr.mxu0 0.0
        %1800 = vmatpush1.msra.mxu0 1.0
        %1801 = vmatprep.subr.mxu0 0.0
        %1802 = vmatpush1.msra.mxu0 1.0
        %1803 = vmatprep.subr.mxu0 0.0
        %1804 = vmatpush1.msra.mxu0 1.0
        %1805 = vmatprep.subr.mxu0 0.0
        %1806 = vmatpush1.msra.mxu0 1.0
        %1807 = vmatprep.subr.mxu0 0.0
        %1808 = vmatpush1.msra.mxu0 1.0
        %1809 = vmatprep.subr.mxu0 0.0
        %1810 = vmatpush1.msra.mxu0 1.0
        %1811 = vmatprep.subr.mxu0 0.0
        %1812 = vmatpush1.msra.mxu0 1.0
        %1813 = vmatprep.subr.mxu0 0.0
        %1814 = vmatpush1.msra.mxu0 1.0
        %1815 = vmatprep.subr.mxu0 0.0
        %1816 = vmatpush1.msra.mxu0 1.0
        %1817 = vmatprep.subr.mxu0 0.0
        %1818 = vmatpush1.msra.mxu0 1.0
        %1819 = vmatprep.mubr.f32.mxu0 %v1502
        %1820 = vmatmul.mubr.f32.gmra.mrb[0].mxu0 %v1500
        %v1821 = vpop.f32.mrb[0].mxu0
        %v1822 = vadd.f32 0.0, %v1821
        %v1823 = vpop.f32.mrb[0].mxu0
        %1824 = vmatprep.mubr.f32.mxu0 %v1506
        %1825 = vmatmul.mubr.f32.gmra.mrb[0].mxu0 %v1504
        %v1826 = vpop.f32.mrb[0].mxu0
        %v1827 = vadd.f32 0.0, %v1826
        %v1828 = vpop.f32.mrb[0].mxu0
        %1829 = vmatprep.mubr.f32.mxu0 %v1510
        %1830 = vmatmul.mubr.f32.gmra.mrb[0].mxu0 %v1508
        %v1831 = vpop.f32.mrb[0].mxu0
        %v1832 = vadd.f32 0.0, %v1831
        %v1833 = vpop.f32.mrb[0].mxu0
        %1834 = vmatprep.mubr.f32.mxu0 %v1514
        %1835 = vmatmul.mubr.f32.gmra.mrb[0].mxu0 %v1512
        %v1836 = vpop.f32.mrb[0].mxu0
        %v1837 = vadd.f32 0.0, %v1836
        %v1838 = vpop.f32.mrb[0].mxu0
        %1839 = vmatprep.mubr.f32.mxu0 %v1518
        %1840 = vmatmul.mubr.f32.gmra.mrb[0].mxu0 %v1516
        %v1841 = vpop.f32.mrb[0].mxu0
        %v1842 = vadd.f32 0.0, %v1841
        %v1843 = vpop.f32.mrb[0].mxu0
        %1844 = vmatprep.mubr.f32.mxu0 %v1522
        %1845 = vmatmul.mubr.f32.gmra.mrb[0].mxu0 %v1520
        %v1846 = vpop.f32.mrb[0].mxu0
        %v1847 = vadd.f32 0.0, %v1846
        %v1848 = vpop.f32.mrb[0].mxu0
        %1849 = vmatprep.mubr.f32.mxu0 %v1526
        %1850 = vmatmul.mubr.f32.gmra.mrb[0].mxu0 %v1524
        %v1851 = vpop.f32.mrb[0].mxu0
        %v1852 = vadd.f32 0.0, %v1851
        %v1853 = vpop.f32.mrb[0].mxu0
        %1854 = vmatprep.mubr.f32.mxu0 %v1530
        %1855 = vmatmul.mubr.f32.gmra.mrb[0].mxu0 %v1528
        %v1856 = vpop.f32.mrb[0].mxu0
        %v1857 = vadd.f32 0.0, %v1856
        %v1858 = vpop.f32.mrb[0].mxu0
        %1859 = vmatprep.mubr.f32.mxu0 %v1534
        %1860 = vmatmul.mubr.f32.gmra.mrb[0].mxu0 %v1532
        %v1861 = vpop.f32.mrb[0].mxu0
        %v1862 = vadd.f32 0.0, %v1861
        %v1863 = vpop.f32.mrb[0].mxu0
        %1864 = vmatprep.mubr.f32.mxu0 %v1538
        %1865 = vmatmul.mubr.f32.gmra.mrb[0].mxu0 %v1536
        %v1866 = vpop.f32.mrb[0].mxu0
        %v1867 = vadd.f32 0.0, %v1866
        %v1868 = vpop.f32.mrb[0].mxu0
        %1869 = vmatprep.mubr.f32.mxu0 %v1542
        %1870 = vmatmul.mubr.f32.gmra.mrb[0].mxu0 %v1540
        %v1871 = vpop.f32.mrb[0].mxu0
        %v1872 = vadd.f32 0.0, %v1871
        %v1873 = vpop.f32.mrb[0].mxu0
        %1874 = vmatprep.mubr.f32.mxu0 %v1546
        %1875 = vmatmul.mubr.f32.gmra.mrb[0].mxu0 %v1544
        %v1876 = vpop.f32.mrb[0].mxu0
        %v1877 = vadd.f32 0.0, %v1876
        %v1878 = vpop.f32.mrb[0].mxu0
        %1879 = vmatprep.mubr.f32.mxu0 %v1550
        %1880 = vmatmul.mubr.f32.gmra.mrb[0].mxu0 %v1548
        %v1881 = vpop.f32.mrb[0].mxu0
        %v1882 = vadd.f32 0.0, %v1881
        %v1883 = vpop.f32.mrb[0].mxu0
        %1884 = vmatprep.mubr.f32.mxu0 %v1554
        %1885 = vmatmul.mubr.f32.gmra.mrb[0].mxu0 %v1552
        %v1886 = vpop.f32.mrb[0].mxu0
        %v1887 = vadd.f32 0.0, %v1886
        %v1888 = vpop.f32.mrb[0].mxu0
        %1889 = vmatprep.mubr.f32.mxu0 %v1558
        %1890 = vmatmul.mubr.f32.gmra.mrb[0].mxu0 %v1556
        %v1891 = vpop.f32.mrb[0].mxu0
        %v1892 = vadd.f32 0.0, %v1891
        %v1893 = vpop.f32.mrb[0].mxu0
        %1894 = vmatprep.mubr.f32.mxu0 %v1562
        %1895 = vmatmul.mubr.f32.gmra.mrb[0].mxu0 %v1560
        %v1896 = vpop.f32.mrb[0].mxu0
        %v1897 = vadd.f32 0.0, %v1896
        %v1898 = vpop.f32.mrb[0].mxu0
        %1899 = vmatprep.mubr.f32.mxu0 %v1566
        %1900 = vmatmul.mubr.f32.gmra.mrb[0].mxu0 %v1564
        %v1901 = vpop.f32.mrb[0].mxu0
        %v1902 = vadd.f32 0.0, %v1901
        %v1903 = vpop.f32.mrb[0].mxu0
        %1904 = vmatprep.mubr.f32.mxu0 %v1570
        %1905 = vmatmul.mubr.f32.gmra.mrb[0].mxu0 %v1568
        %v1906 = vpop.f32.mrb[0].mxu0
        %v1907 = vadd.f32 0.0, %v1906
        %v1908 = vpop.f32.mrb[0].mxu0
        %1909 = vmatprep.mubr.f32.mxu0 %v1574
        %1910 = vmatmul.mubr.f32.gmra.mrb[0].mxu0 %v1572
        %v1911 = vpop.f32.mrb[0].mxu0
        %v1912 = vadd.f32 0.0, %v1911
        %v1913 = vpop.f32.mrb[0].mxu0
        %1914 = vmatprep.mubr.f32.mxu0 %v1578
        %1915 = vmatmul.mubr.f32.gmra.mrb[0].mxu0 %v1576
        %v1916 = vpop.f32.mrb[0].mxu0
        %v1917 = vadd.f32 0.0, %v1916
        %v1918 = vpop.f32.mrb[0].mxu0
        %1919 = vmatprep.mubr.f32.mxu0 %v1582
        %1920 = vmatmul.mubr.f32.gmra.mrb[0].mxu0 %v1580
        %v1921 = vpop.f32.mrb[0].mxu0
        %v1922 = vadd.f32 0.0, %v1921
        %v1923 = vpop.f32.mrb[0].mxu0
        %1924 = vmatprep.mubr.f32.mxu0 %v1586
        %1925 = vmatmul.mubr.f32.gmra.mrb[0].mxu0 %v1584
        %v1926 = vpop.f32.mrb[0].mxu0
        %v1927 = vadd.f32 0.0, %v1926
        %v1928 = vpop.f32.mrb[0].mxu0
        %1929 = vmatprep.mubr.f32.mxu0 %v1590
        %1930 = vmatmul.mubr.f32.gmra.mrb[0].mxu0 %v1588
        %v1931 = vpop.f32.mrb[0].mxu0
        %v1932 = vadd.f32 0.0, %v1931
        %v1933 = vpop.f32.mrb[0].mxu0
        %1934 = vmatprep.mubr.f32.mxu0 %v1594
        %1935 = vmatmul.mubr.f32.gmra.mrb[0].mxu0 %v1592
        %v1936 = vpop.f32.mrb[0].mxu0
        %v1937 = vadd.f32 0.0, %v1936
        %v1938 = vpop.f32.mrb[0].mxu0
        %1939 = vmatprep.mubr.f32.mxu0 %v1598
        %1940 = vmatmul.mubr.f32.gmra.mrb[0].mxu0 %v1596
        %v1941 = vpop.f32.mrb[0].mxu0
        %v1942 = vadd.f32 0.0, %v1941
        %v1943 = vpop.f32.mrb[0].mxu0
        %1944 = vmatprep.mubr.f32.mxu0 %v1602
        %1945 = vmatmul.mubr.f32.gmra.mrb[0].mxu0 %v1600
        %v1946 = vpop.f32.mrb[0].mxu0
        %v1947 = vadd.f32 0.0, %v1946
        %v1948 = vpop.f32.mrb[0].mxu0
        %1949 = vmatprep.mubr.f32.mxu0 %v1606
        %1950 = vmatmul.mubr.f32.gmra.mrb[0].mxu0 %v1604
        %v1951 = vpop.f32.mrb[0].mxu0
        %v1952 = vadd.f32 0.0, %v1951
        %v1953 = vpop.f32.mrb[0].mxu0
        %1954 = vmatprep.mubr.f32.mxu0 %v1610
        %1955 = vmatmul.mubr.f32.gmra.mrb[0].mxu0 %v1608
        %v1956 = vpop.f32.mrb[0].mxu0
        %v1957 = vadd.f32 0.0, %v1956
        %v1958 = vpop.f32.mrb[0].mxu0
        %1959 = vmatprep.mubr.f32.mxu0 %v1614
        %1960 = vmatmul.mubr.f32.gmra.mrb[0].mxu0 %v1612
        %v1961 = vpop.f32.mrb[0].mxu0
        %v1962 = vadd.f32 0.0, %v1961
        %v1963 = vpop.f32.mrb[0].mxu0
        %1964 = vmatprep.mubr.f32.mxu0 %v1618
        %1965 = vmatmul.mubr.f32.gmra.mrb[0].mxu0 %v1616
        %v1966 = vpop.f32.mrb[0].mxu0
        %v1967 = vadd.f32 0.0, %v1966
        %v1968 = vpop.f32.mrb[0].mxu0
        %1969 = vmatprep.mubr.f32.mxu0 %v1622
        %1970 = vmatmul.mubr.f32.gmra.mrb[0].mxu0 %v1620
        %v1971 = vpop.f32.mrb[0].mxu0
        %v1972 = vadd.f32 0.0, %v1971
        %v1973 = vpop.f32.mrb[0].mxu0
        %1974 = vmatprep.mubr.f32.mxu0 %v1626
        %1975 = vmatmul.mubr.f32.gmra.mrb[0].mxu0 %v1624
        %v1976 = vpop.f32.mrb[0].mxu0
        %v1977 = vadd.f32 0.0, %v1976
        %v1978 = vpop.f32.mrb[0].mxu0
        %1979 = vdwg.mxu0
        %1980 = vmatprep.subr.mxu0 0.0
        %1981 = vmatpush1.msra.mxu0 1.0
        %1982 = vmatprep.subr.mxu0 0.0
        %1983 = vmatpush1.msra.mxu0 1.0
        %1984 = vmatprep.subr.mxu0 0.0
        %1985 = vmatpush1.msra.mxu0 1.0
        %1986 = vmatprep.subr.mxu0 0.0
        %1987 = vmatpush1.msra.mxu0 1.0
        %1988 = vmatprep.subr.mxu0 0.0
        %1989 = vmatpush1.msra.mxu0 1.0
        %1990 = vmatprep.subr.mxu0 0.0
        %1991 = vmatpush1.msra.mxu0 1.0
        %1992 = vmatprep.subr.mxu0 0.0
        %1993 = vmatpush1.msra.mxu0 1.0
        %1994 = vmatprep.subr.mxu0 0.0
        %1995 = vmatpush1.msra.mxu0 1.0
        %1996 = vmatprep.subr.mxu0 0.0
        %1997 = vmatpush1.msra.mxu0 1.0
        %1998 = vmatprep.subr.mxu0 0.0
        %1999 = vmatpush1.msra.mxu0 1.0
        %2000 = vmatprep.subr.mxu0 0.0
        %2001 = vmatpush1.msra.mxu0 1.0
        %2002 = vmatprep.subr.mxu0 0.0
        %2003 = vmatpush1.msra.mxu0 1.0
        %2004 = vmatprep.subr.mxu0 0.0
        %2005 = vmatpush1.msra.mxu0 1.0
        %2006 = vmatprep.subr.mxu0 0.0
        %2007 = vmatpush1.msra.mxu0 1.0
        %2008 = vmatprep.subr.mxu0 0.0
        %2009 = vmatpush1.msra.mxu0 1.0
        %2010 = vmatprep.subr.mxu0 0.0
        %2011 = vmatpush1.msra.mxu0 1.0
        %2012 = vmatprep.subr.mxu0 0.0
        %2013 = vmatpush1.msra.mxu0 1.0
        %2014 = vmatprep.subr.mxu0 0.0
        %2015 = vmatpush1.msra.mxu0 1.0
        %2016 = vmatprep.subr.mxu0 0.0
        %2017 = vmatpush1.msra.mxu0 1.0
        %2018 = vmatprep.subr.mxu0 0.0
        %2019 = vmatpush1.msra.mxu0 1.0
        %2020 = vmatprep.subr.mxu0 0.0
        %2021 = vmatpush1.msra.mxu0 1.0
        %2022 = vmatprep.subr.mxu0 0.0
        %2023 = vmatpush1.msra.mxu0 1.0
        %2024 = vmatprep.subr.mxu0 0.0
        %2025 = vmatpush1.msra.mxu0 1.0
        %2026 = vmatprep.subr.mxu0 0.0
        %2027 = vmatpush1.msra.mxu0 1.0
        %2028 = vmatprep.subr.mxu0 0.0
        %2029 = vmatpush1.msra.mxu0 1.0
        %2030 = vmatprep.subr.mxu0 0.0
        %2031 = vmatpush1.msra.mxu0 1.0
        %2032 = vmatprep.subr.mxu0 0.0
        %2033 = vmatpush1.msra.mxu0 1.0
        %2034 = vmatprep.subr.mxu0 0.0
        %2035 = vmatpush1.msra.mxu0 1.0
        %2036 = vmatprep.subr.mxu0 0.0
        %2037 = vmatpush1.msra.mxu0 1.0
        %2038 = vmatprep.subr.mxu0 0.0
        %2039 = vmatpush1.msra.mxu0 1.0
        %2040 = vmatprep.subr.mxu0 0.0
        %2041 = vmatpush1.msra.mxu0 1.0
        %2042 = vmatprep.subr.mxu0 0.0
        %2043 = vmatpush1.msra.mxu0 1.0
        %2044 = vmatprep.mubr.f32.mxu0 %v1630
        %2045 = vmatmul.mubr.f32.gmra.mrb[0].mxu0 %v1628
        %v2046 = vpop.f32.mrb[0].mxu0
        %v2047 = vadd.f32 0.0, %v2046
        %v2048 = vpop.f32.mrb[0].mxu0
        %2049 = vmatprep.mubr.f32.mxu0 %v1634
        %2050 = vmatmul.mubr.f32.gmra.mrb[0].mxu0 %v1632
        %v2051 = vpop.f32.mrb[0].mxu0
        %v2052 = vadd.f32 0.0, %v2051
        %v2053 = vpop.f32.mrb[0].mxu0
        %2054 = vmatprep.mubr.f32.mxu0 %v1638
        %2055 = vmatmul.mubr.f32.gmra.mrb[0].mxu0 %v1636
        %v2056 = vpop.f32.mrb[0].mxu0
        %v2057 = vadd.f32 0.0, %v2056
        %v2058 = vpop.f32.mrb[0].mxu0
        %2059 = vmatprep.mubr.f32.mxu0 %v1642
        %2060 = vmatmul.mubr.f32.gmra.mrb[0].mxu0 %v1640
        %v2061 = vpop.f32.mrb[0].mxu0
        %v2062 = vadd.f32 0.0, %v2061
        %v2063 = vpop.f32.mrb[0].mxu0
        %2064 = vmatprep.mubr.f32.mxu0 %v1646
        %2065 = vmatmul.mubr.f32.gmra.mrb[0].mxu0 %v1644
        %v2066 = vpop.f32.mrb[0].mxu0
        %v2067 = vadd.f32 0.0, %v2066
        %v2068 = vpop.f32.mrb[0].mxu0
        %2069 = vmatprep.mubr.f32.mxu0 %v1650
        %2070 = vmatmul.mubr.f32.gmra.mrb[0].mxu0 %v1648
        %v2071 = vpop.f32.mrb[0].mxu0
        %v2072 = vadd.f32 0.0, %v2071
        %v2073 = vpop.f32.mrb[0].mxu0
        %2074 = vmatprep.mubr.f32.mxu0 %v1654
        %2075 = vmatmul.mubr.f32.gmra.mrb[0].mxu0 %v1652
        %v2076 = vpop.f32.mrb[0].mxu0
        %v2077 = vadd.f32 0.0, %v2076
        %v2078 = vpop.f32.mrb[0].mxu0
        %2079 = vmatprep.mubr.f32.mxu0 %v1658
        %2080 = vmatmul.mubr.f32.gmra.mrb[0].mxu0 %v1656
        %v2081 = vpop.f32.mrb[0].mxu0
        %v2082 = vadd.f32 0.0, %v2081
        %v2083 = vpop.f32.mrb[0].mxu0
        %2084 = vmatprep.mubr.f32.mxu0 %v1662
        %2085 = vmatmul.mubr.f32.gmra.mrb[0].mxu0 %v1660
        %v2086 = vpop.f32.mrb[0].mxu0
        %v2087 = vadd.f32 0.0, %v2086
        %v2088 = vpop.f32.mrb[0].mxu0
        %2089 = vmatprep.mubr.f32.mxu0 %v1666
        %2090 = vmatmul.mubr.f32.gmra.mrb[0].mxu0 %v1664
        %v2091 = vpop.f32.mrb[0].mxu0
        %v2092 = vadd.f32 0.0, %v2091
        %v2093 = vpop.f32.mrb[0].mxu0
        %2094 = vmatprep.mubr.f32.mxu0 %v1670
        %2095 = vmatmul.mubr.f32.gmra.mrb[0].mxu0 %v1668
        %v2096 = vpop.f32.mrb[0].mxu0
        %v2097 = vadd.f32 0.0, %v2096
        %v2098 = vpop.f32.mrb[0].mxu0
        %2099 = vmatprep.mubr.f32.mxu0 %v1674
        %2100 = vmatmul.mubr.f32.gmra.mrb[0].mxu0 %v1672
        %v2101 = vpop.f32.mrb[0].mxu0
        %v2102 = vadd.f32 0.0, %v2101
        %v2103 = vpop.f32.mrb[0].mxu0
        %2104 = vmatprep.mubr.f32.mxu0 %v1678
        %2105 = vmatmul.mubr.f32.gmra.mrb[0].mxu0 %v1676
        %v2106 = vpop.f32.mrb[0].mxu0
        %v2107 = vadd.f32 0.0, %v2106
        %v2108 = vpop.f32.mrb[0].mxu0
        %2109 = vmatprep.mubr.f32.mxu0 %v1682
        %2110 = vmatmul.mubr.f32.gmra.mrb[0].mxu0 %v1680
        %v2111 = vpop.f32.mrb[0].mxu0
        %v2112 = vadd.f32 0.0, %v2111
        %v2113 = vpop.f32.mrb[0].mxu0
        %2114 = vmatprep.mubr.f32.mxu0 %v1686
        %2115 = vmatmul.mubr.f32.gmra.mrb[0].mxu0 %v1684
        %v2116 = vpop.f32.mrb[0].mxu0
        %v2117 = vadd.f32 0.0, %v2116
        %v2118 = vpop.f32.mrb[0].mxu0
        %2119 = vmatprep.mubr.f32.mxu0 %v1690
        %2120 = vmatmul.mubr.f32.gmra.mrb[0].mxu0 %v1688
        %v2121 = vpop.f32.mrb[0].mxu0
        %v2122 = vadd.f32 0.0, %v2121
        %v2123 = vpop.f32.mrb[0].mxu0
        %2124 = vmatprep.mubr.f32.mxu0 %v1694
        %2125 = vmatmul.mubr.f32.gmra.mrb[0].mxu0 %v1692
        %v2126 = vpop.f32.mrb[0].mxu0
        %v2127 = vadd.f32 0.0, %v2126
        %v2128 = vpop.f32.mrb[0].mxu0
        %2129 = vmatprep.mubr.f32.mxu0 %v1698
        %2130 = vmatmul.mubr.f32.gmra.mrb[0].mxu0 %v1696
        %v2131 = vpop.f32.mrb[0].mxu0
        %v2132 = vadd.f32 0.0, %v2131
        %v2133 = vpop.f32.mrb[0].mxu0
        %2134 = vmatprep.mubr.f32.mxu0 %v1702
        %2135 = vmatmul.mubr.f32.gmra.mrb[0].mxu0 %v1700
        %v2136 = vpop.f32.mrb[0].mxu0
        %v2137 = vadd.f32 0.0, %v2136
        %v2138 = vpop.f32.mrb[0].mxu0
        %2139 = vmatprep.mubr.f32.mxu0 %v1706
        %2140 = vmatmul.mubr.f32.gmra.mrb[0].mxu0 %v1704
        %v2141 = vpop.f32.mrb[0].mxu0
        %v2142 = vadd.f32 0.0, %v2141
        %v2143 = vpop.f32.mrb[0].mxu0
        %2144 = vmatprep.mubr.f32.mxu0 %v1710
        %2145 = vmatmul.mubr.f32.gmra.mrb[0].mxu0 %v1708
        %v2146 = vpop.f32.mrb[0].mxu0
        %v2147 = vadd.f32 0.0, %v2146
        %v2148 = vpop.f32.mrb[0].mxu0
        %2149 = vmatprep.mubr.f32.mxu0 %v1714
        %2150 = vmatmul.mubr.f32.gmra.mrb[0].mxu0 %v1712
        %v2151 = vpop.f32.mrb[0].mxu0
        %v2152 = vadd.f32 0.0, %v2151
        %v2153 = vpop.f32.mrb[0].mxu0
        %2154 = vmatprep.mubr.f32.mxu0 %v1718
        %2155 = vmatmul.mubr.f32.gmra.mrb[0].mxu0 %v1716
        %v2156 = vpop.f32.mrb[0].mxu0
        %v2157 = vadd.f32 0.0, %v2156
        %v2158 = vpop.f32.mrb[0].mxu0
        %2159 = vmatprep.mubr.f32.mxu0 %v1722
        %2160 = vmatmul.mubr.f32.gmra.mrb[0].mxu0 %v1720
        %v2161 = vpop.f32.mrb[0].mxu0
        %v2162 = vadd.f32 0.0, %v2161
        %v2163 = vpop.f32.mrb[0].mxu0
        %2164 = vmatprep.mubr.f32.mxu0 %v1726
        %2165 = vmatmul.mubr.f32.gmra.mrb[0].mxu0 %v1724
        %v2166 = vpop.f32.mrb[0].mxu0
        %v2167 = vadd.f32 0.0, %v2166
        %v2168 = vpop.f32.mrb[0].mxu0
        %2169 = vmatprep.mubr.f32.mxu0 %v1730
        %2170 = vmatmul.mubr.f32.gmra.mrb[0].mxu0 %v1728
        %v2171 = vpop.f32.mrb[0].mxu0
        %v2172 = vadd.f32 0.0, %v2171
        %v2173 = vpop.f32.mrb[0].mxu0
        %2174 = vmatprep.mubr.f32.mxu0 %v1734
        %2175 = vmatmul.mubr.f32.gmra.mrb[0].mxu0 %v1732
        %v2176 = vpop.f32.mrb[0].mxu0
        %v2177 = vadd.f32 0.0, %v2176
        %v2178 = vpop.f32.mrb[0].mxu0
        %2179 = vmatprep.mubr.f32.mxu0 %v1738
        %2180 = vmatmul.mubr.f32.gmra.mrb[0].mxu0 %v1736
        %v2181 = vpop.f32.mrb[0].mxu0
        %v2182 = vadd.f32 0.0, %v2181
        %v2183 = vpop.f32.mrb[0].mxu0
        %2184 = vmatprep.mubr.f32.mxu0 %v1742
        %2185 = vmatmul.mubr.f32.gmra.mrb[0].mxu0 %v1740
        %v2186 = vpop.f32.mrb[0].mxu0
        %v2187 = vadd.f32 0.0, %v2186
        %v2188 = vpop.f32.mrb[0].mxu0
        %2189 = vmatprep.mubr.f32.mxu0 %v1746
        %2190 = vmatmul.mubr.f32.gmra.mrb[0].mxu0 %v1744
        %v2191 = vpop.f32.mrb[0].mxu0
        %v2192 = vadd.f32 0.0, %v2191
        %v2193 = vpop.f32.mrb[0].mxu0
        %2194 = vmatprep.mubr.f32.mxu0 %v1750
        %2195 = vmatmul.mubr.f32.gmra.mrb[0].mxu0 %v1748
        %v2196 = vpop.f32.mrb[0].mxu0
        %v2197 = vadd.f32 0.0, %v2196
        %v2198 = vpop.f32.mrb[0].mxu0
        %2199 = vmatprep.mubr.f32.mxu0 %v1754
        %2200 = vmatmul.mubr.f32.gmra.mrb[0].mxu0 %v1752
        %v2201 = vpop.f32.mrb[0].mxu0
        %v2202 = vadd.f32 0.0, %v2201
        %v2203 = vpop.f32.mrb[0].mxu0
        %2204 = vdwg.mxu0
        %2205 = vmatprep.subr.mxu0 0.0
        %2206 = vmatpush1.msra.mxu0 %v272
        %2207 = vmatprep.subr.mxu0 0.0
        %2208 = vmatpush1.msra.mxu0 %v273
        %2209 = vmatprep.subr.mxu0 0.0
        %2210 = vmatpush1.msra.mxu0 %v274
        %2211 = vmatprep.subr.mxu0 0.0
        %2212 = vmatpush1.msra.mxu0 %v275
        %2213 = vmatprep.subr.mxu0 0.0
        %2214 = vmatpush1.msra.mxu0 %v276
        %2215 = vmatprep.subr.mxu0 0.0
        %2216 = vmatpush1.msra.mxu0 %v277
        %2217 = vmatprep.subr.mxu0 0.0
        %2218 = vmatpush1.msra.mxu0 %v278
        %2219 = vmatprep.subr.mxu0 0.0
        %2220 = vmatpush1.msra.mxu0 %v279
        %2221 = vmatprep.subr.mxu0 0.0
        %2222 = vmatpush1.msra.mxu0 %v280
        %2223 = vmatprep.subr.mxu0 0.0
        %2224 = vmatpush1.msra.mxu0 %v281
        %2225 = vmatprep.subr.mxu0 0.0
        %2226 = vmatpush1.msra.mxu0 %v282
        %2227 = vmatprep.subr.mxu0 0.0
        %2228 = vmatpush1.msra.mxu0 %v283
        %2229 = vmatprep.subr.mxu0 0.0
        %2230 = vmatpush1.msra.mxu0 %v284
        %2231 = vmatprep.subr.mxu0 0.0
        %2232 = vmatpush1.msra.mxu0 %v285
        %2233 = vmatprep.subr.mxu0 0.0
        %2234 = vmatpush1.msra.mxu0 %v286
        %2235 = vmatprep.subr.mxu0 0.0
        %2236 = vmatpush1.msra.mxu0 %v287
        %2237 = vmatprep.subr.mxu0 0.0
        %2238 = vmatpush1.msra.mxu0 %v288
        %2239 = vmatprep.subr.mxu0 0.0
        %2240 = vmatpush1.msra.mxu0 %v289
        %2241 = vmatprep.subr.mxu0 0.0
        %2242 = vmatpush1.msra.mxu0 %v290
        %2243 = vmatprep.subr.mxu0 0.0
        %2244 = vmatpush1.msra.mxu0 %v291
        %2245 = vmatprep.subr.mxu0 0.0
        %2246 = vmatpush1.msra.mxu0 %v292
        %2247 = vmatprep.subr.mxu0 0.0
        %2248 = vmatpush1.msra.mxu0 %v293
        %2249 = vmatprep.subr.mxu0 0.0
        %2250 = vmatpush1.msra.mxu0 %v294
        %2251 = vmatprep.subr.mxu0 0.0
        %2252 = vmatpush1.msra.mxu0 %v295
        %2253 = vmatprep.subr.mxu0 0.0
        %2254 = vmatpush1.msra.mxu0 %v296
        %2255 = vmatprep.subr.mxu0 0.0
        %2256 = vmatpush1.msra.mxu0 %v297
        %2257 = vmatprep.subr.mxu0 0.0
        %2258 = vmatpush1.msra.mxu0 %v298
        %2259 = vmatprep.subr.mxu0 0.0
        %2260 = vmatpush1.msra.mxu0 %v299
        %2261 = vmatprep.subr.mxu0 0.0
        %2262 = vmatpush1.msra.mxu0 %v300
        %2263 = vmatprep.subr.mxu0 0.0
        %2264 = vmatpush1.msra.mxu0 %v301
        %2265 = vmatprep.subr.mxu0 0.0
        %2266 = vmatpush1.msra.mxu0 %v302
        %2267 = vmatprep.subr.mxu0 0.0
        %2268 = vmatpush1.msra.mxu0 %v303
        %2269 = vmatprep.mubr.f32.mxu0 %v1502
        %2270 = vmatmul.mubr.f32.gmra.mrb[0].mxu0 %v1500
        %v2271 = vpop.f32.mrb[0].mxu0
        %v2272 = vadd.f32 0.0, %v2271
        %v2273 = vpop.f32.mrb[0].mxu0
        %2274 = vmatprep.mubr.f32.mxu0 %v1506
        %2275 = vmatmul.mubr.f32.gmra.mrb[0].mxu0 %v1504
        %v2276 = vpop.f32.mrb[0].mxu0
        %v2277 = vadd.f32 0.0, %v2276
        %v2278 = vpop.f32.mrb[0].mxu0
        %2279 = vmatprep.mubr.f32.mxu0 %v1510
        %2280 = vmatmul.mubr.f32.gmra.mrb[0].mxu0 %v1508
        %v2281 = vpop.f32.mrb[0].mxu0
        %v2282 = vadd.f32 0.0, %v2281
        %v2283 = vpop.f32.mrb[0].mxu0
        %2284 = vmatprep.mubr.f32.mxu0 %v1514
        %2285 = vmatmul.mubr.f32.gmra.mrb[0].mxu0 %v1512
        %v2286 = vpop.f32.mrb[0].mxu0
        %v2287 = vadd.f32 0.0, %v2286
        %v2288 = vpop.f32.mrb[0].mxu0
        %2289 = vmatprep.mubr.f32.mxu0 %v1518
        %2290 = vmatmul.mubr.f32.gmra.mrb[0].mxu0 %v1516
        %v2291 = vpop.f32.mrb[0].mxu0
        %v2292 = vadd.f32 0.0, %v2291
        %v2293 = vpop.f32.mrb[0].mxu0
        %2294 = vmatprep.mubr.f32.mxu0 %v1522
        %2295 = vmatmul.mubr.f32.gmra.mrb[0].mxu0 %v1520
        %v2296 = vpop.f32.mrb[0].mxu0
        %v2297 = vadd.f32 0.0, %v2296
        %v2298 = vpop.f32.mrb[0].mxu0
        %2299 = vmatprep.mubr.f32.mxu0 %v1526
        %2300 = vmatmul.mubr.f32.gmra.mrb[0].mxu0 %v1524
        %v2301 = vpop.f32.mrb[0].mxu0
        %v2302 = vadd.f32 0.0, %v2301
        %v2303 = vpop.f32.mrb[0].mxu0
        %2304 = vmatprep.mubr.f32.mxu0 %v1530
        %2305 = vmatmul.mubr.f32.gmra.mrb[0].mxu0 %v1528
        %v2306 = vpop.f32.mrb[0].mxu0
        %v2307 = vadd.f32 0.0, %v2306
        %v2308 = vpop.f32.mrb[0].mxu0
        %2309 = vmatprep.mubr.f32.mxu0 %v1534
        %2310 = vmatmul.mubr.f32.gmra.mrb[0].mxu0 %v1532
        %v2311 = vpop.f32.mrb[0].mxu0
        %v2312 = vadd.f32 0.0, %v2311
        %v2313 = vpop.f32.mrb[0].mxu0
        %2314 = vmatprep.mubr.f32.mxu0 %v1538
        %2315 = vmatmul.mubr.f32.gmra.mrb[0].mxu0 %v1536
        %v2316 = vpop.f32.mrb[0].mxu0
        %v2317 = vadd.f32 0.0, %v2316
        %v2318 = vpop.f32.mrb[0].mxu0
        %2319 = vmatprep.mubr.f32.mxu0 %v1542
        %2320 = vmatmul.mubr.f32.gmra.mrb[0].mxu0 %v1540
        %v2321 = vpop.f32.mrb[0].mxu0
        %v2322 = vadd.f32 0.0, %v2321
        %v2323 = vpop.f32.mrb[0].mxu0
        %2324 = vmatprep.mubr.f32.mxu0 %v1546
        %2325 = vmatmul.mubr.f32.gmra.mrb[0].mxu0 %v1544
        %v2326 = vpop.f32.mrb[0].mxu0
        %v2327 = vadd.f32 0.0, %v2326
        %v2328 = vpop.f32.mrb[0].mxu0
        %2329 = vmatprep.mubr.f32.mxu0 %v1550
        %2330 = vmatmul.mubr.f32.gmra.mrb[0].mxu0 %v1548
        %v2331 = vpop.f32.mrb[0].mxu0
        %v2332 = vadd.f32 0.0, %v2331
        %v2333 = vpop.f32.mrb[0].mxu0
        %2334 = vmatprep.mubr.f32.mxu0 %v1554
        %2335 = vmatmul.mubr.f32.gmra.mrb[0].mxu0 %v1552
        %v2336 = vpop.f32.mrb[0].mxu0
        %v2337 = vadd.f32 0.0, %v2336
        %v2338 = vpop.f32.mrb[0].mxu0
        %2339 = vmatprep.mubr.f32.mxu0 %v1558
        %2340 = vmatmul.mubr.f32.gmra.mrb[0].mxu0 %v1556
        %v2341 = vpop.f32.mrb[0].mxu0
        %v2342 = vadd.f32 0.0, %v2341
        %v2343 = vpop.f32.mrb[0].mxu0
        %2344 = vmatprep.mubr.f32.mxu0 %v1562
        %2345 = vmatmul.mubr.f32.gmra.mrb[0].mxu0 %v1560
        %v2346 = vpop.f32.mrb[0].mxu0
        %v2347 = vadd.f32 0.0, %v2346
        %v2348 = vpop.f32.mrb[0].mxu0
        %2349 = vmatprep.mubr.f32.mxu0 %v1566
        %2350 = vmatmul.mubr.f32.gmra.mrb[0].mxu0 %v1564
        %v2351 = vpop.f32.mrb[0].mxu0
        %v2352 = vadd.f32 0.0, %v2351
        %v2353 = vpop.f32.mrb[0].mxu0
        %2354 = vmatprep.mubr.f32.mxu0 %v1570
        %2355 = vmatmul.mubr.f32.gmra.mrb[0].mxu0 %v1568
        %v2356 = vpop.f32.mrb[0].mxu0
        %v2357 = vadd.f32 0.0, %v2356
        %v2358 = vpop.f32.mrb[0].mxu0
        %2359 = vmatprep.mubr.f32.mxu0 %v1574
        %2360 = vmatmul.mubr.f32.gmra.mrb[0].mxu0 %v1572
        %v2361 = vpop.f32.mrb[0].mxu0
        %v2362 = vadd.f32 0.0, %v2361
        %v2363 = vpop.f32.mrb[0].mxu0
        %2364 = vmatprep.mubr.f32.mxu0 %v1578
        %2365 = vmatmul.mubr.f32.gmra.mrb[0].mxu0 %v1576
        %v2366 = vpop.f32.mrb[0].mxu0
        %v2367 = vadd.f32 0.0, %v2366
        %v2368 = vpop.f32.mrb[0].mxu0
        %2369 = vmatprep.mubr.f32.mxu0 %v1582
        %2370 = vmatmul.mubr.f32.gmra.mrb[0].mxu0 %v1580
        %v2371 = vpop.f32.mrb[0].mxu0
        %v2372 = vadd.f32 0.0, %v2371
        %v2373 = vpop.f32.mrb[0].mxu0
        %2374 = vmatprep.mubr.f32.mxu0 %v1586
        %2375 = vmatmul.mubr.f32.gmra.mrb[0].mxu0 %v1584
        %v2376 = vpop.f32.mrb[0].mxu0
        %v2377 = vadd.f32 0.0, %v2376
        %v2378 = vpop.f32.mrb[0].mxu0
        %2379 = vmatprep.mubr.f32.mxu0 %v1590
        %2380 = vmatmul.mubr.f32.gmra.mrb[0].mxu0 %v1588
        %v2381 = vpop.f32.mrb[0].mxu0
        %v2382 = vadd.f32 0.0, %v2381
        %v2383 = vpop.f32.mrb[0].mxu0
        %2384 = vmatprep.mubr.f32.mxu0 %v1594
        %2385 = vmatmul.mubr.f32.gmra.mrb[0].mxu0 %v1592
        %v2386 = vpop.f32.mrb[0].mxu0
        %v2387 = vadd.f32 0.0, %v2386
        %v2388 = vpop.f32.mrb[0].mxu0
        %2389 = vmatprep.mubr.f32.mxu0 %v1598
        %2390 = vmatmul.mubr.f32.gmra.mrb[0].mxu0 %v1596
        %v2391 = vpop.f32.mrb[0].mxu0
        %v2392 = vadd.f32 0.0, %v2391
        %v2393 = vpop.f32.mrb[0].mxu0
        %2394 = vmatprep.mubr.f32.mxu0 %v1602
        %2395 = vmatmul.mubr.f32.gmra.mrb[0].mxu0 %v1600
        %v2396 = vpop.f32.mrb[0].mxu0
        %v2397 = vadd.f32 0.0, %v2396
        %v2398 = vpop.f32.mrb[0].mxu0
        %2399 = vmatprep.mubr.f32.mxu0 %v1606
        %2400 = vmatmul.mubr.f32.gmra.mrb[0].mxu0 %v1604
        %v2401 = vpop.f32.mrb[0].mxu0
        %v2402 = vadd.f32 0.0, %v2401
        %v2403 = vpop.f32.mrb[0].mxu0
        %2404 = vmatprep.mubr.f32.mxu0 %v1610
        %2405 = vmatmul.mubr.f32.gmra.mrb[0].mxu0 %v1608
        %v2406 = vpop.f32.mrb[0].mxu0
        %v2407 = vadd.f32 0.0, %v2406
        %v2408 = vpop.f32.mrb[0].mxu0
        %2409 = vmatprep.mubr.f32.mxu0 %v1614
        %2410 = vmatmul.mubr.f32.gmra.mrb[0].mxu0 %v1612
        %v2411 = vpop.f32.mrb[0].mxu0
        %v2412 = vadd.f32 0.0, %v2411
        %v2413 = vpop.f32.mrb[0].mxu0
        %2414 = vmatprep.mubr.f32.mxu0 %v1618
        %2415 = vmatmul.mubr.f32.gmra.mrb[0].mxu0 %v1616
        %v2416 = vpop.f32.mrb[0].mxu0
        %v2417 = vadd.f32 0.0, %v2416
        %v2418 = vpop.f32.mrb[0].mxu0
        %2419 = vmatprep.mubr.f32.mxu0 %v1622
        %2420 = vmatmul.mubr.f32.gmra.mrb[0].mxu0 %v1620
        %v2421 = vpop.f32.mrb[0].mxu0
        %v2422 = vadd.f32 0.0, %v2421
        %v2423 = vpop.f32.mrb[0].mxu0
        %2424 = vmatprep.mubr.f32.mxu0 %v1626
        %2425 = vmatmul.mubr.f32.gmra.mrb[0].mxu0 %v1624
        %v2426 = vpop.f32.mrb[0].mxu0
        %v2427 = vadd.f32 0.0, %v2426
        %v2428 = vpop.f32.mrb[0].mxu0
        %2429 = vdwg.mxu0
        %2430 = vmatprep.subr.mxu0 0.0
        %2431 = vmatpush1.msra.mxu0 %v304
        %2432 = vmatprep.subr.mxu0 0.0
        %2433 = vmatpush1.msra.mxu0 %v305
        %2434 = vmatprep.subr.mxu0 0.0
        %2435 = vmatpush1.msra.mxu0 %v306
        %2436 = vmatprep.subr.mxu0 0.0
        %2437 = vmatpush1.msra.mxu0 %v307
        %2438 = vmatprep.subr.mxu0 0.0
        %2439 = vmatpush1.msra.mxu0 %v308
        %2440 = vmatprep.subr.mxu0 0.0
        %2441 = vmatpush1.msra.mxu0 %v309
        %2442 = vmatprep.subr.mxu0 0.0
        %2443 = vmatpush1.msra.mxu0 %v310
        %2444 = vmatprep.subr.mxu0 0.0
        %2445 = vmatpush1.msra.mxu0 %v311
        %2446 = vmatprep.subr.mxu0 0.0
        %2447 = vmatpush1.msra.mxu0 %v312
        %2448 = vmatprep.subr.mxu0 0.0
        %2449 = vmatpush1.msra.mxu0 %v313
        %2450 = vmatprep.subr.mxu0 0.0
        %2451 = vmatpush1.msra.mxu0 %v314
        %2452 = vmatprep.subr.mxu0 0.0
        %2453 = vmatpush1.msra.mxu0 %v315
        %2454 = vmatprep.subr.mxu0 0.0
        %2455 = vmatpush1.msra.mxu0 %v316
        %2456 = vmatprep.subr.mxu0 0.0
        %2457 = vmatpush1.msra.mxu0 %v317
        %2458 = vmatprep.subr.mxu0 0.0
        %2459 = vmatpush1.msra.mxu0 %v318
        %2460 = vmatprep.subr.mxu0 0.0
        %2461 = vmatpush1.msra.mxu0 %v319
        %2462 = vmatprep.subr.mxu0 0.0
        %2463 = vmatpush1.msra.mxu0 %v320
        %2464 = vmatprep.subr.mxu0 0.0
        %2465 = vmatpush1.msra.mxu0 %v321
        %2466 = vmatprep.subr.mxu0 0.0
        %2467 = vmatpush1.msra.mxu0 %v322
        %2468 = vmatprep.subr.mxu0 0.0
        %2469 = vmatpush1.msra.mxu0 %v323
        %2470 = vmatprep.subr.mxu0 0.0
        %2471 = vmatpush1.msra.mxu0 %v324
        %2472 = vmatprep.subr.mxu0 0.0
        %2473 = vmatpush1.msra.mxu0 %v325
        %2474 = vmatprep.subr.mxu0 0.0
        %2475 = vmatpush1.msra.mxu0 %v326
        %2476 = vmatprep.subr.mxu0 0.0
        %2477 = vmatpush1.msra.mxu0 %v327
        %2478 = vmatprep.subr.mxu0 0.0
        %2479 = vmatpush1.msra.mxu0 %v328
        %2480 = vmatprep.subr.mxu0 0.0
        %2481 = vmatpush1.msra.mxu0 %v329
        %2482 = vmatprep.subr.mxu0 0.0
        %2483 = vmatpush1.msra.mxu0 %v330
        %2484 = vmatprep.subr.mxu0 0.0
        %2485 = vmatpush1.msra.mxu0 %v331
        %2486 = vmatprep.subr.mxu0 0.0
        %2487 = vmatpush1.msra.mxu0 %v332
        %2488 = vmatprep.subr.mxu0 0.0
        %2489 = vmatpush1.msra.mxu0 %v333
        %2490 = vmatprep.subr.mxu0 0.0
        %2491 = vmatpush1.msra.mxu0 %v334
        %2492 = vmatprep.subr.mxu0 0.0
        %2493 = vmatpush1.msra.mxu0 %v335
        %2494 = vmatprep.mubr.f32.mxu0 %v1630
        %2495 = vmatmul.mubr.f32.gmra.mrb[0].mxu0 %v1628
        %v2496 = vpop.f32.mrb[0].mxu0
        %v2497 = vadd.f32 0.0, %v2496
        %v2498 = vpop.f32.mrb[0].mxu0
        %2499 = vmatprep.mubr.f32.mxu0 %v1634
        %2500 = vmatmul.mubr.f32.gmra.mrb[0].mxu0 %v1632
        %v2501 = vpop.f32.mrb[0].mxu0
        %v2502 = vadd.f32 0.0, %v2501
        %v2503 = vpop.f32.mrb[0].mxu0
        %2504 = vmatprep.mubr.f32.mxu0 %v1638
        %2505 = vmatmul.mubr.f32.gmra.mrb[0].mxu0 %v1636
        %v2506 = vpop.f32.mrb[0].mxu0
        %v2507 = vadd.f32 0.0, %v2506
        %v2508 = vpop.f32.mrb[0].mxu0
        %2509 = vmatprep.mubr.f32.mxu0 %v1642
        %2510 = vmatmul.mubr.f32.gmra.mrb[0].mxu0 %v1640
        %v2511 = vpop.f32.mrb[0].mxu0
        %v2512 = vadd.f32 0.0, %v2511
        %v2513 = vpop.f32.mrb[0].mxu0
        %2514 = vmatprep.mubr.f32.mxu0 %v1646
        %2515 = vmatmul.mubr.f32.gmra.mrb[0].mxu0 %v1644
        %v2516 = vpop.f32.mrb[0].mxu0
        %v2517 = vadd.f32 0.0, %v2516
        %v2518 = vpop.f32.mrb[0].mxu0
        %2519 = vmatprep.mubr.f32.mxu0 %v1650
        %2520 = vmatmul.mubr.f32.gmra.mrb[0].mxu0 %v1648
        %v2521 = vpop.f32.mrb[0].mxu0
        %v2522 = vadd.f32 0.0, %v2521
        %v2523 = vpop.f32.mrb[0].mxu0
        %2524 = vmatprep.mubr.f32.mxu0 %v1654
        %2525 = vmatmul.mubr.f32.gmra.mrb[0].mxu0 %v1652
        %v2526 = vpop.f32.mrb[0].mxu0
        %v2527 = vadd.f32 0.0, %v2526
        %v2528 = vpop.f32.mrb[0].mxu0
        %2529 = vmatprep.mubr.f32.mxu0 %v1658
        %2530 = vmatmul.mubr.f32.gmra.mrb[0].mxu0 %v1656
        %v2531 = vpop.f32.mrb[0].mxu0
        %v2532 = vadd.f32 0.0, %v2531
        %v2533 = vpop.f32.mrb[0].mxu0
        %2534 = vmatprep.mubr.f32.mxu0 %v1662
        %2535 = vmatmul.mubr.f32.gmra.mrb[0].mxu0 %v1660
        %v2536 = vpop.f32.mrb[0].mxu0
        %v2537 = vadd.f32 0.0, %v2536
        %v2538 = vpop.f32.mrb[0].mxu0
        %2539 = vmatprep.mubr.f32.mxu0 %v1666
        %2540 = vmatmul.mubr.f32.gmra.mrb[0].mxu0 %v1664
        %v2541 = vpop.f32.mrb[0].mxu0
        %v2542 = vadd.f32 0.0, %v2541
        %v2543 = vpop.f32.mrb[0].mxu0
        %2544 = vmatprep.mubr.f32.mxu0 %v1670
        %2545 = vmatmul.mubr.f32.gmra.mrb[0].mxu0 %v1668
        %v2546 = vpop.f32.mrb[0].mxu0
        %v2547 = vadd.f32 0.0, %v2546
        %v2548 = vpop.f32.mrb[0].mxu0
        %2549 = vmatprep.mubr.f32.mxu0 %v1674
        %2550 = vmatmul.mubr.f32.gmra.mrb[0].mxu0 %v1672
        %v2551 = vpop.f32.mrb[0].mxu0
        %v2552 = vadd.f32 0.0, %v2551
        %v2553 = vpop.f32.mrb[0].mxu0
        %2554 = vmatprep.mubr.f32.mxu0 %v1678
        %2555 = vmatmul.mubr.f32.gmra.mrb[0].mxu0 %v1676
        %v2556 = vpop.f32.mrb[0].mxu0
        %v2557 = vadd.f32 0.0, %v2556
        %v2558 = vpop.f32.mrb[0].mxu0
        %2559 = vmatprep.mubr.f32.mxu0 %v1682
        %2560 = vmatmul.mubr.f32.gmra.mrb[0].mxu0 %v1680
        %v2561 = vpop.f32.mrb[0].mxu0
        %v2562 = vadd.f32 0.0, %v2561
        %v2563 = vpop.f32.mrb[0].mxu0
        %2564 = vmatprep.mubr.f32.mxu0 %v1686
        %2565 = vmatmul.mubr.f32.gmra.mrb[0].mxu0 %v1684
        %v2566 = vpop.f32.mrb[0].mxu0
        %v2567 = vadd.f32 0.0, %v2566
        %v2568 = vpop.f32.mrb[0].mxu0
        %2569 = vmatprep.mubr.f32.mxu0 %v1690
        %2570 = vmatmul.mubr.f32.gmra.mrb[0].mxu0 %v1688
        %v2571 = vpop.f32.mrb[0].mxu0
        %v2572 = vadd.f32 0.0, %v2571
        %v2573 = vpop.f32.mrb[0].mxu0
        %2574 = vmatprep.mubr.f32.mxu0 %v1694
        %2575 = vmatmul.mubr.f32.gmra.mrb[0].mxu0 %v1692
        %v2576 = vpop.f32.mrb[0].mxu0
        %v2577 = vadd.f32 0.0, %v2576
        %v2578 = vpop.f32.mrb[0].mxu0
        %2579 = vmatprep.mubr.f32.mxu0 %v1698
        %2580 = vmatmul.mubr.f32.gmra.mrb[0].mxu0 %v1696
        %v2581 = vpop.f32.mrb[0].mxu0
        %v2582 = vadd.f32 0.0, %v2581
        %v2583 = vpop.f32.mrb[0].mxu0
        %2584 = vmatprep.mubr.f32.mxu0 %v1702
        %2585 = vmatmul.mubr.f32.gmra.mrb[0].mxu0 %v1700
        %v2586 = vpop.f32.mrb[0].mxu0
        %v2587 = vadd.f32 0.0, %v2586
        %v2588 = vpop.f32.mrb[0].mxu0
        %2589 = vmatprep.mubr.f32.mxu0 %v1706
        %2590 = vmatmul.mubr.f32.gmra.mrb[0].mxu0 %v1704
        %v2591 = vpop.f32.mrb[0].mxu0
        %v2592 = vadd.f32 0.0, %v2591
        %v2593 = vpop.f32.mrb[0].mxu0
        %2594 = vmatprep.mubr.f32.mxu0 %v1710
        %2595 = vmatmul.mubr.f32.gmra.mrb[0].mxu0 %v1708
        %v2596 = vpop.f32.mrb[0].mxu0
        %v2597 = vadd.f32 0.0, %v2596
        %v2598 = vpop.f32.mrb[0].mxu0
        %2599 = vmatprep.mubr.f32.mxu0 %v1714
        %2600 = vmatmul.mubr.f32.gmra.mrb[0].mxu0 %v1712
        %v2601 = vpop.f32.mrb[0].mxu0
        %v2602 = vadd.f32 0.0, %v2601
        %v2603 = vpop.f32.mrb[0].mxu0
        %2604 = vmatprep.mubr.f32.mxu0 %v1718
        %2605 = vmatmul.mubr.f32.gmra.mrb[0].mxu0 %v1716
        %v2606 = vpop.f32.mrb[0].mxu0
        %v2607 = vadd.f32 0.0, %v2606
        %v2608 = vpop.f32.mrb[0].mxu0
        %2609 = vmatprep.mubr.f32.mxu0 %v1722
        %2610 = vmatmul.mubr.f32.gmra.mrb[0].mxu0 %v1720
        %v2611 = vpop.f32.mrb[0].mxu0
        %v2612 = vadd.f32 0.0, %v2611
        %v2613 = vpop.f32.mrb[0].mxu0
        %2614 = vmatprep.mubr.f32.mxu0 %v1726
        %2615 = vmatmul.mubr.f32.gmra.mrb[0].mxu0 %v1724
        %v2616 = vpop.f32.mrb[0].mxu0
        %v2617 = vadd.f32 0.0, %v2616
        %v2618 = vpop.f32.mrb[0].mxu0
        %2619 = vmatprep.mubr.f32.mxu0 %v1730
        %2620 = vmatmul.mubr.f32.gmra.mrb[0].mxu0 %v1728
        %v2621 = vpop.f32.mrb[0].mxu0
        %v2622 = vadd.f32 0.0, %v2621
        %v2623 = vpop.f32.mrb[0].mxu0
        %2624 = vmatprep.mubr.f32.mxu0 %v1734
        %2625 = vmatmul.mubr.f32.gmra.mrb[0].mxu0 %v1732
        %v2626 = vpop.f32.mrb[0].mxu0
        %v2627 = vadd.f32 0.0, %v2626
        %v2628 = vpop.f32.mrb[0].mxu0
        %2629 = vmatprep.mubr.f32.mxu0 %v1738
        %2630 = vmatmul.mubr.f32.gmra.mrb[0].mxu0 %v1736
        %v2631 = vpop.f32.mrb[0].mxu0
        %v2632 = vadd.f32 0.0, %v2631
        %v2633 = vpop.f32.mrb[0].mxu0
        %2634 = vmatprep.mubr.f32.mxu0 %v1742
        %2635 = vmatmul.mubr.f32.gmra.mrb[0].mxu0 %v1740
        %v2636 = vpop.f32.mrb[0].mxu0
        %v2637 = vadd.f32 0.0, %v2636
        %v2638 = vpop.f32.mrb[0].mxu0
        %2639 = vmatprep.mubr.f32.mxu0 %v1746
        %2640 = vmatmul.mubr.f32.gmra.mrb[0].mxu0 %v1744
        %v2641 = vpop.f32.mrb[0].mxu0
        %v2642 = vadd.f32 0.0, %v2641
        %v2643 = vpop.f32.mrb[0].mxu0
        %2644 = vmatprep.mubr.f32.mxu0 %v1750
        %2645 = vmatmul.mubr.f32.gmra.mrb[0].mxu0 %v1748
        %v2646 = vpop.f32.mrb[0].mxu0
        %v2647 = vadd.f32 0.0, %v2646
        %v2648 = vpop.f32.mrb[0].mxu0
        %2649 = vmatprep.mubr.f32.mxu0 %v1754
        %2650 = vmatmul.mubr.f32.gmra.mrb[0].mxu0 %v1752
        %v2651 = vpop.f32.mrb[0].mxu0
        %v2652 = vadd.f32 0.0, %v2651
        %v2653 = vpop.f32.mrb[0].mxu0
        %2654 = vdwg.mxu0
        %v2655 = vrcp.pop %v1822
        %v2656 = vrcp.pop %v1827
        %v2657 = vrcp.pop %v1832
        %v2658 = vrcp.pop %v1837
        %v2659 = vrcp.pop %v1842
        %v2660 = vrcp.pop %v1847
        %v2661 = vrcp.pop %v1852
        %v2662 = vrcp.pop %v1857
        %v2663 = vrcp.pop %v1862
        %v2664 = vrcp.pop %v1867
        %v2665 = vrcp.pop %v1872
        %v2666 = vrcp.pop %v1877
        %v2667 = vrcp.pop %v1882
        %v2668 = vrcp.pop %v1887
        %v2669 = vrcp.pop %v1892
        %v2670 = vrcp.pop %v1897
        %v2671 = vrcp.pop %v1902
        %v2672 = vrcp.pop %v1907
        %v2673 = vrcp.pop %v1912
        %v2674 = vrcp.pop %v1917
        %v2675 = vrcp.pop %v1922
        %v2676 = vrcp.pop %v1927
        %v2677 = vrcp.pop %v1932
        %v2678 = vrcp.pop %v1937
        %v2679 = vrcp.pop %v1942
        %v2680 = vrcp.pop %v1947
        %v2681 = vrcp.pop %v1952
        %v2682 = vrcp.pop %v1957
        %v2683 = vrcp.pop %v1962
        %v2684 = vrcp.pop %v1967
        %v2685 = vrcp.pop %v1972
        %v2686 = vrcp.pop %v1977
        %v2687 = vrcp.pop %v2047
        %v2688 = vrcp.pop %v2052
        %v2689 = vrcp.pop %v2057
        %v2690 = vrcp.pop %v2062
        %v2691 = vrcp.pop %v2067
        %v2692 = vrcp.pop %v2072
        %v2693 = vrcp.pop %v2077
        %v2694 = vrcp.pop %v2082
        %v2695 = vrcp.pop %v2087
        %v2696 = vrcp.pop %v2092
        %v2697 = vrcp.pop %v2097
        %v2698 = vrcp.pop %v2102
        %v2699 = vrcp.pop %v2107
        %v2700 = vrcp.pop %v2112
        %v2701 = vrcp.pop %v2117
        %v2702 = vrcp.pop %v2122
        %v2703 = vrcp.pop %v2127
        %v2704 = vrcp.pop %v2132
        %v2705 = vrcp.pop %v2137
        %v2706 = vrcp.pop %v2142
        %v2707 = vrcp.pop %v2147
        %v2708 = vrcp.pop %v2152
        %v2709 = vrcp.pop %v2157
        %v2710 = vrcp.pop %v2162
        %v2711 = vrcp.pop %v2167
        %v2712 = vrcp.pop %v2172
        %v2713 = vrcp.pop %v2177
        %v2714 = vrcp.pop %v2182
        %v2715 = vrcp.pop %v2187
        %v2716 = vrcp.pop %v2192
        %v2717 = vrcp.pop %v2197
        %v2718 = vrcp.pop %v2202
        %2720 = vset.pattern.permute.xlu0 0
        %2721 = vperm.xlu0 %2720, %v2655
        %v2722 = vpop.permute.xlu0 %2721
        %2725 = vset.pattern.permute.xlu0 0
        %2726 = vperm.xlu0 %2725, %v2656
        %v2727 = vpop.permute.xlu0 %2726
        %2730 = vset.pattern.permute.xlu0 0
        %2731 = vperm.xlu0 %2730, %v2657
        %v2732 = vpop.permute.xlu0 %2731
        %2735 = vset.pattern.permute.xlu0 0
        %2736 = vperm.xlu0 %2735, %v2658
        %v2737 = vpop.permute.xlu0 %2736
        %2740 = vset.pattern.permute.xlu0 0
        %2741 = vperm.xlu0 %2740, %v2659
        %v2742 = vpop.permute.xlu0 %2741
        %2745 = vset.pattern.permute.xlu0 0
        %2746 = vperm.xlu0 %2745, %v2660
        %v2747 = vpop.permute.xlu0 %2746
        %2750 = vset.pattern.permute.xlu0 0
        %2751 = vperm.xlu0 %2750, %v2661
        %v2752 = vpop.permute.xlu0 %2751
        %2755 = vset.pattern.permute.xlu0 0
        %2756 = vperm.xlu0 %2755, %v2662
        %v2757 = vpop.permute.xlu0 %2756
        %2760 = vset.pattern.permute.xlu0 0
        %2761 = vperm.xlu0 %2760, %v2663
        %v2762 = vpop.permute.xlu0 %2761
        %2765 = vset.pattern.permute.xlu0 0
        %2766 = vperm.xlu0 %2765, %v2664
        %v2767 = vpop.permute.xlu0 %2766
        %2770 = vset.pattern.permute.xlu0 0
        %2771 = vperm.xlu0 %2770, %v2665
        %v2772 = vpop.permute.xlu0 %2771
        %2775 = vset.pattern.permute.xlu0 0
        %2776 = vperm.xlu0 %2775, %v2666
        %v2777 = vpop.permute.xlu0 %2776
        %2780 = vset.pattern.permute.xlu0 0
        %2781 = vperm.xlu0 %2780, %v2667
        %v2782 = vpop.permute.xlu0 %2781
        %2785 = vset.pattern.permute.xlu0 0
        %2786 = vperm.xlu0 %2785, %v2668
        %v2787 = vpop.permute.xlu0 %2786
        %2790 = vset.pattern.permute.xlu0 0
        %2791 = vperm.xlu0 %2790, %v2669
        %v2792 = vpop.permute.xlu0 %2791
        %2795 = vset.pattern.permute.xlu0 0
        %2796 = vperm.xlu0 %2795, %v2670
        %v2797 = vpop.permute.xlu0 %2796
        %2800 = vset.pattern.permute.xlu0 0
        %2801 = vperm.xlu0 %2800, %v2671
        %v2802 = vpop.permute.xlu0 %2801
        %2805 = vset.pattern.permute.xlu0 0
        %2806 = vperm.xlu0 %2805, %v2672
        %v2807 = vpop.permute.xlu0 %2806
        %2810 = vset.pattern.permute.xlu0 0
        %2811 = vperm.xlu0 %2810, %v2673
        %v2812 = vpop.permute.xlu0 %2811
        %2815 = vset.pattern.permute.xlu0 0
        %2816 = vperm.xlu0 %2815, %v2674
        %v2817 = vpop.permute.xlu0 %2816
        %2820 = vset.pattern.permute.xlu0 0
        %2821 = vperm.xlu0 %2820, %v2675
        %v2822 = vpop.permute.xlu0 %2821
        %2825 = vset.pattern.permute.xlu0 0
        %2826 = vperm.xlu0 %2825, %v2676
        %v2827 = vpop.permute.xlu0 %2826
        %2830 = vset.pattern.permute.xlu0 0
        %2831 = vperm.xlu0 %2830, %v2677
        %v2832 = vpop.permute.xlu0 %2831
        %2835 = vset.pattern.permute.xlu0 0
        %2836 = vperm.xlu0 %2835, %v2678
        %v2837 = vpop.permute.xlu0 %2836
        %2840 = vset.pattern.permute.xlu0 0
        %2841 = vperm.xlu0 %2840, %v2679
        %v2842 = vpop.permute.xlu0 %2841
        %2845 = vset.pattern.permute.xlu0 0
        %2846 = vperm.xlu0 %2845, %v2680
        %v2847 = vpop.permute.xlu0 %2846
        %2850 = vset.pattern.permute.xlu0 0
        %2851 = vperm.xlu0 %2850, %v2681
        %v2852 = vpop.permute.xlu0 %2851
        %2855 = vset.pattern.permute.xlu0 0
        %2856 = vperm.xlu0 %2855, %v2682
        %v2857 = vpop.permute.xlu0 %2856
        %2860 = vset.pattern.permute.xlu0 0
        %2861 = vperm.xlu0 %2860, %v2683
        %v2862 = vpop.permute.xlu0 %2861
        %2865 = vset.pattern.permute.xlu0 0
        %2866 = vperm.xlu0 %2865, %v2684
        %v2867 = vpop.permute.xlu0 %2866
        %2870 = vset.pattern.permute.xlu0 0
        %2871 = vperm.xlu0 %2870, %v2685
        %v2872 = vpop.permute.xlu0 %2871
        %2875 = vset.pattern.permute.xlu0 0
        %2876 = vperm.xlu0 %2875, %v2686
        %v2877 = vpop.permute.xlu0 %2876
        %2880 = vset.pattern.permute.xlu0 0
        %2881 = vperm.xlu0 %2880, %v2687
        %v2882 = vpop.permute.xlu0 %2881
        %2885 = vset.pattern.permute.xlu0 0
        %2886 = vperm.xlu0 %2885, %v2688
        %v2887 = vpop.permute.xlu0 %2886
        %2890 = vset.pattern.permute.xlu0 0
        %2891 = vperm.xlu0 %2890, %v2689
        %v2892 = vpop.permute.xlu0 %2891
        %2895 = vset.pattern.permute.xlu0 0
        %2896 = vperm.xlu0 %2895, %v2690
        %v2897 = vpop.permute.xlu0 %2896
        %2900 = vset.pattern.permute.xlu0 0
        %2901 = vperm.xlu0 %2900, %v2691
        %v2902 = vpop.permute.xlu0 %2901
        %2905 = vset.pattern.permute.xlu0 0
        %2906 = vperm.xlu0 %2905, %v2692
        %v2907 = vpop.permute.xlu0 %2906
        %2910 = vset.pattern.permute.xlu0 0
        %2911 = vperm.xlu0 %2910, %v2693
        %v2912 = vpop.permute.xlu0 %2911
        %2915 = vset.pattern.permute.xlu0 0
        %2916 = vperm.xlu0 %2915, %v2694
        %v2917 = vpop.permute.xlu0 %2916
        %2920 = vset.pattern.permute.xlu0 0
        %2921 = vperm.xlu0 %2920, %v2695
        %v2922 = vpop.permute.xlu0 %2921
        %2925 = vset.pattern.permute.xlu0 0
        %2926 = vperm.xlu0 %2925, %v2696
        %v2927 = vpop.permute.xlu0 %2926
        %2930 = vset.pattern.permute.xlu0 0
        %2931 = vperm.xlu0 %2930, %v2697
        %v2932 = vpop.permute.xlu0 %2931
        %2935 = vset.pattern.permute.xlu0 0
        %2936 = vperm.xlu0 %2935, %v2698
        %v2937 = vpop.permute.xlu0 %2936
        %2940 = vset.pattern.permute.xlu0 0
        %2941 = vperm.xlu0 %2940, %v2699
        %v2942 = vpop.permute.xlu0 %2941
        %2945 = vset.pattern.permute.xlu0 0
        %2946 = vperm.xlu0 %2945, %v2700
        %v2947 = vpop.permute.xlu0 %2946
        %2950 = vset.pattern.permute.xlu0 0
        %2951 = vperm.xlu0 %2950, %v2701
        %v2952 = vpop.permute.xlu0 %2951
        %2955 = vset.pattern.permute.xlu0 0
        %2956 = vperm.xlu0 %2955, %v2702
        %v2957 = vpop.permute.xlu0 %2956
        %2960 = vset.pattern.permute.xlu0 0
        %2961 = vperm.xlu0 %2960, %v2703
        %v2962 = vpop.permute.xlu0 %2961
        %2965 = vset.pattern.permute.xlu0 0
        %2966 = vperm.xlu0 %2965, %v2704
        %v2967 = vpop.permute.xlu0 %2966
        %2970 = vset.pattern.permute.xlu0 0
        %2971 = vperm.xlu0 %2970, %v2705
        %v2972 = vpop.permute.xlu0 %2971
        %2975 = vset.pattern.permute.xlu0 0
        %2976 = vperm.xlu0 %2975, %v2706
        %v2977 = vpop.permute.xlu0 %2976
        %2980 = vset.pattern.permute.xlu0 0
        %2981 = vperm.xlu0 %2980, %v2707
        %v2982 = vpop.permute.xlu0 %2981
        %2985 = vset.pattern.permute.xlu0 0
        %2986 = vperm.xlu0 %2985, %v2708
        %v2987 = vpop.permute.xlu0 %2986
        %2990 = vset.pattern.permute.xlu0 0
        %2991 = vperm.xlu0 %2990, %v2709
        %v2992 = vpop.permute.xlu0 %2991
        %2995 = vset.pattern.permute.xlu0 0
        %2996 = vperm.xlu0 %2995, %v2710
        %v2997 = vpop.permute.xlu0 %2996
        %3000 = vset.pattern.permute.xlu0 0
        %3001 = vperm.xlu0 %3000, %v2711
        %v3002 = vpop.permute.xlu0 %3001
        %3005 = vset.pattern.permute.xlu0 0
        %3006 = vperm.xlu0 %3005, %v2712
        %v3007 = vpop.permute.xlu0 %3006
        %3010 = vset.pattern.permute.xlu0 0
        %3011 = vperm.xlu0 %3010, %v2713
        %v3012 = vpop.permute.xlu0 %3011
        %3015 = vset.pattern.permute.xlu0 0
        %3016 = vperm.xlu0 %3015, %v2714
        %v3017 = vpop.permute.xlu0 %3016
        %3020 = vset.pattern.permute.xlu0 0
        %3021 = vperm.xlu0 %3020, %v2715
        %v3022 = vpop.permute.xlu0 %3021
        %3025 = vset.pattern.permute.xlu0 0
        %3026 = vperm.xlu0 %3025, %v2716
        %v3027 = vpop.permute.xlu0 %3026
        %3030 = vset.pattern.permute.xlu0 0
        %3031 = vperm.xlu0 %3030, %v2717
        %v3032 = vpop.permute.xlu0 %3031
        %3035 = vset.pattern.permute.xlu0 0
        %3036 = vperm.xlu0 %3035, %v2718
        %v3037 = vpop.permute.xlu0 %3036
        %v3039 = vmul.f32 %v2272, %v2722
        %v3040 = vmul.f32 %v2277, %v2727
        %v3041 = vmul.f32 %v2282, %v2732
        %v3042 = vmul.f32 %v2287, %v2737
        %v3043 = vmul.f32 %v2292, %v2742
        %v3044 = vmul.f32 %v2297, %v2747
        %v3045 = vmul.f32 %v2302, %v2752
        %v3046 = vmul.f32 %v2307, %v2757
        %v3047 = vmul.f32 %v2312, %v2762
        %v3048 = vmul.f32 %v2317, %v2767
        %v3049 = vmul.f32 %v2322, %v2772
        %v3050 = vmul.f32 %v2327, %v2777
        %v3051 = vmul.f32 %v2332, %v2782
        %v3052 = vmul.f32 %v2337, %v2787
        %v3053 = vmul.f32 %v2342, %v2792
        %v3054 = vmul.f32 %v2347, %v2797
        %v3055 = vmul.f32 %v2352, %v2802
        %v3056 = vmul.f32 %v2357, %v2807
        %v3057 = vmul.f32 %v2362, %v2812
        %v3058 = vmul.f32 %v2367, %v2817
        %v3059 = vmul.f32 %v2372, %v2822
        %v3060 = vmul.f32 %v2377, %v2827
        %v3061 = vmul.f32 %v2382, %v2832
        %v3062 = vmul.f32 %v2387, %v2837
        %v3063 = vmul.f32 %v2392, %v2842
        %v3064 = vmul.f32 %v2397, %v2847
        %v3065 = vmul.f32 %v2402, %v2852
        %v3066 = vmul.f32 %v2407, %v2857
        %v3067 = vmul.f32 %v2412, %v2862
        %v3068 = vmul.f32 %v2417, %v2867
        %v3069 = vmul.f32 %v2422, %v2872
        %v3070 = vmul.f32 %v2427, %v2877
        %v3071 = vmul.f32 %v2497, %v2882
        %v3072 = vmul.f32 %v2502, %v2887
        %v3073 = vmul.f32 %v2507, %v2892
        %v3074 = vmul.f32 %v2512, %v2897
        %v3075 = vmul.f32 %v2517, %v2902
        %v3076 = vmul.f32 %v2522, %v2907
        %v3077 = vmul.f32 %v2527, %v2912
        %v3078 = vmul.f32 %v2532, %v2917
        %v3079 = vmul.f32 %v2537, %v2922
        %v3080 = vmul.f32 %v2542, %v2927
        %v3081 = vmul.f32 %v2547, %v2932
        %v3082 = vmul.f32 %v2552, %v2937
        %v3083 = vmul.f32 %v2557, %v2942
        %v3084 = vmul.f32 %v2562, %v2947
        %v3085 = vmul.f32 %v2567, %v2952
        %v3086 = vmul.f32 %v2572, %v2957
        %v3087 = vmul.f32 %v2577, %v2962
        %v3088 = vmul.f32 %v2582, %v2967
        %v3089 = vmul.f32 %v2587, %v2972
        %v3090 = vmul.f32 %v2592, %v2977
        %v3091 = vmul.f32 %v2597, %v2982
        %v3092 = vmul.f32 %v2602, %v2987
        %v3093 = vmul.f32 %v2607, %v2992
        %v3094 = vmul.f32 %v2612, %v2997
        %v3095 = vmul.f32 %v2617, %v3002
        %v3096 = vmul.f32 %v2622, %v3007
        %v3097 = vmul.f32 %v2627, %v3012
        %v3098 = vmul.f32 %v2632, %v3017
        %v3099 = vmul.f32 %v2637, %v3022
        %v3100 = vmul.f32 %v2642, %v3027
        %v3101 = vmul.f32 %v2647, %v3032
        %v3102 = vmul.f32 %v2652, %v3037
        %3103 = vxpose.xlu0.b32.start [1/16] %v3039, 128
        %3104 = vxpose.xlu0.b32.cont [2/16] %v3040, 128
        %3105 = vxpose.xlu0.b32.cont [3/16] %v3041, 128
        %3106 = vxpose.xlu0.b32.cont [4/16] %v3042, 128
        %3107 = vxpose.xlu0.b32.cont [5/16] %v3043, 128
        %3108 = vxpose.xlu0.b32.cont [6/16] %v3044, 128
        %3109 = vxpose.xlu0.b32.cont [7/16] %v3045, 128
        %3110 = vxpose.xlu0.b32.cont [8/16] %v3046, 128
        %3111 = vxpose.xlu0.b32.cont [9/16] %v3047, 128
        %3112 = vxpose.xlu0.b32.cont [10/16] %v3048, 128
        %3113 = vxpose.xlu0.b32.cont [11/16] %v3049, 128
        %3114 = vxpose.xlu0.b32.cont [12/16] %v3050, 128
        %3115 = vxpose.xlu0.b32.cont [13/16] %v3051, 128
        %3116 = vxpose.xlu0.b32.cont [14/16] %v3052, 128
        %3117 = vxpose.xlu0.b32.cont [15/16] %v3053, 128
        %3118 = vxpose.xlu0.b32.end [16/16] %v3054, 128
        %v3119 = vpop.trf.xlu0
        %v3120 = vpop.trf.xlu0
        %v3121 = vpop.trf.xlu0
        %v3122 = vpop.trf.xlu0
        %v3123 = vpop.trf.xlu0
        %v3124 = vpop.trf.xlu0
        %v3125 = vpop.trf.xlu0
        %v3126 = vpop.trf.xlu0
        %v3127 = vpop.trf.xlu0
        %v3128 = vpop.trf.xlu0
        %v3129 = vpop.trf.xlu0
        %v3130 = vpop.trf.xlu0
        %v3131 = vpop.trf.xlu0
        %v3132 = vpop.trf.xlu0
        %v3133 = vpop.trf.xlu0
        %v3134 = vpop.trf.xlu0
        %3135 = vxpose.xlu0.b32.start [1/16] %v3055, 128
        %3136 = vxpose.xlu0.b32.cont [2/16] %v3056, 128
        %3137 = vxpose.xlu0.b32.cont [3/16] %v3057, 128
        %3138 = vxpose.xlu0.b32.cont [4/16] %v3058, 128
        %3139 = vxpose.xlu0.b32.cont [5/16] %v3059, 128
        %3140 = vxpose.xlu0.b32.cont [6/16] %v3060, 128
        %3141 = vxpose.xlu0.b32.cont [7/16] %v3061, 128
        %3142 = vxpose.xlu0.b32.cont [8/16] %v3062, 128
        %3143 = vxpose.xlu0.b32.cont [9/16] %v3063, 128
        %3144 = vxpose.xlu0.b32.cont [10/16] %v3064, 128
        %3145 = vxpose.xlu0.b32.cont [11/16] %v3065, 128
        %3146 = vxpose.xlu0.b32.cont [12/16] %v3066, 128
        %3147 = vxpose.xlu0.b32.cont [13/16] %v3067, 128
        %3148 = vxpose.xlu0.b32.cont [14/16] %v3068, 128
        %3149 = vxpose.xlu0.b32.cont [15/16] %v3069, 128
        %3150 = vxpose.xlu0.b32.end [16/16] %v3070, 128
        %v3151 = vpop.trf.xlu0
        %v3152 = vpop.trf.xlu0
        %v3153 = vpop.trf.xlu0
        %v3154 = vpop.trf.xlu0
        %v3155 = vpop.trf.xlu0
        %v3156 = vpop.trf.xlu0
        %v3157 = vpop.trf.xlu0
        %v3158 = vpop.trf.xlu0
        %v3159 = vpop.trf.xlu0
        %v3160 = vpop.trf.xlu0
        %v3161 = vpop.trf.xlu0
        %v3162 = vpop.trf.xlu0
        %v3163 = vpop.trf.xlu0
        %v3164 = vpop.trf.xlu0
        %v3165 = vpop.trf.xlu0
        %v3166 = vpop.trf.xlu0
        %3167 = vxpose.xlu0.b32.start [1/16] %v3071, 128
        %3168 = vxpose.xlu0.b32.cont [2/16] %v3072, 128
        %3169 = vxpose.xlu0.b32.cont [3/16] %v3073, 128
        %3170 = vxpose.xlu0.b32.cont [4/16] %v3074, 128
        %3171 = vxpose.xlu0.b32.cont [5/16] %v3075, 128
        %3172 = vxpose.xlu0.b32.cont [6/16] %v3076, 128
        %3173 = vxpose.xlu0.b32.cont [7/16] %v3077, 128
        %3174 = vxpose.xlu0.b32.cont [8/16] %v3078, 128
        %3175 = vxpose.xlu0.b32.cont [9/16] %v3079, 128
        %3176 = vxpose.xlu0.b32.cont [10/16] %v3080, 128
        %3177 = vxpose.xlu0.b32.cont [11/16] %v3081, 128
        %3178 = vxpose.xlu0.b32.cont [12/16] %v3082, 128
        %3179 = vxpose.xlu0.b32.cont [13/16] %v3083, 128
        %3180 = vxpose.xlu0.b32.cont [14/16] %v3084, 128
        %3181 = vxpose.xlu0.b32.cont [15/16] %v3085, 128
        %3182 = vxpose.xlu0.b32.end [16/16] %v3086, 128
        %v3183 = vpop.trf.xlu0
        %v3184 = vpop.trf.xlu0
        %v3185 = vpop.trf.xlu0
        %v3186 = vpop.trf.xlu0
        %v3187 = vpop.trf.xlu0
        %v3188 = vpop.trf.xlu0
        %v3189 = vpop.trf.xlu0
        %v3190 = vpop.trf.xlu0
        %v3191 = vpop.trf.xlu0
        %v3192 = vpop.trf.xlu0
        %v3193 = vpop.trf.xlu0
        %v3194 = vpop.trf.xlu0
        %v3195 = vpop.trf.xlu0
        %v3196 = vpop.trf.xlu0
        %v3197 = vpop.trf.xlu0
        %v3198 = vpop.trf.xlu0
        %3199 = vxpose.xlu0.b32.start [1/16] %v3087, 128
        %3200 = vxpose.xlu0.b32.cont [2/16] %v3088, 128
        %3201 = vxpose.xlu0.b32.cont [3/16] %v3089, 128
        %3202 = vxpose.xlu0.b32.cont [4/16] %v3090, 128
        %3203 = vxpose.xlu0.b32.cont [5/16] %v3091, 128
        %3204 = vxpose.xlu0.b32.cont [6/16] %v3092, 128
        %3205 = vxpose.xlu0.b32.cont [7/16] %v3093, 128
        %3206 = vxpose.xlu0.b32.cont [8/16] %v3094, 128
        %3207 = vxpose.xlu0.b32.cont [9/16] %v3095, 128
        %3208 = vxpose.xlu0.b32.cont [10/16] %v3096, 128
        %3209 = vxpose.xlu0.b32.cont [11/16] %v3097, 128
        %3210 = vxpose.xlu0.b32.cont [12/16] %v3098, 128
        %3211 = vxpose.xlu0.b32.cont [13/16] %v3099, 128
        %3212 = vxpose.xlu0.b32.cont [14/16] %v3100, 128
        %3213 = vxpose.xlu0.b32.cont [15/16] %v3101, 128
        %3214 = vxpose.xlu0.b32.end [16/16] %v3102, 128
        %v3215 = vpop.trf.xlu0
        %v3216 = vpop.trf.xlu0
        %v3217 = vpop.trf.xlu0
        %v3218 = vpop.trf.xlu0
        %v3219 = vpop.trf.xlu0
        %v3220 = vpop.trf.xlu0
        %v3221 = vpop.trf.xlu0
        %v3222 = vpop.trf.xlu0
        %v3223 = vpop.trf.xlu0
        %v3224 = vpop.trf.xlu0
        %v3225 = vpop.trf.xlu0
        %v3226 = vpop.trf.xlu0
        %v3227 = vpop.trf.xlu0
        %v3228 = vpop.trf.xlu0
        %v3229 = vpop.trf.xlu0
        %v3230 = vpop.trf.xlu0
        %3231 = vst [vmem:[%s227] sm:$0xff] %v3119
        %3232 = vst [vmem:[%s227 + $0x8] sm:$0xff] %v3151
        %3233 = vst [vmem:[%s227 + $0x10] sm:$0xff] %v3120
        %3234 = vst [vmem:[%s227 + $0x18] sm:$0xff] %v3152
        %3235 = vst [vmem:[%s227 + $0x20] sm:$0xff] %v3183
        %3236 = vst [vmem:[%s227 + $0x28] sm:$0xff] %v3215
        %3237 = vst [vmem:[%s227 + $0x30] sm:$0xff] %v3184
        %3238 = vst [vmem:[%s227 + $0x38] sm:$0xff] %v3216
        %s3239 = sand.u32 %s119, 1
        %s3240 = scalar_lea.sflag [#allocation3], %s3239
        %s3241 = sand.u32 %s119, 1
        %s3242 = smul.addr %s3241, 64
        %s3243 = scalar_lea.vmem [#allocation2], %s3242
        // Predicated region
        $region33: #{tpu_custom_call.1} parent=31 // pred_check
          %p3244 = pneg %p129
        $region34: #{tpu_custom_call.1} parent=31 // pred_check_branch
          %3246 = sbr.rel (%p3244) target = $region36
        $region35: #{tpu_custom_call.1} parent=31 // pred_region
          %s3247 = smul.u32 2, %s21
          %s3248 = smul.u32 2, %s22
          %s3250 = ssub.s32 1024, 1024
          %3251 = vsyncadd %s3240, %s3250
          %s3252 = smul.addr %s3247, 4
          %s3253 = sadd.s32 %s3248, %s3252
          %s3254 = smul.addr %s3253, 128
          %s3255 = scalar_lea.hbm %s3, %s3254
          %s3256 = sshll.u32 %s3243, 4
          %s3257 = int_to_ptr.vmem [resolvable:$true] %s3256
          %3262 = dma.vmem_to_hbm [thread:$0]  %s3257, 1024, %s3255, %s3240, 256, 256, 16
        $region36: #{tpu_custom_call.1} parent=31 // pred_fallthru
          _
      $region32: #{tpu_custom_call.1} parent=5 // pred_fallthru
        _
      %p3263 = scmp.le.s32.totalorder 2, %s12
      // Predicated region
      $region37: #{tpu_custom_call.1} parent=5 // pred_check
        %p3264 = pneg %p3263
      $region38: #{tpu_custom_call.1} parent=5 // pred_check_branch
        %3266 = sbr.rel (%p3264) target = $region40
      $region39: #{tpu_custom_call.1} parent=5 // pred_region
        %s3267 = ssub.s32 %s12, 2
        // Predicated region
        $region41: #{tpu_custom_call.1} parent=39 // pred_check
          %p3268 = pneg %p135
        $region42: #{tpu_custom_call.1} parent=39 // pred_check_branch
          %3270 = sbr.rel (%p3268) target = $region44
        $region43: #{tpu_custom_call.1} parent=39 // pred_region
          %s3271 = sand.u32 %s120, 1
          %s3272 = scalar_lea.sflag [#allocation3], %s3271
          %s3273 = sand.u32 %s120, 1
          %s3274 = smul.addr %s3273, 64
          %s3275 = scalar_lea.vmem [#allocation2], %s3274
          %3276 = dma.done %s3272, 1024
        $region44: #{tpu_custom_call.1} parent=39 // pred_fallthru
          _
      $region40: #{tpu_custom_call.1} parent=5 // pred_fallthru
        _
    $region6: #{tpu_custom_call.1} parent=1 // loop_footer
      %s16 = sadd.s32 1, %s12
    $region7: #{tpu_custom_call.1} parent=1 // loop_footer_branch
      %11 = sbr.rel target = $region3
    $region8: #{tpu_custom_call.1} parent=1 // loop_exit
      _
    %3277 = vsyncpa [#allocation3], 1
    %s3278 = scalar_lea.sflag [#allocation3], 1
    %3279 = vsyncpa %s3278, 1

</llo_original>
